<compile_context>
chip_gen: v6e
topology: v6e:2x2x1
jax: 0.10.0
libtpu: 0.0.40
codegen_flags: <defaults>
</compile_context>

<pallas_src>
import functools
import math

import jax
import jax.numpy as jnp
from jax.experimental import pallas as pl
from jax.experimental.pallas import tpu as pltpu


def _round_up(x, m):
    return ((x + m - 1) // m) * m


# ---------------------------------------------------------------------------
# Fused Pallas kernel: Z^T = W @ A + b  (bf16 MXU, fp32 acc)  ->  LSTM gates.
# Gate order follows torch.split(x, hidden_dim, dim=1): (i, f, c, o).
# ---------------------------------------------------------------------------
def _convlstm_fused_kernel(w_ref, a_ref, b_ref, cprev_ref, h_ref, c_ref, *, hidden_dim):
    # z tile: (4*Hd, TM) fp32; gates are sublane-aligned row blocks (Hd multiple of 8).
    z = jnp.dot(w_ref[...], a_ref[...], preferred_element_type=jnp.float32)
    z = z + b_ref[...]                                  # bias broadcast along lanes
    hd = hidden_dim
    i = jax.nn.sigmoid(z[0 * hd:1 * hd, :])
    f = jax.nn.sigmoid(z[1 * hd:2 * hd, :])
    g = jnp.tanh(z[2 * hd:3 * hd, :])
    o = jax.nn.sigmoid(z[3 * hd:4 * hd, :])
    c_new = f * cprev_ref[...] + i * g
    h_ref[...] = o * jnp.tanh(c_new)
    c_ref[...] = c_new


_PAD_MODE = {"zeros": "constant", "reflect": "reflect", "replicate": "edge", "circular": "wrap"}


def convlstm3d_cell(params, inputs, h_prev, c_prev, *, kernel_size=3, padding=1,
                    padding_mode="zeros", tile_m=512, compute_dtype=jnp.bfloat16):
    """Matches ConvLSTM3DCell.forward: inputs (B,Cin,D,H,W), states (B,Hd,D,H,W) -> (h, c)."""
    wi, bi, wh = params["wi"], params["bi"], params["wh"]
    B, cin, D, H, W = inputs.shape
    hd = h_prev.shape[1]
    k, p = kernel_size, padding
    c_all = cin + hd
    n_out = 4 * hd

    do = D + 2 * p - k + 1
    ho = H + 2 * p - k + 1
    wo = W + 2 * p - k + 1
    assert (do, ho, wo) == tuple(c_prev.shape[2:]), "stride-1 conv must preserve state spatial dims"

    m_rows = B * do * ho * wo
    k_dim = c_all * k * k * k
    k_pad = _round_up(k_dim, 128)        # MXU-aligned contraction; tail columns carry zero weights

    # ---- fused conv operands (channels-first -> "K rows x M columns" layout, bf16) ----
    xh = jnp.concatenate([inputs, h_prev], axis=1).astype(compute_dtype)        # (B, C, D,H,W)
    xh_t = jnp.transpose(xh, (1, 0, 2, 3, 4))                                   # (C, B, D,H,W)
    xp = jnp.pad(xh_t, ((0, 0), (0, 0), (p, p), (p, p), (p, p)),
                 mode=_PAD_MODE[padding_mode])

    # im2col, built once in bf16, row order = tap-major / channel-minor:
    #   row = ((kd*k + kh)*k + kw)*C + c ; column = ((b*Do + do)*Ho + ho)*Wo + wo
    rows = []
    for kd in range(k):
        for kh in range(k):
            for kw in range(k):
                rows.append(xp[:, :, kd:kd + do, kh:kh + ho, kw:kw + wo].reshape(c_all, m_rows))
    if k_pad > k_dim:
        rows.append(jnp.zeros((k_pad - k_dim, m_rows), compute_dtype))
    a_mat = jnp.concatenate(rows, axis=0)                                       # (Kp, M) bf16

    w_fused = jnp.concatenate([wi, wh], axis=1)                                 # (4Hd, C, k,k,k)
    w_left = jnp.transpose(w_fused, (0, 2, 3, 4, 1)).reshape(n_out, k_dim)      # tap-major cols
    w_left = jnp.pad(w_left, ((0, 0), (0, k_pad - k_dim))).astype(compute_dtype)  # (4Hd, Kp)

    bias = bi if bi is not None else jnp.zeros((n_out,), jnp.float32)
    bias = bias.reshape(n_out, 1).astype(jnp.float32)                           # compact, no bcast

    cprev_t = jnp.transpose(c_prev, (1, 0, 2, 3, 4)).reshape(hd, m_rows).astype(jnp.float32)

    # ---- tiling: big lane-dense M tiles, parallel grid, no padded copy of A ----
    tm = min(tile_m, _round_up(m_rows, 128))
    grid = (pl.cdiv(m_rows, tm),)

    kernel = functools.partial(_convlstm_fused_kernel, hidden_dim=hd)
    h_rows, c_rows = pl.pallas_call(
        kernel,
        out_shape=(jax.ShapeDtypeStruct((hd, m_rows), jnp.float32),
                   jax.ShapeDtypeStruct((hd, m_rows), jnp.float32)),
        grid=grid,
        in_specs=[
            pl.BlockSpec((n_out, k_pad), lambda i: (0, 0)),   # fused weights (bf16, resident)
            pl.BlockSpec((k_pad, tm), lambda i: (0, i)),      # im2col tile   (bf16)
            pl.BlockSpec((n_out, 1), lambda i: (0, 0)),       # bias          (compact fp32)
            pl.BlockSpec((hd, tm), lambda i: (0, i)),         # c_{t-1} tile  (fp32)
        ],
        out_specs=(pl.BlockSpec((hd, tm), lambda i: (0, i)),
                   pl.BlockSpec((hd, tm), lambda i: (0, i))),
        compiler_params=pltpu.CompilerParams(dimension_semantics=("parallel",)),
    )(w_left, a_mat, bias, cprev_t)

    h_new = jnp.transpose(h_rows.reshape(hd, B, do, ho, wo), (1, 0, 2, 3, 4))
    c_new = jnp.transpose(c_rows.reshape(hd, B, do, ho, wo), (1, 0, 2, 3, 4))
    return h_new, c_new


# ---------------------------------------------------------------------------
# Parameter init (PyTorch Conv3d default: U(-1/sqrt(fan_in), 1/sqrt(fan_in)))
# ---------------------------------------------------------------------------
def init_convlstm3d_cell(key, input_dim, hidden_dim, kernel_size=3, bias=True):
    k1, k2, k3 = jax.random.split(key, 3)
    k = kernel_size
    bnd_i = 1.0 / math.sqrt(input_dim * k ** 3)
    bnd_h = 1.0 / math.sqrt(hidden_dim * k ** 3)
    wi = jax.random.uniform(k1, (4 * hidden_dim, input_dim, k, k, k), jnp.float32, -bnd_i, bnd_i)
    wh = jax.random.uniform(k2, (4 * hidden_dim, hidden_dim, k, k, k), jnp.float32, -bnd_h, bnd_h)
    b = jax.random.uniform(k3, (4 * hidden_dim,), jnp.float32, -bnd_i, bnd_i) if bias else None
    return {"wi": wi, "bi": b, "wh": wh}


# ---------------------------------------------------------------------------
# Pure-JAX fp32 reference (for a numerical sanity check only)
# ---------------------------------------------------------------------------
def _reference_cell(params, inputs, h_prev, c_prev, padding=1):
    wi, bi, wh = params["wi"], params["bi"], params["wh"]
    dn = ("NCDHW", "OIDHW", "NCDHW")
    pad3 = [(padding, padding)] * 3
    x = jax.lax.conv_general_dilated(inputs, wi, (1, 1, 1), pad3, dimension_numbers=dn)
    if bi is not None:
        x = x + bi.reshape(1, -1, 1, 1, 1)
    h = jax.lax.conv_general_dilated(h_prev, wh, (1, 1, 1), pad3, dimension_numbers=dn)
    xi, xf, xc, xo = jnp.split(x, 4, axis=1)
    hi, hf, hc, ho = jnp.split(h, 4, axis=1)
    f = jax.nn.sigmoid(xf + hf)
    i = jax.nn.sigmoid(xi + hi)
    c = f * c_prev + i * jnp.tanh(xc + hc)
    o = jax.nn.sigmoid(xo + ho)
    return o * jnp.tanh(c), c


# ---------------------------------------------------------------------------
if __name__ == "__main__":
    B, Cin, Hd, N = 2, 4, 32, 16           # batch=2, input channels=4, hidden=32, 16^3 cube

    key = jax.random.PRNGKey(0)
    kp, kx, kh, kc = jax.random.split(key, 4)
    params = init_convlstm3d_cell(kp, Cin, Hd)

    x = jax.random.normal(kx, (B, Cin, N, N, N), jnp.float32)
    h0 = jax.random.normal(kh, (B, Hd, N, N, N), jnp.float32)
    c0 = jax.random.normal(kc, (B, Hd, N, N, N), jnp.float32)

    cell = jax.jit(convlstm3d_cell)
    h1, c1 = cell(params, x, h0, c0)
    h1, c1 = jax.block_until_ready((h1, c1))

    assert h1.shape == (B, Hd, N, N, N) and c1.shape == (B, Hd, N, N, N)
    assert bool(jnp.all(jnp.isfinite(h1))) and bool(jnp.all(jnp.isfinite(c1)))

    # Numerical sanity check vs fp32 reference (bf16 MXU operands -> small deviation).
    h_ref, c_ref = _reference_cell(params, x, h0, c0)
    assert float(jnp.max(jnp.abs(h1 - h_ref))) < 5e-2
    assert float(jnp.max(jnp.abs(c1 - c_ref))) < 5e-2

    print("KERNEL_OK")
</pallas_src>

<mosaic_0001>
module attributes {stable_mosaic.version = 11 : i64} {
  func.func @_convlstm_fused_kernel(%arg0: i32, %arg1: memref<128x1024xbf16, #tpu.memory_space<vmem>>, %arg2: memref<1024x512xbf16, #tpu.memory_space<vmem>>, %arg3: memref<128x1xf32, #tpu.memory_space<vmem>>, %arg4: memref<32x512xf32, #tpu.memory_space<vmem>>, %arg5: memref<32x512xf32, #tpu.memory_space<vmem>>, %arg6: memref<32x512xf32, #tpu.memory_space<vmem>>) attributes {dimension_semantics = [#tpu.dimension_semantics<parallel>], iteration_bounds = array<i64: 16>, scalar_prefetch = 0 : i64, scratch_operands = 0 : i64, tpu.core_type = #tpu.core_type<tc>, window_params = [{pipeline_mode = #tpu.pipeline_mode<synchronous>, transform_indices = @transform_0, window_bounds = array<i64: 128, 1024>}, {transform_indices = @transform_1, window_bounds = array<i64: 1024, 512>}, {pipeline_mode = #tpu.pipeline_mode<synchronous>, transform_indices = @transform_2, window_bounds = array<i64: 128, 1>}, {transform_indices = @transform_3, window_bounds = array<i64: 32, 512>}, {transform_indices = @transform_4, window_bounds = array<i64: 32, 512>}, {transform_indices = @transform_5, window_bounds = array<i64: 32, 512>}]} {
    %c0 = arith.constant 0 : index
    %c0_0 = arith.constant 0 : index
    %0 = vector.load %arg1[%c0, %c0_0] : memref<128x1024xbf16, #tpu.memory_space<vmem>>, vector<128x1024xbf16>
    %c0_1 = arith.constant 0 : index
    %c0_2 = arith.constant 0 : index
    %1 = vector.load %arg2[%c0_1, %c0_2] : memref<1024x512xbf16, #tpu.memory_space<vmem>>, vector<1024x512xbf16>
    %cst = arith.constant dense<0.000000e+00> : vector<128x512xf32>
    %2 = tpu.matmul %0, %1, %cst {dimension_numbers = #tpu.dot_dimension_numbers<[1], [0], [0], [1], [0, 0, 1, 1], [], []>} : vector<128x1024xbf16>, vector<1024x512xbf16>, vector<128x512xf32> -> vector<128x512xf32>
    %c0_3 = arith.constant 0 : index
    %c0_4 = arith.constant 0 : index
    %3 = vector.load %arg3[%c0_3, %c0_4] : memref<128x1xf32, #tpu.memory_space<vmem>>, vector<128x1xf32>
    %4 = vector.broadcast %3 : vector<128x1xf32> to vector<128x512xf32>
    %5 = arith.addf %2, %4 : vector<128x512xf32>
    %6 = vector.extract_strided_slice %5 {offsets = [0, 0], sizes = [32, 512], strides = [1, 1]} : vector<128x512xf32> to vector<32x512xf32>
    %7 = arith.negf %6 : vector<32x512xf32>
    %8 = math.exp %7 : vector<32x512xf32>
    %cst_5 = arith.constant 1.000000e+00 : f32
    %9 = vector.broadcast %cst_5 : f32 to vector<32x512xf32>
    %10 = arith.addf %9, %8 : vector<32x512xf32>
    %11 = arith.divf %9, %10 : vector<32x512xf32>
    %12 = vector.extract_strided_slice %5 {offsets = [32, 0], sizes = [32, 512], strides = [1, 1]} : vector<128x512xf32> to vector<32x512xf32>
    %13 = arith.negf %12 : vector<32x512xf32>
    %14 = math.exp %13 : vector<32x512xf32>
    %cst_6 = arith.constant 1.000000e+00 : f32
    %15 = vector.broadcast %cst_6 : f32 to vector<32x512xf32>
    %16 = arith.addf %15, %14 : vector<32x512xf32>
    %17 = arith.divf %15, %16 : vector<32x512xf32>
    %18 = vector.extract_strided_slice %5 {offsets = [64, 0], sizes = [32, 512], strides = [1, 1]} : vector<128x512xf32> to vector<32x512xf32>
    %19 = math.tanh %18 : vector<32x512xf32>
    %20 = vector.extract_strided_slice %5 {offsets = [96, 0], sizes = [32, 512], strides = [1, 1]} : vector<128x512xf32> to vector<32x512xf32>
    %21 = arith.negf %20 : vector<32x512xf32>
    %22 = math.exp %21 : vector<32x512xf32>
    %cst_7 = arith.constant 1.000000e+00 : f32
    %23 = vector.broadcast %cst_7 : f32 to vector<32x512xf32>
    %24 = arith.addf %23, %22 : vector<32x512xf32>
    %25 = arith.divf %23, %24 : vector<32x512xf32>
    %c0_8 = arith.constant 0 : index
    %c0_9 = arith.constant 0 : index
    %26 = vector.load %arg4[%c0_8, %c0_9] : memref<32x512xf32, #tpu.memory_space<vmem>>, vector<32x512xf32>
    %27 = arith.mulf %17, %26 : vector<32x512xf32>
    %28 = arith.mulf %11, %19 : vector<32x512xf32>
    %29 = arith.addf %27, %28 : vector<32x512xf32>
    %30 = math.tanh %29 : vector<32x512xf32>
    %31 = arith.mulf %25, %30 : vector<32x512xf32>
    %c0_10 = arith.constant 0 : index
    %c0_11 = arith.constant 0 : index
    %32 = vector.load %arg5[%c0_10, %c0_11] : memref<32x512xf32, #tpu.memory_space<vmem>>, vector<32x512xf32>
    tpu.vector_store %arg5[%c0_10, %c0_11], %31 {strides = array<i32>} : memref<32x512xf32, #tpu.memory_space<vmem>>, vector<32x512xf32>,
    %c0_12 = arith.constant 0 : index
    %c0_13 = arith.constant 0 : index
    %33 = vector.load %arg6[%c0_12, %c0_13] : memref<32x512xf32, #tpu.memory_space<vmem>>, vector<32x512xf32>
    tpu.vector_store %arg6[%c0_12, %c0_13], %29 {strides = array<i32>} : memref<32x512xf32, #tpu.memory_space<vmem>>, vector<32x512xf32>,
    return
  }
  func.func @transform_0(%arg0: i32) -> (i32, i32) {
    %c0_i32 = arith.constant 0 : i32
    %c0_i32_0 = arith.constant 0 : i32
    %c0_i32_1 = arith.constant 0 : i32
    return %c0_i32, %c0_i32_0 : i32, i32
  }
  func.func @transform_1(%arg0: i32) -> (i32, i32) {
    %c0_i32 = arith.constant 0 : i32
    %c0_i32_0 = arith.constant 0 : i32
    return %c0_i32, %arg0 : i32, i32
  }
  func.func @transform_2(%arg0: i32) -> (i32, i32) {
    %c0_i32 = arith.constant 0 : i32
    %c0_i32_0 = arith.constant 0 : i32
    %c0_i32_1 = arith.constant 0 : i32
    return %c0_i32, %c0_i32_0 : i32, i32
  }
  func.func @transform_3(%arg0: i32) -> (i32, i32) {
    %c0_i32 = arith.constant 0 : i32
    %c0_i32_0 = arith.constant 0 : i32
    return %c0_i32, %arg0 : i32, i32
  }
  func.func @transform_4(%arg0: i32) -> (i32, i32) {
    %c0_i32 = arith.constant 0 : i32
    %c0_i32_0 = arith.constant 0 : i32
    return %c0_i32, %arg0 : i32, i32
  }
  func.func @transform_5(%arg0: i32) -> (i32, i32) {
    %c0_i32 = arith.constant 0 : i32
    %c0_i32_0 = arith.constant 0 : i32
    return %c0_i32, %arg0 : i32, i32
  }
}

</mosaic_0001>

<llo_original>
// kernel: convlstm3d_cell.1
$region0: #{convlstm3d_cell.1}
  #allocation0 [shape = 'u32[]', space=smem, size = 0x4, offset = 0x4, fixed_abs, tag = 'smem constant byte address 0x4 - core index']
  #allocation1 [shape = 'u32[144,128]{1,0:T(1,128)}', space=vmem, size = 0x12000, scoped, tag = 'internal scratch']
  %s0 = inlined_call_operand.vmem [shape: bf16[128,1024], index: 0, kind: input, shape index: {}]
  %s1 = inlined_call_operand.vmem [shape: bf16[1024,8192], index: 1, kind: input, shape index: {}]
  %s2 = inlined_call_operand.vmem [shape: f32[128,1], index: 2, kind: input, shape index: {}]
  %s3 = inlined_call_operand.vmem [shape: f32[32,8192], index: 3, kind: input, shape index: {}]
  %s4 = inlined_call_operand.vmem [shape: f32[32,8192], index: 4, kind: output, shape index: {0}]
  %s5 = inlined_call_operand.vmem [shape: f32[32,8192], index: 5, kind: output, shape index: {1}]
  %6 = xla_tuple %s4, %s5
  %s7 = sld [smem:[#allocation0]]
  $region141: #{convlstm3d_cell.1} parent=0
    _
  %s9 = ssub.s32 1, %s7
  %s10 = scalar_select 0, %s9, %s7
  $region1: #{convlstm3d_cell.1} parent=0
    #allocation2 [shape = 'u8[2097152]{0}', space=vmem, size = 0x200000, scoped, tag = 'input window, operand 1']
    #allocation3 [shape = 'u8[131072]{0}', space=vmem, size = 0x20000, scoped, tag = 'input window, operand 3']
    #allocation4 [shape = 'u8[131072]{0}', space=vmem, size = 0x20000, scoped, tag = 'output window, operand 0']
    #allocation5 [shape = 'u8[131072]{0}', space=vmem, size = 0x20000, scoped, tag = 'output window, operand 1']
    loop: start=0, step=1, limit=18
    $region2: #{convlstm3d_cell.1} parent=1 // loop_pre_header
      _
    $region3: #{convlstm3d_cell.1} parent=1 // loop_header
      %s12 = sphi 0, %s16
      %p13 = scmp.ge.s32.totalorder %s12, 18
      %s20 = sphi 0, %s20
      %s22 = sphi 0, %s20
      %s23 = sphi 0, %s22
      %s37 = sphi 0, %s23
      %s43 = sphi 0, %s45
      %s46 = sphi 0, %s43
      %s47 = sphi 0, %s46
      %s63 = sphi 0, %s47
      %s67 = sphi 0, %s67
      %s69 = sphi 0, %s67
      %s70 = sphi 0, %s69
      %s84 = sphi 0, %s70
      %s90 = sphi 0, %s92
      %s93 = sphi 0, %s90
      %s94 = sphi 0, %s93
      %s110 = sphi 0, %s94
      %s116 = sphi 0, %s118
      %s119 = sphi 0, %s116
      %s120 = sphi 0, %s119
      %s136 = sphi 0, %s120
      %s142 = sphi 0, %s144
      %s145 = sphi 0, %s142
      %s146 = sphi 0, %s145
      %s162 = sphi 0, %s146
    $region4: #{convlstm3d_cell.1} parent=1 // loop_header_branch
      %15 = sbr.rel (%p13) target = $region8
    $region5: #{convlstm3d_cell.1} parent=1 // loop_body
      %s17 = ssub.s32 %s12, 1
      %s18 = ssub.s32 %s12, 2
      %s19 = sadd.s32 %s12, 1
      %s21 = sadd.s32 %s20, 1
      %p24 = scmp.eq.s32.totalorder %s12, 15
      %p25 = scmp.ne.s32.totalorder %s20, %s22
      %p26 = scmp.eq.s32.totalorder %s12, 0
      %p27 = por %p25, %p26
      %p28 = scmp.ne.s32.totalorder %s20, %s22
      %p29 = scmp.eq.s32.totalorder %s17, 15
      %p30 = por %p28, %p29
      %p31 = scmp.ne.s32.totalorder %s22, %s23
      %p32 = scmp.eq.s32.totalorder %s17, 0
      %p33 = por %p31, %p32
      %p34 = scmp.ne.s32.totalorder %s22, %s23
      %p35 = scmp.eq.s32.totalorder %s18, 15
      %p36 = por %p34, %p35
      %p38 = scmp.ne.s32.totalorder %s23, %s37
      %p39 = scmp.eq.s32.totalorder %s18, 0
      %p40 = por %p38, %p39
      %s41 = ssub.s32 %s12, %s19
      %p42 = scmp.eq.s32.totalorder %s41, 0
      %s44 = sadd.s32 %s43, 1
      %s45 = scalar_select %p42, %s43, %s44
      %p48 = pneg %p42
      %p49 = scmp.eq.s32.totalorder %s12, 15
      %p50 = por %p48, %p49
      %p51 = scmp.ne.s32.totalorder %s43, %s46
      %p52 = scmp.eq.s32.totalorder %s12, 0
      %p53 = por %p51, %p52
      %p54 = scmp.ne.s32.totalorder %s43, %s46
      %p55 = scmp.eq.s32.totalorder %s17, 15
      %p56 = por %p54, %p55
      %p57 = scmp.ne.s32.totalorder %s46, %s47
      %p58 = scmp.eq.s32.totalorder %s17, 0
      %p59 = por %p57, %p58
      %p60 = scmp.ne.s32.totalorder %s46, %s47
      %p61 = scmp.eq.s32.totalorder %s18, 15
      %p62 = por %p60, %p61
      %p64 = scmp.ne.s32.totalorder %s47, %s63
      %p65 = scmp.eq.s32.totalorder %s18, 0
      %p66 = por %p64, %p65
      %s68 = sadd.s32 %s67, 1
      %p71 = scmp.eq.s32.totalorder %s12, 15
      %p72 = scmp.ne.s32.totalorder %s67, %s69
      %p73 = scmp.eq.s32.totalorder %s12, 0
      %p74 = por %p72, %p73
      %p75 = scmp.ne.s32.totalorder %s67, %s69
      %p76 = scmp.eq.s32.totalorder %s17, 15
      %p77 = por %p75, %p76
      %p78 = scmp.ne.s32.totalorder %s69, %s70
      %p79 = scmp.eq.s32.totalorder %s17, 0
      %p80 = por %p78, %p79
      %p81 = scmp.ne.s32.totalorder %s69, %s70
      %p82 = scmp.eq.s32.totalorder %s18, 15
      %p83 = por %p81, %p82
      %p85 = scmp.ne.s32.totalorder %s70, %s84
      %p86 = scmp.eq.s32.totalorder %s18, 0
      %p87 = por %p85, %p86
      %s88 = ssub.s32 %s12, %s19
      %p89 = scmp.eq.s32.totalorder %s88, 0
      %s91 = sadd.s32 %s90, 1
      %s92 = scalar_select %p89, %s90, %s91
      %p95 = pneg %p89
      %p96 = scmp.eq.s32.totalorder %s12, 15
      %p97 = por %p95, %p96
      %p98 = scmp.ne.s32.totalorder %s90, %s93
      %p99 = scmp.eq.s32.totalorder %s12, 0
      %p100 = por %p98, %p99
      %p101 = scmp.ne.s32.totalorder %s90, %s93
      %p102 = scmp.eq.s32.totalorder %s17, 15
      %p103 = por %p101, %p102
      %p104 = scmp.ne.s32.totalorder %s93, %s94
      %p105 = scmp.eq.s32.totalorder %s17, 0
      %p106 = por %p104, %p105
      %p107 = scmp.ne.s32.totalorder %s93, %s94
      %p108 = scmp.eq.s32.totalorder %s18, 15
      %p109 = por %p107, %p108
      %p111 = scmp.ne.s32.totalorder %s94, %s110
      %p112 = scmp.eq.s32.totalorder %s18, 0
      %p113 = por %p111, %p112
      %s114 = ssub.s32 %s12, %s19
      %p115 = scmp.eq.s32.totalorder %s114, 0
      %s117 = sadd.s32 %s116, 1
      %s118 = scalar_select %p115, %s116, %s117
      %p121 = pneg %p115
      %p122 = scmp.eq.s32.totalorder %s12, 15
      %p123 = por %p121, %p122
      %p124 = scmp.ne.s32.totalorder %s116, %s119
      %p125 = scmp.eq.s32.totalorder %s12, 0
      %p126 = por %p124, %p125
      %p127 = scmp.ne.s32.totalorder %s116, %s119
      %p128 = scmp.eq.s32.totalorder %s17, 15
      %p129 = por %p127, %p128
      %p130 = scmp.ne.s32.totalorder %s119, %s120
      %p131 = scmp.eq.s32.totalorder %s17, 0
      %p132 = por %p130, %p131
      %p133 = scmp.ne.s32.totalorder %s119, %s120
      %p134 = scmp.eq.s32.totalorder %s18, 15
      %p135 = por %p133, %p134
      %p137 = scmp.ne.s32.totalorder %s120, %s136
      %p138 = scmp.eq.s32.totalorder %s18, 0
      %p139 = por %p137, %p138
      %s140 = ssub.s32 %s12, %s19
      %p141 = scmp.eq.s32.totalorder %s140, 0
      %s143 = sadd.s32 %s142, 1
      %s144 = scalar_select %p141, %s142, %s143
      %p147 = pneg %p141
      %p148 = scmp.eq.s32.totalorder %s12, 15
      %p149 = por %p147, %p148
      %p150 = scmp.ne.s32.totalorder %s142, %s145
      %p151 = scmp.eq.s32.totalorder %s12, 0
      %p152 = por %p150, %p151
      %p153 = scmp.ne.s32.totalorder %s142, %s145
      %p154 = scmp.eq.s32.totalorder %s17, 15
      %p155 = por %p153, %p154
      %p156 = scmp.ne.s32.totalorder %s145, %s146
      %p157 = scmp.eq.s32.totalorder %s17, 0
      %p158 = por %p156, %p157
      %p159 = scmp.ne.s32.totalorder %s145, %s146
      %p160 = scmp.eq.s32.totalorder %s18, 15
      %p161 = por %p159, %p160
      %p163 = scmp.ne.s32.totalorder %s146, %s162
      %p164 = scmp.eq.s32.totalorder %s18, 0
      %p165 = por %p163, %p164
      %p166 = scmp.le.s32.totalorder 1, %s12
      %p167 = scmp.lt.s32.totalorder %s12, 17
      %p168 = pnand %p166, %p167
      %p169 = pneg %p168
      // Predicated region
      $region9: #{convlstm3d_cell.1} parent=5 // pred_check
        _
      $region10: #{convlstm3d_cell.1} parent=5 // pred_check_branch
        %171 = sbr.rel (%p168) target = $region12
      $region11: #{convlstm3d_cell.1} parent=5 // pred_region
        %s172 = ssub.s32 %s12, 1
        // Predicated region
        $region13: #{convlstm3d_cell.1} parent=11 // pred_check
          %p173 = pneg %p33
        $region14: #{convlstm3d_cell.1} parent=11 // pred_check_branch
          %175 = sbr.rel (%p173) target = $region16
        $region15: #{convlstm3d_cell.1} parent=11 // pred_region
          _
        $region16: #{convlstm3d_cell.1} parent=11 // pred_fallthru
          _
        // Predicated region
        $region17: #{convlstm3d_cell.1} parent=11 // pred_check
          %p176 = pneg %p80
        $region18: #{convlstm3d_cell.1} parent=11 // pred_check_branch
          %178 = sbr.rel (%p176) target = $region20
        $region19: #{convlstm3d_cell.1} parent=11 // pred_region
          _
        $region20: #{convlstm3d_cell.1} parent=11 // pred_fallthru
          _
      $region12: #{convlstm3d_cell.1} parent=5 // pred_fallthru
        _
      %p179 = scmp.lt.s32.totalorder %s12, 16
      // Predicated region
      $region21: #{convlstm3d_cell.1} parent=5 // pred_check
        %p180 = pneg %p179
      $region22: #{convlstm3d_cell.1} parent=5 // pred_check_branch
        %182 = sbr.rel (%p180) target = $region24
      $region23: #{convlstm3d_cell.1} parent=5 // pred_region
        // Predicated region
        $region25: #{convlstm3d_cell.1} parent=23 // pred_check
          %p183 = pneg %p53
        $region26: #{convlstm3d_cell.1} parent=23 // pred_check_branch
          %185 = sbr.rel (%p183) target = $region28
        $region27: #{convlstm3d_cell.1} parent=23 // pred_region
          %s186 = sand.u32 %s43, 1
          %s187 = sand.u32 %s43, 1
          %s188 = smul.addr %s187, 2048
          %s189 = scalar_lea.vmem [#allocation2], %s188
          %s190 = smul.u32 4, %s12
          %s191 = smul.addr %s190, 4
          %s192 = scalar_lea.vmem %s1, %s191
          // Predicated region
          $region29: #{convlstm3d_cell.1} parent=27 // pred_check
            _
          $region30: #{convlstm3d_cell.1} parent=27 // pred_check_branch
            %194 = sbr.rel (0) target = $region32
          $region31: #{convlstm3d_cell.1} parent=27 // pred_region
            // Predicated region
            $region33: #{convlstm3d_cell.1} parent=31 // pred_check
              _
            $region34: #{convlstm3d_cell.1} parent=31 // pred_check_branch
              %196 = sbr.rel (0) target = $region36
            $region35: #{convlstm3d_cell.1} parent=31 // pred_region
              loop: start=0, step=1, limit=1
              $region37: #{convlstm3d_cell.1} parent=35 // loop_pre_header
                _
              $region38: #{convlstm3d_cell.1} parent=35 // loop_header
                %s198 = sphi 0, %s202
                %p199 = scmp.ge.s32.totalorder %s198, 1
                %s203 = sphi %s192, %s192
                %s204 = sphi %s189, %s189
              $region39: #{convlstm3d_cell.1} parent=35 // loop_header_branch
                %201 = sbr.rel (%p199) target = $region43
              $region40: #{convlstm3d_cell.1} parent=35 // loop_body
                %v205 = vld [vmem:[%s203] sm:$0xff]
                %206 = vst [vmem:[%s204] sm:$0xff] %v205
                %v207 = vld [vmem:[%s203 + $0x8] sm:$0xff]
                %208 = vst [vmem:[%s204 + $0x8] sm:$0xff] %v207
                %v209 = vld [vmem:[%s203 + $0x100] sm:$0xff]
                %210 = vst [vmem:[%s204 + $0x10] sm:$0xff] %v209
                %v211 = vld [vmem:[%s203 + $0x108] sm:$0xff]
                %212 = vst [vmem:[%s204 + $0x18] sm:$0xff] %v211
                %v213 = vld [vmem:[%s203 + $0x200] sm:$0xff]
                %214 = vst [vmem:[%s204 + $0x20] sm:$0xff] %v213
                %v215 = vld [vmem:[%s203 + $0x208] sm:$0xff]
                %216 = vst [vmem:[%s204 + $0x28] sm:$0xff] %v215
                %v217 = vld [vmem:[%s203 + $0x300] sm:$0xff]
                %218 = vst [vmem:[%s204 + $0x30] sm:$0xff] %v217
                %v219 = vld [vmem:[%s203 + $0x308] sm:$0xff]
                %220 = vst [vmem:[%s204 + $0x38] sm:$0xff] %v219
                %v221 = vld [vmem:[%s203 + $0x400] sm:$0xff]
                %222 = vst [vmem:[%s204 + $0x40] sm:$0xff] %v221
                %v223 = vld [vmem:[%s203 + $0x408] sm:$0xff]
                %224 = vst [vmem:[%s204 + $0x48] sm:$0xff] %v223
                %v225 = vld [vmem:[%s203 + $0x500] sm:$0xff]
                %226 = vst [vmem:[%s204 + $0x50] sm:$0xff] %v225
                %v227 = vld [vmem:[%s203 + $0x508] sm:$0xff]
                %228 = vst [vmem:[%s204 + $0x58] sm:$0xff] %v227
                %v229 = vld [vmem:[%s203 + $0x600] sm:$0xff]
                %230 = vst [vmem:[%s204 + $0x60] sm:$0xff] %v229
                %v231 = vld [vmem:[%s203 + $0x608] sm:$0xff]
                %232 = vst [vmem:[%s204 + $0x68] sm:$0xff] %v231
                %v233 = vld [vmem:[%s203 + $0x700] sm:$0xff]
                %234 = vst [vmem:[%s204 + $0x70] sm:$0xff] %v233
                %v235 = vld [vmem:[%s203 + $0x708] sm:$0xff]
                %236 = vst [vmem:[%s204 + $0x78] sm:$0xff] %v235
                %v237 = vld [vmem:[%s203 + $0x800] sm:$0xff]
                %238 = vst [vmem:[%s204 + $0x80] sm:$0xff] %v237
                %v239 = vld [vmem:[%s203 + $0x808] sm:$0xff]
                %240 = vst [vmem:[%s204 + $0x88] sm:$0xff] %v239
                %v241 = vld [vmem:[%s203 + $0x900] sm:$0xff]
                %242 = vst [vmem:[%s204 + $0x90] sm:$0xff] %v241
                %v243 = vld [vmem:[%s203 + $0x908] sm:$0xff]
                %244 = vst [vmem:[%s204 + $0x98] sm:$0xff] %v243
                %v245 = vld [vmem:[%s203 + $0xa00] sm:$0xff]
                %246 = vst [vmem:[%s204 + $0xa0] sm:$0xff] %v245
                %v247 = vld [vmem:[%s203 + $0xa08] sm:$0xff]
                %248 = vst [vmem:[%s204 + $0xa8] sm:$0xff] %v247
                %v249 = vld [vmem:[%s203 + $0xb00] sm:$0xff]
                %250 = vst [vmem:[%s204 + $0xb0] sm:$0xff] %v249
                %v251 = vld [vmem:[%s203 + $0xb08] sm:$0xff]
                %252 = vst [vmem:[%s204 + $0xb8] sm:$0xff] %v251
                %v253 = vld [vmem:[%s203 + $0xc00] sm:$0xff]
                %254 = vst [vmem:[%s204 + $0xc0] sm:$0xff] %v253
                %v255 = vld [vmem:[%s203 + $0xc08] sm:$0xff]
                %256 = vst [vmem:[%s204 + $0xc8] sm:$0xff] %v255
                %v257 = vld [vmem:[%s203 + $0xd00] sm:$0xff]
                %258 = vst [vmem:[%s204 + $0xd0] sm:$0xff] %v257
                %v259 = vld [vmem:[%s203 + $0xd08] sm:$0xff]
                %260 = vst [vmem:[%s204 + $0xd8] sm:$0xff] %v259
                %v261 = vld [vmem:[%s203 + $0xe00] sm:$0xff]
                %262 = vst [vmem:[%s204 + $0xe0] sm:$0xff] %v261
                %v263 = vld [vmem:[%s203 + $0xe08] sm:$0xff]
                %264 = vst [vmem:[%s204 + $0xe8] sm:$0xff] %v263
                %v265 = vld [vmem:[%s203 + $0xf00] sm:$0xff]
                %266 = vst [vmem:[%s204 + $0xf0] sm:$0xff] %v265
                %v267 = vld [vmem:[%s203 + $0xf08] sm:$0xff]
                %268 = vst [vmem:[%s204 + $0xf8] sm:$0xff] %v267
                %v269 = vld [vmem:[%s203 + $0x1000] sm:$0xff]
                %270 = vst [vmem:[%s204 + $0x100] sm:$0xff] %v269
                %v271 = vld [vmem:[%s203 + $0x1008] sm:$0xff]
                %272 = vst [vmem:[%s204 + $0x108] sm:$0xff] %v271
                %v273 = vld [vmem:[%s203 + $0x1100] sm:$0xff]
                %274 = vst [vmem:[%s204 + $0x110] sm:$0xff] %v273
                %v275 = vld [vmem:[%s203 + $0x1108] sm:$0xff]
                %276 = vst [vmem:[%s204 + $0x118] sm:$0xff] %v275
                %v277 = vld [vmem:[%s203 + $0x1200] sm:$0xff]
                %278 = vst [vmem:[%s204 + $0x120] sm:$0xff] %v277
                %v279 = vld [vmem:[%s203 + $0x1208] sm:$0xff]
                %280 = vst [vmem:[%s204 + $0x128] sm:$0xff] %v279
                %v281 = vld [vmem:[%s203 + $0x1300] sm:$0xff]
                %282 = vst [vmem:[%s204 + $0x130] sm:$0xff] %v281
                %v283 = vld [vmem:[%s203 + $0x1308] sm:$0xff]
                %284 = vst [vmem:[%s204 + $0x138] sm:$0xff] %v283
                %v285 = vld [vmem:[%s203 + $0x1400] sm:$0xff]
                %286 = vst [vmem:[%s204 + $0x140] sm:$0xff] %v285
                %v287 = vld [vmem:[%s203 + $0x1408] sm:$0xff]
                %288 = vst [vmem:[%s204 + $0x148] sm:$0xff] %v287
                %v289 = vld [vmem:[%s203 + $0x1500] sm:$0xff]
                %290 = vst [vmem:[%s204 + $0x150] sm:$0xff] %v289
                %v291 = vld [vmem:[%s203 + $0x1508] sm:$0xff]
                %292 = vst [vmem:[%s204 + $0x158] sm:$0xff] %v291
                %v293 = vld [vmem:[%s203 + $0x1600] sm:$0xff]
                %294 = vst [vmem:[%s204 + $0x160] sm:$0xff] %v293
                %v295 = vld [vmem:[%s203 + $0x1608] sm:$0xff]
                %296 = vst [vmem:[%s204 + $0x168] sm:$0xff] %v295
                %v297 = vld [vmem:[%s203 + $0x1700] sm:$0xff]
                %298 = vst [vmem:[%s204 + $0x170] sm:$0xff] %v297
                %v299 = vld [vmem:[%s203 + $0x1708] sm:$0xff]
                %300 = vst [vmem:[%s204 + $0x178] sm:$0xff] %v299
                %v301 = vld [vmem:[%s203 + $0x1800] sm:$0xff]
                %302 = vst [vmem:[%s204 + $0x180] sm:$0xff] %v301
                %v303 = vld [vmem:[%s203 + $0x1808] sm:$0xff]
                %304 = vst [vmem:[%s204 + $0x188] sm:$0xff] %v303
                %v305 = vld [vmem:[%s203 + $0x1900] sm:$0xff]
                %306 = vst [vmem:[%s204 + $0x190] sm:$0xff] %v305
                %v307 = vld [vmem:[%s203 + $0x1908] sm:$0xff]
                %308 = vst [vmem:[%s204 + $0x198] sm:$0xff] %v307
                %v309 = vld [vmem:[%s203 + $0x1a00] sm:$0xff]
                %310 = vst [vmem:[%s204 + $0x1a0] sm:$0xff] %v309
                %v311 = vld [vmem:[%s203 + $0x1a08] sm:$0xff]
                %312 = vst [vmem:[%s204 + $0x1a8] sm:$0xff] %v311
                %v313 = vld [vmem:[%s203 + $0x1b00] sm:$0xff]
                %314 = vst [vmem:[%s204 + $0x1b0] sm:$0xff] %v313
                %v315 = vld [vmem:[%s203 + $0x1b08] sm:$0xff]
                %316 = vst [vmem:[%s204 + $0x1b8] sm:$0xff] %v315
                %v317 = vld [vmem:[%s203 + $0x1c00] sm:$0xff]
                %318 = vst [vmem:[%s204 + $0x1c0] sm:$0xff] %v317
                %v319 = vld [vmem:[%s203 + $0x1c08] sm:$0xff]
                %320 = vst [vmem:[%s204 + $0x1c8] sm:$0xff] %v319
                %v321 = vld [vmem:[%s203 + $0x1d00] sm:$0xff]
                %322 = vst [vmem:[%s204 + $0x1d0] sm:$0xff] %v321
                %v323 = vld [vmem:[%s203 + $0x1d08] sm:$0xff]
                %324 = vst [vmem:[%s204 + $0x1d8] sm:$0xff] %v323
                %v325 = vld [vmem:[%s203 + $0x1e00] sm:$0xff]
                %326 = vst [vmem:[%s204 + $0x1e0] sm:$0xff] %v325
                %v327 = vld [vmem:[%s203 + $0x1e08] sm:$0xff]
                %328 = vst [vmem:[%s204 + $0x1e8] sm:$0xff] %v327
                %v329 = vld [vmem:[%s203 + $0x1f00] sm:$0xff]
                %330 = vst [vmem:[%s204 + $0x1f0] sm:$0xff] %v329
                %v331 = vld [vmem:[%s203 + $0x1f08] sm:$0xff]
                %332 = vst [vmem:[%s204 + $0x1f8] sm:$0xff] %v331
                %v333 = vld [vmem:[%s203 + $0x2000] sm:$0xff]
                %334 = vst [vmem:[%s204 + $0x200] sm:$0xff] %v333
                %v335 = vld [vmem:[%s203 + $0x2008] sm:$0xff]
                %336 = vst [vmem:[%s204 + $0x208] sm:$0xff] %v335
                %v337 = vld [vmem:[%s203 + $0x2100] sm:$0xff]
                %338 = vst [vmem:[%s204 + $0x210] sm:$0xff] %v337
                %v339 = vld [vmem:[%s203 + $0x2108] sm:$0xff]
                %340 = vst [vmem:[%s204 + $0x218] sm:$0xff] %v339
                %v341 = vld [vmem:[%s203 + $0x2200] sm:$0xff]
                %342 = vst [vmem:[%s204 + $0x220] sm:$0xff] %v341
                %v343 = vld [vmem:[%s203 + $0x2208] sm:$0xff]
                %344 = vst [vmem:[%s204 + $0x228] sm:$0xff] %v343
                %v345 = vld [vmem:[%s203 + $0x2300] sm:$0xff]
                %346 = vst [vmem:[%s204 + $0x230] sm:$0xff] %v345
                %v347 = vld [vmem:[%s203 + $0x2308] sm:$0xff]
                %348 = vst [vmem:[%s204 + $0x238] sm:$0xff] %v347
                %v349 = vld [vmem:[%s203 + $0x2400] sm:$0xff]
                %350 = vst [vmem:[%s204 + $0x240] sm:$0xff] %v349
                %v351 = vld [vmem:[%s203 + $0x2408] sm:$0xff]
                %352 = vst [vmem:[%s204 + $0x248] sm:$0xff] %v351
                %v353 = vld [vmem:[%s203 + $0x2500] sm:$0xff]
                %354 = vst [vmem:[%s204 + $0x250] sm:$0xff] %v353
                %v355 = vld [vmem:[%s203 + $0x2508] sm:$0xff]
                %356 = vst [vmem:[%s204 + $0x258] sm:$0xff] %v355
                %v357 = vld [vmem:[%s203 + $0x2600] sm:$0xff]
                %358 = vst [vmem:[%s204 + $0x260] sm:$0xff] %v357
                %v359 = vld [vmem:[%s203 + $0x2608] sm:$0xff]
                %360 = vst [vmem:[%s204 + $0x268] sm:$0xff] %v359
                %v361 = vld [vmem:[%s203 + $0x2700] sm:$0xff]
                %362 = vst [vmem:[%s204 + $0x270] sm:$0xff] %v361
                %v363 = vld [vmem:[%s203 + $0x2708] sm:$0xff]
                %364 = vst [vmem:[%s204 + $0x278] sm:$0xff] %v363
                %v365 = vld [vmem:[%s203 + $0x2800] sm:$0xff]
                %366 = vst [vmem:[%s204 + $0x280] sm:$0xff] %v365
                %v367 = vld [vmem:[%s203 + $0x2808] sm:$0xff]
                %368 = vst [vmem:[%s204 + $0x288] sm:$0xff] %v367
                %v369 = vld [vmem:[%s203 + $0x2900] sm:$0xff]
                %370 = vst [vmem:[%s204 + $0x290] sm:$0xff] %v369
                %v371 = vld [vmem:[%s203 + $0x2908] sm:$0xff]
                %372 = vst [vmem:[%s204 + $0x298] sm:$0xff] %v371
                %v373 = vld [vmem:[%s203 + $0x2a00] sm:$0xff]
                %374 = vst [vmem:[%s204 + $0x2a0] sm:$0xff] %v373
                %v375 = vld [vmem:[%s203 + $0x2a08] sm:$0xff]
                %376 = vst [vmem:[%s204 + $0x2a8] sm:$0xff] %v375
                %v377 = vld [vmem:[%s203 + $0x2b00] sm:$0xff]
                %378 = vst [vmem:[%s204 + $0x2b0] sm:$0xff] %v377
                %v379 = vld [vmem:[%s203 + $0x2b08] sm:$0xff]
                %380 = vst [vmem:[%s204 + $0x2b8] sm:$0xff] %v379
                %v381 = vld [vmem:[%s203 + $0x2c00] sm:$0xff]
                %382 = vst [vmem:[%s204 + $0x2c0] sm:$0xff] %v381
                %v383 = vld [vmem:[%s203 + $0x2c08] sm:$0xff]
                %384 = vst [vmem:[%s204 + $0x2c8] sm:$0xff] %v383
                %v385 = vld [vmem:[%s203 + $0x2d00] sm:$0xff]
                %386 = vst [vmem:[%s204 + $0x2d0] sm:$0xff] %v385
                %v387 = vld [vmem:[%s203 + $0x2d08] sm:$0xff]
                %388 = vst [vmem:[%s204 + $0x2d8] sm:$0xff] %v387
                %v389 = vld [vmem:[%s203 + $0x2e00] sm:$0xff]
                %390 = vst [vmem:[%s204 + $0x2e0] sm:$0xff] %v389
                %v391 = vld [vmem:[%s203 + $0x2e08] sm:$0xff]
                %392 = vst [vmem:[%s204 + $0x2e8] sm:$0xff] %v391
                %v393 = vld [vmem:[%s203 + $0x2f00] sm:$0xff]
                %394 = vst [vmem:[%s204 + $0x2f0] sm:$0xff] %v393
                %v395 = vld [vmem:[%s203 + $0x2f08] sm:$0xff]
                %396 = vst [vmem:[%s204 + $0x2f8] sm:$0xff] %v395
                %v397 = vld [vmem:[%s203 + $0x3000] sm:$0xff]
                %398 = vst [vmem:[%s204 + $0x300] sm:$0xff] %v397
                %v399 = vld [vmem:[%s203 + $0x3008] sm:$0xff]
                %400 = vst [vmem:[%s204 + $0x308] sm:$0xff] %v399
                %v401 = vld [vmem:[%s203 + $0x3100] sm:$0xff]
                %402 = vst [vmem:[%s204 + $0x310] sm:$0xff] %v401
                %v403 = vld [vmem:[%s203 + $0x3108] sm:$0xff]
                %404 = vst [vmem:[%s204 + $0x318] sm:$0xff] %v403
                %v405 = vld [vmem:[%s203 + $0x3200] sm:$0xff]
                %406 = vst [vmem:[%s204 + $0x320] sm:$0xff] %v405
                %v407 = vld [vmem:[%s203 + $0x3208] sm:$0xff]
                %408 = vst [vmem:[%s204 + $0x328] sm:$0xff] %v407
                %v409 = vld [vmem:[%s203 + $0x3300] sm:$0xff]
                %410 = vst [vmem:[%s204 + $0x330] sm:$0xff] %v409
                %v411 = vld [vmem:[%s203 + $0x3308] sm:$0xff]
                %412 = vst [vmem:[%s204 + $0x338] sm:$0xff] %v411
                %v413 = vld [vmem:[%s203 + $0x3400] sm:$0xff]
                %414 = vst [vmem:[%s204 + $0x340] sm:$0xff] %v413
                %v415 = vld [vmem:[%s203 + $0x3408] sm:$0xff]
                %416 = vst [vmem:[%s204 + $0x348] sm:$0xff] %v415
                %v417 = vld [vmem:[%s203 + $0x3500] sm:$0xff]
                %418 = vst [vmem:[%s204 + $0x350] sm:$0xff] %v417
                %v419 = vld [vmem:[%s203 + $0x3508] sm:$0xff]
                %420 = vst [vmem:[%s204 + $0x358] sm:$0xff] %v419
                %v421 = vld [vmem:[%s203 + $0x3600] sm:$0xff]
                %422 = vst [vmem:[%s204 + $0x360] sm:$0xff] %v421
                %v423 = vld [vmem:[%s203 + $0x3608] sm:$0xff]
                %424 = vst [vmem:[%s204 + $0x368] sm:$0xff] %v423
                %v425 = vld [vmem:[%s203 + $0x3700] sm:$0xff]
                %426 = vst [vmem:[%s204 + $0x370] sm:$0xff] %v425
                %v427 = vld [vmem:[%s203 + $0x3708] sm:$0xff]
                %428 = vst [vmem:[%s204 + $0x378] sm:$0xff] %v427
                %v429 = vld [vmem:[%s203 + $0x3800] sm:$0xff]
                %430 = vst [vmem:[%s204 + $0x380] sm:$0xff] %v429
                %v431 = vld [vmem:[%s203 + $0x3808] sm:$0xff]
                %432 = vst [vmem:[%s204 + $0x388] sm:$0xff] %v431
                %v433 = vld [vmem:[%s203 + $0x3900] sm:$0xff]
                %434 = vst [vmem:[%s204 + $0x390] sm:$0xff] %v433
                %v435 = vld [vmem:[%s203 + $0x3908] sm:$0xff]
                %436 = vst [vmem:[%s204 + $0x398] sm:$0xff] %v435
                %v437 = vld [vmem:[%s203 + $0x3a00] sm:$0xff]
                %438 = vst [vmem:[%s204 + $0x3a0] sm:$0xff] %v437
                %v439 = vld [vmem:[%s203 + $0x3a08] sm:$0xff]
                %440 = vst [vmem:[%s204 + $0x3a8] sm:$0xff] %v439
                %v441 = vld [vmem:[%s203 + $0x3b00] sm:$0xff]
                %442 = vst [vmem:[%s204 + $0x3b0] sm:$0xff] %v441
                %v443 = vld [vmem:[%s203 + $0x3b08] sm:$0xff]
                %444 = vst [vmem:[%s204 + $0x3b8] sm:$0xff] %v443
                %v445 = vld [vmem:[%s203 + $0x3c00] sm:$0xff]
                %446 = vst [vmem:[%s204 + $0x3c0] sm:$0xff] %v445
                %v447 = vld [vmem:[%s203 + $0x3c08] sm:$0xff]
                %448 = vst [vmem:[%s204 + $0x3c8] sm:$0xff] %v447
                %v449 = vld [vmem:[%s203 + $0x3d00] sm:$0xff]
                %450 = vst [vmem:[%s204 + $0x3d0] sm:$0xff] %v449
                %v451 = vld [vmem:[%s203 + $0x3d08] sm:$0xff]
                %452 = vst [vmem:[%s204 + $0x3d8] sm:$0xff] %v451
                %v453 = vld [vmem:[%s203 + $0x3e00] sm:$0xff]
                %454 = vst [vmem:[%s204 + $0x3e0] sm:$0xff] %v453
                %v455 = vld [vmem:[%s203 + $0x3e08] sm:$0xff]
                %456 = vst [vmem:[%s204 + $0x3e8] sm:$0xff] %v455
                %v457 = vld [vmem:[%s203 + $0x3f00] sm:$0xff]
                %458 = vst [vmem:[%s204 + $0x3f0] sm:$0xff] %v457
                %v459 = vld [vmem:[%s203 + $0x3f08] sm:$0xff]
                %460 = vst [vmem:[%s204 + $0x3f8] sm:$0xff] %v459
                %v461 = vld [vmem:[%s203 + $0x4000] sm:$0xff]
                %462 = vst [vmem:[%s204 + $0x400] sm:$0xff] %v461
                %v463 = vld [vmem:[%s203 + $0x4008] sm:$0xff]
                %464 = vst [vmem:[%s204 + $0x408] sm:$0xff] %v463
                %v465 = vld [vmem:[%s203 + $0x4100] sm:$0xff]
                %466 = vst [vmem:[%s204 + $0x410] sm:$0xff] %v465
                %v467 = vld [vmem:[%s203 + $0x4108] sm:$0xff]
                %468 = vst [vmem:[%s204 + $0x418] sm:$0xff] %v467
                %v469 = vld [vmem:[%s203 + $0x4200] sm:$0xff]
                %470 = vst [vmem:[%s204 + $0x420] sm:$0xff] %v469
                %v471 = vld [vmem:[%s203 + $0x4208] sm:$0xff]
                %472 = vst [vmem:[%s204 + $0x428] sm:$0xff] %v471
                %v473 = vld [vmem:[%s203 + $0x4300] sm:$0xff]
                %474 = vst [vmem:[%s204 + $0x430] sm:$0xff] %v473
                %v475 = vld [vmem:[%s203 + $0x4308] sm:$0xff]
                %476 = vst [vmem:[%s204 + $0x438] sm:$0xff] %v475
                %v477 = vld [vmem:[%s203 + $0x4400] sm:$0xff]
                %478 = vst [vmem:[%s204 + $0x440] sm:$0xff] %v477
                %v479 = vld [vmem:[%s203 + $0x4408] sm:$0xff]
                %480 = vst [vmem:[%s204 + $0x448] sm:$0xff] %v479
                %v481 = vld [vmem:[%s203 + $0x4500] sm:$0xff]
                %482 = vst [vmem:[%s204 + $0x450] sm:$0xff] %v481
                %v483 = vld [vmem:[%s203 + $0x4508] sm:$0xff]
                %484 = vst [vmem:[%s204 + $0x458] sm:$0xff] %v483
                %v485 = vld [vmem:[%s203 + $0x4600] sm:$0xff]
                %486 = vst [vmem:[%s204 + $0x460] sm:$0xff] %v485
                %v487 = vld [vmem:[%s203 + $0x4608] sm:$0xff]
                %488 = vst [vmem:[%s204 + $0x468] sm:$0xff] %v487
                %v489 = vld [vmem:[%s203 + $0x4700] sm:$0xff]
                %490 = vst [vmem:[%s204 + $0x470] sm:$0xff] %v489
                %v491 = vld [vmem:[%s203 + $0x4708] sm:$0xff]
                %492 = vst [vmem:[%s204 + $0x478] sm:$0xff] %v491
                %v493 = vld [vmem:[%s203 + $0x4800] sm:$0xff]
                %494 = vst [vmem:[%s204 + $0x480] sm:$0xff] %v493
                %v495 = vld [vmem:[%s203 + $0x4808] sm:$0xff]
                %496 = vst [vmem:[%s204 + $0x488] sm:$0xff] %v495
                %v497 = vld [vmem:[%s203 + $0x4900] sm:$0xff]
                %498 = vst [vmem:[%s204 + $0x490] sm:$0xff] %v497
                %v499 = vld [vmem:[%s203 + $0x4908] sm:$0xff]
                %500 = vst [vmem:[%s204 + $0x498] sm:$0xff] %v499
                %v501 = vld [vmem:[%s203 + $0x4a00] sm:$0xff]
                %502 = vst [vmem:[%s204 + $0x4a0] sm:$0xff] %v501
                %v503 = vld [vmem:[%s203 + $0x4a08] sm:$0xff]
                %504 = vst [vmem:[%s204 + $0x4a8] sm:$0xff] %v503
                %v505 = vld [vmem:[%s203 + $0x4b00] sm:$0xff]
                %506 = vst [vmem:[%s204 + $0x4b0] sm:$0xff] %v505
                %v507 = vld [vmem:[%s203 + $0x4b08] sm:$0xff]
                %508 = vst [vmem:[%s204 + $0x4b8] sm:$0xff] %v507
                %v509 = vld [vmem:[%s203 + $0x4c00] sm:$0xff]
                %510 = vst [vmem:[%s204 + $0x4c0] sm:$0xff] %v509
                %v511 = vld [vmem:[%s203 + $0x4c08] sm:$0xff]
                %512 = vst [vmem:[%s204 + $0x4c8] sm:$0xff] %v511
                %v513 = vld [vmem:[%s203 + $0x4d00] sm:$0xff]
                %514 = vst [vmem:[%s204 + $0x4d0] sm:$0xff] %v513
                %v515 = vld [vmem:[%s203 + $0x4d08] sm:$0xff]
                %516 = vst [vmem:[%s204 + $0x4d8] sm:$0xff] %v515
                %v517 = vld [vmem:[%s203 + $0x4e00] sm:$0xff]
                %518 = vst [vmem:[%s204 + $0x4e0] sm:$0xff] %v517
                %v519 = vld [vmem:[%s203 + $0x4e08] sm:$0xff]
                %520 = vst [vmem:[%s204 + $0x4e8] sm:$0xff] %v519
                %v521 = vld [vmem:[%s203 + $0x4f00] sm:$0xff]
                %522 = vst [vmem:[%s204 + $0x4f0] sm:$0xff] %v521
                %v523 = vld [vmem:[%s203 + $0x4f08] sm:$0xff]
                %524 = vst [vmem:[%s204 + $0x4f8] sm:$0xff] %v523
                %v525 = vld [vmem:[%s203 + $0x5000] sm:$0xff]
                %526 = vst [vmem:[%s204 + $0x500] sm:$0xff] %v525
                %v527 = vld [vmem:[%s203 + $0x5008] sm:$0xff]
                %528 = vst [vmem:[%s204 + $0x508] sm:$0xff] %v527
                %v529 = vld [vmem:[%s203 + $0x5100] sm:$0xff]
                %530 = vst [vmem:[%s204 + $0x510] sm:$0xff] %v529
                %v531 = vld [vmem:[%s203 + $0x5108] sm:$0xff]
                %532 = vst [vmem:[%s204 + $0x518] sm:$0xff] %v531
                %v533 = vld [vmem:[%s203 + $0x5200] sm:$0xff]
                %534 = vst [vmem:[%s204 + $0x520] sm:$0xff] %v533
                %v535 = vld [vmem:[%s203 + $0x5208] sm:$0xff]
                %536 = vst [vmem:[%s204 + $0x528] sm:$0xff] %v535
                %v537 = vld [vmem:[%s203 + $0x5300] sm:$0xff]
                %538 = vst [vmem:[%s204 + $0x530] sm:$0xff] %v537
                %v539 = vld [vmem:[%s203 + $0x5308] sm:$0xff]
                %540 = vst [vmem:[%s204 + $0x538] sm:$0xff] %v539
                %v541 = vld [vmem:[%s203 + $0x5400] sm:$0xff]
                %542 = vst [vmem:[%s204 + $0x540] sm:$0xff] %v541
                %v543 = vld [vmem:[%s203 + $0x5408] sm:$0xff]
                %544 = vst [vmem:[%s204 + $0x548] sm:$0xff] %v543
                %v545 = vld [vmem:[%s203 + $0x5500] sm:$0xff]
                %546 = vst [vmem:[%s204 + $0x550] sm:$0xff] %v545
                %v547 = vld [vmem:[%s203 + $0x5508] sm:$0xff]
                %548 = vst [vmem:[%s204 + $0x558] sm:$0xff] %v547
                %v549 = vld [vmem:[%s203 + $0x5600] sm:$0xff]
                %550 = vst [vmem:[%s204 + $0x560] sm:$0xff] %v549
                %v551 = vld [vmem:[%s203 + $0x5608] sm:$0xff]
                %552 = vst [vmem:[%s204 + $0x568] sm:$0xff] %v551
                %v553 = vld [vmem:[%s203 + $0x5700] sm:$0xff]
                %554 = vst [vmem:[%s204 + $0x570] sm:$0xff] %v553
                %v555 = vld [vmem:[%s203 + $0x5708] sm:$0xff]
                %556 = vst [vmem:[%s204 + $0x578] sm:$0xff] %v555
                %v557 = vld [vmem:[%s203 + $0x5800] sm:$0xff]
                %558 = vst [vmem:[%s204 + $0x580] sm:$0xff] %v557
                %v559 = vld [vmem:[%s203 + $0x5808] sm:$0xff]
                %560 = vst [vmem:[%s204 + $0x588] sm:$0xff] %v559
                %v561 = vld [vmem:[%s203 + $0x5900] sm:$0xff]
                %562 = vst [vmem:[%s204 + $0x590] sm:$0xff] %v561
                %v563 = vld [vmem:[%s203 + $0x5908] sm:$0xff]
                %564 = vst [vmem:[%s204 + $0x598] sm:$0xff] %v563
                %v565 = vld [vmem:[%s203 + $0x5a00] sm:$0xff]
                %566 = vst [vmem:[%s204 + $0x5a0] sm:$0xff] %v565
                %v567 = vld [vmem:[%s203 + $0x5a08] sm:$0xff]
                %568 = vst [vmem:[%s204 + $0x5a8] sm:$0xff] %v567
                %v569 = vld [vmem:[%s203 + $0x5b00] sm:$0xff]
                %570 = vst [vmem:[%s204 + $0x5b0] sm:$0xff] %v569
                %v571 = vld [vmem:[%s203 + $0x5b08] sm:$0xff]
                %572 = vst [vmem:[%s204 + $0x5b8] sm:$0xff] %v571
                %v573 = vld [vmem:[%s203 + $0x5c00] sm:$0xff]
                %574 = vst [vmem:[%s204 + $0x5c0] sm:$0xff] %v573
                %v575 = vld [vmem:[%s203 + $0x5c08] sm:$0xff]
                %576 = vst [vmem:[%s204 + $0x5c8] sm:$0xff] %v575
                %v577 = vld [vmem:[%s203 + $0x5d00] sm:$0xff]
                %578 = vst [vmem:[%s204 + $0x5d0] sm:$0xff] %v577
                %v579 = vld [vmem:[%s203 + $0x5d08] sm:$0xff]
                %580 = vst [vmem:[%s204 + $0x5d8] sm:$0xff] %v579
                %v581 = vld [vmem:[%s203 + $0x5e00] sm:$0xff]
                %582 = vst [vmem:[%s204 + $0x5e0] sm:$0xff] %v581
                %v583 = vld [vmem:[%s203 + $0x5e08] sm:$0xff]
                %584 = vst [vmem:[%s204 + $0x5e8] sm:$0xff] %v583
                %v585 = vld [vmem:[%s203 + $0x5f00] sm:$0xff]
                %586 = vst [vmem:[%s204 + $0x5f0] sm:$0xff] %v585
                %v587 = vld [vmem:[%s203 + $0x5f08] sm:$0xff]
                %588 = vst [vmem:[%s204 + $0x5f8] sm:$0xff] %v587
                %v589 = vld [vmem:[%s203 + $0x6000] sm:$0xff]
                %590 = vst [vmem:[%s204 + $0x600] sm:$0xff] %v589
                %v591 = vld [vmem:[%s203 + $0x6008] sm:$0xff]
                %592 = vst [vmem:[%s204 + $0x608] sm:$0xff] %v591
                %v593 = vld [vmem:[%s203 + $0x6100] sm:$0xff]
                %594 = vst [vmem:[%s204 + $0x610] sm:$0xff] %v593
                %v595 = vld [vmem:[%s203 + $0x6108] sm:$0xff]
                %596 = vst [vmem:[%s204 + $0x618] sm:$0xff] %v595
                %v597 = vld [vmem:[%s203 + $0x6200] sm:$0xff]
                %598 = vst [vmem:[%s204 + $0x620] sm:$0xff] %v597
                %v599 = vld [vmem:[%s203 + $0x6208] sm:$0xff]
                %600 = vst [vmem:[%s204 + $0x628] sm:$0xff] %v599
                %v601 = vld [vmem:[%s203 + $0x6300] sm:$0xff]
                %602 = vst [vmem:[%s204 + $0x630] sm:$0xff] %v601
                %v603 = vld [vmem:[%s203 + $0x6308] sm:$0xff]
                %604 = vst [vmem:[%s204 + $0x638] sm:$0xff] %v603
                %v605 = vld [vmem:[%s203 + $0x6400] sm:$0xff]
                %606 = vst [vmem:[%s204 + $0x640] sm:$0xff] %v605
                %v607 = vld [vmem:[%s203 + $0x6408] sm:$0xff]
                %608 = vst [vmem:[%s204 + $0x648] sm:$0xff] %v607
                %v609 = vld [vmem:[%s203 + $0x6500] sm:$0xff]
                %610 = vst [vmem:[%s204 + $0x650] sm:$0xff] %v609
                %v611 = vld [vmem:[%s203 + $0x6508] sm:$0xff]
                %612 = vst [vmem:[%s204 + $0x658] sm:$0xff] %v611
                %v613 = vld [vmem:[%s203 + $0x6600] sm:$0xff]
                %614 = vst [vmem:[%s204 + $0x660] sm:$0xff] %v613
                %v615 = vld [vmem:[%s203 + $0x6608] sm:$0xff]
                %616 = vst [vmem:[%s204 + $0x668] sm:$0xff] %v615
                %v617 = vld [vmem:[%s203 + $0x6700] sm:$0xff]
                %618 = vst [vmem:[%s204 + $0x670] sm:$0xff] %v617
                %v619 = vld [vmem:[%s203 + $0x6708] sm:$0xff]
                %620 = vst [vmem:[%s204 + $0x678] sm:$0xff] %v619
                %v621 = vld [vmem:[%s203 + $0x6800] sm:$0xff]
                %622 = vst [vmem:[%s204 + $0x680] sm:$0xff] %v621
                %v623 = vld [vmem:[%s203 + $0x6808] sm:$0xff]
                %624 = vst [vmem:[%s204 + $0x688] sm:$0xff] %v623
                %v625 = vld [vmem:[%s203 + $0x6900] sm:$0xff]
                %626 = vst [vmem:[%s204 + $0x690] sm:$0xff] %v625
                %v627 = vld [vmem:[%s203 + $0x6908] sm:$0xff]
                %628 = vst [vmem:[%s204 + $0x698] sm:$0xff] %v627
                %v629 = vld [vmem:[%s203 + $0x6a00] sm:$0xff]
                %630 = vst [vmem:[%s204 + $0x6a0] sm:$0xff] %v629
                %v631 = vld [vmem:[%s203 + $0x6a08] sm:$0xff]
                %632 = vst [vmem:[%s204 + $0x6a8] sm:$0xff] %v631
                %v633 = vld [vmem:[%s203 + $0x6b00] sm:$0xff]
                %634 = vst [vmem:[%s204 + $0x6b0] sm:$0xff] %v633
                %v635 = vld [vmem:[%s203 + $0x6b08] sm:$0xff]
                %636 = vst [vmem:[%s204 + $0x6b8] sm:$0xff] %v635
                %v637 = vld [vmem:[%s203 + $0x6c00] sm:$0xff]
                %638 = vst [vmem:[%s204 + $0x6c0] sm:$0xff] %v637
                %v639 = vld [vmem:[%s203 + $0x6c08] sm:$0xff]
                %640 = vst [vmem:[%s204 + $0x6c8] sm:$0xff] %v639
                %v641 = vld [vmem:[%s203 + $0x6d00] sm:$0xff]
                %642 = vst [vmem:[%s204 + $0x6d0] sm:$0xff] %v641
                %v643 = vld [vmem:[%s203 + $0x6d08] sm:$0xff]
                %644 = vst [vmem:[%s204 + $0x6d8] sm:$0xff] %v643
                %v645 = vld [vmem:[%s203 + $0x6e00] sm:$0xff]
                %646 = vst [vmem:[%s204 + $0x6e0] sm:$0xff] %v645
                %v647 = vld [vmem:[%s203 + $0x6e08] sm:$0xff]
                %648 = vst [vmem:[%s204 + $0x6e8] sm:$0xff] %v647
                %v649 = vld [vmem:[%s203 + $0x6f00] sm:$0xff]
                %650 = vst [vmem:[%s204 + $0x6f0] sm:$0xff] %v649
                %v651 = vld [vmem:[%s203 + $0x6f08] sm:$0xff]
                %652 = vst [vmem:[%s204 + $0x6f8] sm:$0xff] %v651
                %v653 = vld [vmem:[%s203 + $0x7000] sm:$0xff]
                %654 = vst [vmem:[%s204 + $0x700] sm:$0xff] %v653
                %v655 = vld [vmem:[%s203 + $0x7008] sm:$0xff]
                %656 = vst [vmem:[%s204 + $0x708] sm:$0xff] %v655
                %v657 = vld [vmem:[%s203 + $0x7100] sm:$0xff]
                %658 = vst [vmem:[%s204 + $0x710] sm:$0xff] %v657
                %v659 = vld [vmem:[%s203 + $0x7108] sm:$0xff]
                %660 = vst [vmem:[%s204 + $0x718] sm:$0xff] %v659
                %v661 = vld [vmem:[%s203 + $0x7200] sm:$0xff]
                %662 = vst [vmem:[%s204 + $0x720] sm:$0xff] %v661
                %v663 = vld [vmem:[%s203 + $0x7208] sm:$0xff]
                %664 = vst [vmem:[%s204 + $0x728] sm:$0xff] %v663
                %v665 = vld [vmem:[%s203 + $0x7300] sm:$0xff]
                %666 = vst [vmem:[%s204 + $0x730] sm:$0xff] %v665
                %v667 = vld [vmem:[%s203 + $0x7308] sm:$0xff]
                %668 = vst [vmem:[%s204 + $0x738] sm:$0xff] %v667
                %v669 = vld [vmem:[%s203 + $0x7400] sm:$0xff]
                %670 = vst [vmem:[%s204 + $0x740] sm:$0xff] %v669
                %v671 = vld [vmem:[%s203 + $0x7408] sm:$0xff]
                %672 = vst [vmem:[%s204 + $0x748] sm:$0xff] %v671
                %v673 = vld [vmem:[%s203 + $0x7500] sm:$0xff]
                %674 = vst [vmem:[%s204 + $0x750] sm:$0xff] %v673
                %v675 = vld [vmem:[%s203 + $0x7508] sm:$0xff]
                %676 = vst [vmem:[%s204 + $0x758] sm:$0xff] %v675
                %v677 = vld [vmem:[%s203 + $0x7600] sm:$0xff]
                %678 = vst [vmem:[%s204 + $0x760] sm:$0xff] %v677
                %v679 = vld [vmem:[%s203 + $0x7608] sm:$0xff]
                %680 = vst [vmem:[%s204 + $0x768] sm:$0xff] %v679
                %v681 = vld [vmem:[%s203 + $0x7700] sm:$0xff]
                %682 = vst [vmem:[%s204 + $0x770] sm:$0xff] %v681
                %v683 = vld [vmem:[%s203 + $0x7708] sm:$0xff]
                %684 = vst [vmem:[%s204 + $0x778] sm:$0xff] %v683
                %v685 = vld [vmem:[%s203 + $0x7800] sm:$0xff]
                %686 = vst [vmem:[%s204 + $0x780] sm:$0xff] %v685
                %v687 = vld [vmem:[%s203 + $0x7808] sm:$0xff]
                %688 = vst [vmem:[%s204 + $0x788] sm:$0xff] %v687
                %v689 = vld [vmem:[%s203 + $0x7900] sm:$0xff]
                %690 = vst [vmem:[%s204 + $0x790] sm:$0xff] %v689
                %v691 = vld [vmem:[%s203 + $0x7908] sm:$0xff]
                %692 = vst [vmem:[%s204 + $0x798] sm:$0xff] %v691
                %v693 = vld [vmem:[%s203 + $0x7a00] sm:$0xff]
                %694 = vst [vmem:[%s204 + $0x7a0] sm:$0xff] %v693
                %v695 = vld [vmem:[%s203 + $0x7a08] sm:$0xff]
                %696 = vst [vmem:[%s204 + $0x7a8] sm:$0xff] %v695
                %v697 = vld [vmem:[%s203 + $0x7b00] sm:$0xff]
                %698 = vst [vmem:[%s204 + $0x7b0] sm:$0xff] %v697
                %v699 = vld [vmem:[%s203 + $0x7b08] sm:$0xff]
                %700 = vst [vmem:[%s204 + $0x7b8] sm:$0xff] %v699
                %v701 = vld [vmem:[%s203 + $0x7c00] sm:$0xff]
                %702 = vst [vmem:[%s204 + $0x7c0] sm:$0xff] %v701
                %v703 = vld [vmem:[%s203 + $0x7c08] sm:$0xff]
                %704 = vst [vmem:[%s204 + $0x7c8] sm:$0xff] %v703
                %v705 = vld [vmem:[%s203 + $0x7d00] sm:$0xff]
                %706 = vst [vmem:[%s204 + $0x7d0] sm:$0xff] %v705
                %v707 = vld [vmem:[%s203 + $0x7d08] sm:$0xff]
                %708 = vst [vmem:[%s204 + $0x7d8] sm:$0xff] %v707
                %v709 = vld [vmem:[%s203 + $0x7e00] sm:$0xff]
                %710 = vst [vmem:[%s204 + $0x7e0] sm:$0xff] %v709
                %v711 = vld [vmem:[%s203 + $0x7e08] sm:$0xff]
                %712 = vst [vmem:[%s204 + $0x7e8] sm:$0xff] %v711
                %v713 = vld [vmem:[%s203 + $0x7f00] sm:$0xff]
                %714 = vst [vmem:[%s204 + $0x7f0] sm:$0xff] %v713
                %v715 = vld [vmem:[%s203 + $0x7f08] sm:$0xff]
                %716 = vst [vmem:[%s204 + $0x7f8] sm:$0xff] %v715
              $region41: #{convlstm3d_cell.1} parent=35 // loop_footer
                %s202 = sadd.s32 1, %s198
              $region42: #{convlstm3d_cell.1} parent=35 // loop_footer_branch
                %197 = sbr.rel target = $region38
              $region43: #{convlstm3d_cell.1} parent=35 // loop_exit
                _
            $region36: #{convlstm3d_cell.1} parent=31 // pred_fallthru
              _
            // Predicated region
            $region44: #{convlstm3d_cell.1} parent=31 // pred_check
              _
            $region45: #{convlstm3d_cell.1} parent=31 // pred_check_branch
              %718 = sbr.rel target = $region47
            $region46: #{convlstm3d_cell.1} parent=31 // pred_region
              _
            $region47: #{convlstm3d_cell.1} parent=31 // pred_fallthru
              _
          $region32: #{convlstm3d_cell.1} parent=27 // pred_fallthru
            _
          %719 = vnop
        $region28: #{convlstm3d_cell.1} parent=23 // pred_fallthru
          _
        // Predicated region
        $region48: #{convlstm3d_cell.1} parent=23 // pred_check
          %p720 = pneg %p100
        $region49: #{convlstm3d_cell.1} parent=23 // pred_check_branch
          %722 = sbr.rel (%p720) target = $region51
        $region50: #{convlstm3d_cell.1} parent=23 // pred_region
          %s723 = sand.u32 %s90, 1
          %s724 = sand.u32 %s90, 1
          %s725 = smul.addr %s724, 128
          %s726 = scalar_lea.vmem [#allocation3], %s725
          %s727 = smul.u32 4, %s12
          %s728 = smul.addr %s727, 8
          %s729 = scalar_lea.vmem %s3, %s728
          // Predicated region
          $region52: #{convlstm3d_cell.1} parent=50 // pred_check
            _
          $region53: #{convlstm3d_cell.1} parent=50 // pred_check_branch
            %731 = sbr.rel (0) target = $region55
          $region54: #{convlstm3d_cell.1} parent=50 // pred_region
            // Predicated region
            $region56: #{convlstm3d_cell.1} parent=54 // pred_check
              _
            $region57: #{convlstm3d_cell.1} parent=54 // pred_check_branch
              %733 = sbr.rel (0) target = $region59
            $region58: #{convlstm3d_cell.1} parent=54 // pred_region
              loop: start=0, step=1, limit=1
              $region60: #{convlstm3d_cell.1} parent=58 // loop_pre_header
                _
              $region61: #{convlstm3d_cell.1} parent=58 // loop_header
                %s735 = sphi 0, %s739
                %p736 = scmp.ge.s32.totalorder %s735, 1
                %s740 = sphi %s729, %s729
                %s741 = sphi %s726, %s726
              $region62: #{convlstm3d_cell.1} parent=58 // loop_header_branch
                %738 = sbr.rel (%p736) target = $region66
              $region63: #{convlstm3d_cell.1} parent=58 // loop_body
                %v742 = vld [vmem:[%s740] sm:$0xff]
                %743 = vst [vmem:[%s741] sm:$0xff] %v742
                %v744 = vld [vmem:[%s740 + $0x8] sm:$0xff]
                %745 = vst [vmem:[%s741 + $0x8] sm:$0xff] %v744
                %v746 = vld [vmem:[%s740 + $0x10] sm:$0xff]
                %747 = vst [vmem:[%s741 + $0x10] sm:$0xff] %v746
                %v748 = vld [vmem:[%s740 + $0x18] sm:$0xff]
                %749 = vst [vmem:[%s741 + $0x18] sm:$0xff] %v748
                %v750 = vld [vmem:[%s740 + $0x200] sm:$0xff]
                %751 = vst [vmem:[%s741 + $0x20] sm:$0xff] %v750
                %v752 = vld [vmem:[%s740 + $0x208] sm:$0xff]
                %753 = vst [vmem:[%s741 + $0x28] sm:$0xff] %v752
                %v754 = vld [vmem:[%s740 + $0x210] sm:$0xff]
                %755 = vst [vmem:[%s741 + $0x30] sm:$0xff] %v754
                %v756 = vld [vmem:[%s740 + $0x218] sm:$0xff]
                %757 = vst [vmem:[%s741 + $0x38] sm:$0xff] %v756
                %v758 = vld [vmem:[%s740 + $0x400] sm:$0xff]
                %759 = vst [vmem:[%s741 + $0x40] sm:$0xff] %v758
                %v760 = vld [vmem:[%s740 + $0x408] sm:$0xff]
                %761 = vst [vmem:[%s741 + $0x48] sm:$0xff] %v760
                %v762 = vld [vmem:[%s740 + $0x410] sm:$0xff]
                %763 = vst [vmem:[%s741 + $0x50] sm:$0xff] %v762
                %v764 = vld [vmem:[%s740 + $0x418] sm:$0xff]
                %765 = vst [vmem:[%s741 + $0x58] sm:$0xff] %v764
                %v766 = vld [vmem:[%s740 + $0x600] sm:$0xff]
                %767 = vst [vmem:[%s741 + $0x60] sm:$0xff] %v766
                %v768 = vld [vmem:[%s740 + $0x608] sm:$0xff]
                %769 = vst [vmem:[%s741 + $0x68] sm:$0xff] %v768
                %v770 = vld [vmem:[%s740 + $0x610] sm:$0xff]
                %771 = vst [vmem:[%s741 + $0x70] sm:$0xff] %v770
                %v772 = vld [vmem:[%s740 + $0x618] sm:$0xff]
                %773 = vst [vmem:[%s741 + $0x78] sm:$0xff] %v772
              $region64: #{convlstm3d_cell.1} parent=58 // loop_footer
                %s739 = sadd.s32 1, %s735
              $region65: #{convlstm3d_cell.1} parent=58 // loop_footer_branch
                %734 = sbr.rel target = $region61
              $region66: #{convlstm3d_cell.1} parent=58 // loop_exit
                _
            $region59: #{convlstm3d_cell.1} parent=54 // pred_fallthru
              _
            // Predicated region
            $region67: #{convlstm3d_cell.1} parent=54 // pred_check
              _
            $region68: #{convlstm3d_cell.1} parent=54 // pred_check_branch
              %775 = sbr.rel target = $region70
            $region69: #{convlstm3d_cell.1} parent=54 // pred_region
              _
            $region70: #{convlstm3d_cell.1} parent=54 // pred_fallthru
              _
          $region55: #{convlstm3d_cell.1} parent=50 // pred_fallthru
            _
          %776 = vnop
        $region51: #{convlstm3d_cell.1} parent=23 // pred_fallthru
          _
      $region24: #{convlstm3d_cell.1} parent=5 // pred_fallthru
        _
      %p777 = scmp.le.s32.totalorder 1, %s12
      %p778 = scmp.lt.s32.totalorder %s12, 17
      %p779 = pnand %p777, %p778
      %p780 = pneg %p779
      // Predicated region
      $region71: #{convlstm3d_cell.1} parent=5 // pred_check
        _
      $region72: #{convlstm3d_cell.1} parent=5 // pred_check_branch
        %782 = sbr.rel (%p779) target = $region74
      $region73: #{convlstm3d_cell.1} parent=5 // pred_region
        %s783 = ssub.s32 %s12, 1
        %s784 = sand.u32 %s46, 1
        %s785 = sand.u32 %s46, 1
        %s786 = smul.addr %s785, 2048
        %s787 = scalar_lea.vmem [#allocation2], %s786
        // Predicated region
        $region75: #{convlstm3d_cell.1} parent=73 // pred_check
          %p788 = pneg %p59
        $region76: #{convlstm3d_cell.1} parent=73 // pred_check_branch
          %790 = sbr.rel (%p788) target = $region78
        $region77: #{convlstm3d_cell.1} parent=73 // pred_region
          _
        $region78: #{convlstm3d_cell.1} parent=73 // pred_fallthru
          _
        %s791 = sand.u32 %s93, 1
        %s792 = sand.u32 %s93, 1
        %s793 = smul.addr %s792, 128
        %s794 = scalar_lea.vmem [#allocation3], %s793
        // Predicated region
        $region79: #{convlstm3d_cell.1} parent=73 // pred_check
          %p795 = pneg %p106
        $region80: #{convlstm3d_cell.1} parent=73 // pred_check_branch
          %797 = sbr.rel (%p795) target = $region82
        $region81: #{convlstm3d_cell.1} parent=73 // pred_region
          _
        $region82: #{convlstm3d_cell.1} parent=73 // pred_fallthru
          _
        %p798 = pneg %p33
        %p799 = pneg %p30
        %s800 = sand.u32 %s46, 1
        %s801 = sand.u32 %s46, 1
        %s802 = smul.addr %s801, 2048
        %s803 = scalar_lea.vmem [#allocation2], %s802
        %p804 = pneg %p59
        %p805 = pneg %p56
        %p806 = pneg %p80
        %p807 = pneg %p77
        %s808 = sand.u32 %s93, 1
        %s809 = sand.u32 %s93, 1
        %s810 = smul.addr %s809, 128
        %s811 = scalar_lea.vmem [#allocation3], %s810
        %p812 = pneg %p106
        %p813 = pneg %p103
        %p814 = pneg %p132
        %p815 = pneg %p129
        %s816 = sand.u32 %s119, 1
        %s817 = sand.u32 %s119, 1
        %s818 = smul.addr %s817, 128
        %s819 = scalar_lea.vmem [#allocation4], %s818
        %p820 = pneg %p158
        %p821 = pneg %p155
        %s822 = sand.u32 %s145, 1
        %s823 = sand.u32 %s145, 1
        %s824 = smul.addr %s823, 128
        %s825 = scalar_lea.vmem [#allocation5], %s824
        %s826 = smul.u32 4, %s17
        %s827 = smul.u32 4, %s17
        %s828 = smul.u32 4, %s17
        %s829 = smul.u32 4, %s17
        %v830 = vld [vmem:[%s0] sm:$0xff]
        %v831 = vld [vmem:[%s0 + $0x8] sm:$0xff]
        %v832 = vld [vmem:[%s0 + $0x10] sm:$0xff]
        %v833 = vld [vmem:[%s0 + $0x18] sm:$0xff]
        %v834 = vld [vmem:[%s0 + $0x20] sm:$0xff]
        %v835 = vld [vmem:[%s0 + $0x28] sm:$0xff]
        %v836 = vld [vmem:[%s0 + $0x30] sm:$0xff]
        %v837 = vld [vmem:[%s0 + $0x38] sm:$0xff]
        %v838 = vld [vmem:[%s0 + $0x40] sm:$0xff]
        %v839 = vld [vmem:[%s0 + $0x48] sm:$0xff]
        %v840 = vld [vmem:[%s0 + $0x50] sm:$0xff]
        %v841 = vld [vmem:[%s0 + $0x58] sm:$0xff]
        %v842 = vld [vmem:[%s0 + $0x60] sm:$0xff]
        %v843 = vld [vmem:[%s0 + $0x68] sm:$0xff]
        %v844 = vld [vmem:[%s0 + $0x70] sm:$0xff]
        %v845 = vld [vmem:[%s0 + $0x78] sm:$0xff]
        %v846 = vld [vmem:[%s0 + $0x80] sm:$0xff]
        %v847 = vld [vmem:[%s0 + $0x88] sm:$0xff]
        %v848 = vld [vmem:[%s0 + $0x90] sm:$0xff]
        %v849 = vld [vmem:[%s0 + $0x98] sm:$0xff]
        %v850 = vld [vmem:[%s0 + $0xa0] sm:$0xff]
        %v851 = vld [vmem:[%s0 + $0xa8] sm:$0xff]
        %v852 = vld [vmem:[%s0 + $0xb0] sm:$0xff]
        %v853 = vld [vmem:[%s0 + $0xb8] sm:$0xff]
        %v854 = vld [vmem:[%s0 + $0xc0] sm:$0xff]
        %v855 = vld [vmem:[%s0 + $0xc8] sm:$0xff]
        %v856 = vld [vmem:[%s0 + $0xd0] sm:$0xff]
        %v857 = vld [vmem:[%s0 + $0xd8] sm:$0xff]
        %v858 = vld [vmem:[%s0 + $0xe0] sm:$0xff]
        %v859 = vld [vmem:[%s0 + $0xe8] sm:$0xff]
        %v860 = vld [vmem:[%s0 + $0xf0] sm:$0xff]
        %v861 = vld [vmem:[%s0 + $0xf8] sm:$0xff]
        %v862 = vld [vmem:[%s0 + $0x100] sm:$0xff]
        %v863 = vld [vmem:[%s0 + $0x108] sm:$0xff]
        %v864 = vld [vmem:[%s0 + $0x110] sm:$0xff]
        %v865 = vld [vmem:[%s0 + $0x118] sm:$0xff]
        %v866 = vld [vmem:[%s0 + $0x120] sm:$0xff]
        %v867 = vld [vmem:[%s0 + $0x128] sm:$0xff]
        %v868 = vld [vmem:[%s0 + $0x130] sm:$0xff]
        %v869 = vld [vmem:[%s0 + $0x138] sm:$0xff]
        %v870 = vld [vmem:[%s0 + $0x140] sm:$0xff]
        %v871 = vld [vmem:[%s0 + $0x148] sm:$0xff]
        %v872 = vld [vmem:[%s0 + $0x150] sm:$0xff]
        %v873 = vld [vmem:[%s0 + $0x158] sm:$0xff]
        %v874 = vld [vmem:[%s0 + $0x160] sm:$0xff]
        %v875 = vld [vmem:[%s0 + $0x168] sm:$0xff]
        %v876 = vld [vmem:[%s0 + $0x170] sm:$0xff]
        %v877 = vld [vmem:[%s0 + $0x178] sm:$0xff]
        %v878 = vld [vmem:[%s0 + $0x180] sm:$0xff]
        %v879 = vld [vmem:[%s0 + $0x188] sm:$0xff]
        %v880 = vld [vmem:[%s0 + $0x190] sm:$0xff]
        %v881 = vld [vmem:[%s0 + $0x198] sm:$0xff]
        %v882 = vld [vmem:[%s0 + $0x1a0] sm:$0xff]
        %v883 = vld [vmem:[%s0 + $0x1a8] sm:$0xff]
        %v884 = vld [vmem:[%s0 + $0x1b0] sm:$0xff]
        %v885 = vld [vmem:[%s0 + $0x1b8] sm:$0xff]
        %v886 = vld [vmem:[%s0 + $0x1c0] sm:$0xff]
        %v887 = vld [vmem:[%s0 + $0x1c8] sm:$0xff]
        %v888 = vld [vmem:[%s0 + $0x1d0] sm:$0xff]
        %v889 = vld [vmem:[%s0 + $0x1d8] sm:$0xff]
        %v890 = vld [vmem:[%s0 + $0x1e0] sm:$0xff]
        %v891 = vld [vmem:[%s0 + $0x1e8] sm:$0xff]
        %v892 = vld [vmem:[%s0 + $0x1f0] sm:$0xff]
        %v893 = vld [vmem:[%s0 + $0x1f8] sm:$0xff]
        %v894 = vld [vmem:[%s787] sm:$0xff]
        %v895 = vld [vmem:[%s787 + $0x8] sm:$0xff]
        %v896 = vld [vmem:[%s787 + $0x10] sm:$0xff]
        %v897 = vld [vmem:[%s787 + $0x18] sm:$0xff]
        %v898 = vld [vmem:[%s787 + $0x20] sm:$0xff]
        %v899 = vld [vmem:[%s787 + $0x28] sm:$0xff]
        %v900 = vld [vmem:[%s787 + $0x30] sm:$0xff]
        %v901 = vld [vmem:[%s787 + $0x38] sm:$0xff]
        %v902 = vld [vmem:[%s787 + $0x40] sm:$0xff]
        %v903 = vld [vmem:[%s787 + $0x48] sm:$0xff]
        %v904 = vld [vmem:[%s787 + $0x50] sm:$0xff]
        %v905 = vld [vmem:[%s787 + $0x58] sm:$0xff]
        %v906 = vld [vmem:[%s787 + $0x60] sm:$0xff]
        %v907 = vld [vmem:[%s787 + $0x68] sm:$0xff]
        %v908 = vld [vmem:[%s787 + $0x70] sm:$0xff]
        %v909 = vld [vmem:[%s787 + $0x78] sm:$0xff]
        %v910 = vld [vmem:[%s787 + $0x80] sm:$0xff]
        %v911 = vld [vmem:[%s787 + $0x88] sm:$0xff]
        %v912 = vld [vmem:[%s787 + $0x90] sm:$0xff]
        %v913 = vld [vmem:[%s787 + $0x98] sm:$0xff]
        %v914 = vld [vmem:[%s787 + $0xa0] sm:$0xff]
        %v915 = vld [vmem:[%s787 + $0xa8] sm:$0xff]
        %v916 = vld [vmem:[%s787 + $0xb0] sm:$0xff]
        %v917 = vld [vmem:[%s787 + $0xb8] sm:$0xff]
        %v918 = vld [vmem:[%s787 + $0xc0] sm:$0xff]
        %v919 = vld [vmem:[%s787 + $0xc8] sm:$0xff]
        %v920 = vld [vmem:[%s787 + $0xd0] sm:$0xff]
        %v921 = vld [vmem:[%s787 + $0xd8] sm:$0xff]
        %v922 = vld [vmem:[%s787 + $0xe0] sm:$0xff]
        %v923 = vld [vmem:[%s787 + $0xe8] sm:$0xff]
        %v924 = vld [vmem:[%s787 + $0xf0] sm:$0xff]
        %v925 = vld [vmem:[%s787 + $0xf8] sm:$0xff]
        %v926 = vld [vmem:[%s787 + $0x100] sm:$0xff]
        %v927 = vld [vmem:[%s787 + $0x108] sm:$0xff]
        %v928 = vld [vmem:[%s787 + $0x110] sm:$0xff]
        %v929 = vld [vmem:[%s787 + $0x118] sm:$0xff]
        %v930 = vld [vmem:[%s787 + $0x120] sm:$0xff]
        %v931 = vld [vmem:[%s787 + $0x128] sm:$0xff]
        %v932 = vld [vmem:[%s787 + $0x130] sm:$0xff]
        %v933 = vld [vmem:[%s787 + $0x138] sm:$0xff]
        %v934 = vld [vmem:[%s787 + $0x140] sm:$0xff]
        %v935 = vld [vmem:[%s787 + $0x148] sm:$0xff]
        %v936 = vld [vmem:[%s787 + $0x150] sm:$0xff]
        %v937 = vld [vmem:[%s787 + $0x158] sm:$0xff]
        %v938 = vld [vmem:[%s787 + $0x160] sm:$0xff]
        %v939 = vld [vmem:[%s787 + $0x168] sm:$0xff]
        %v940 = vld [vmem:[%s787 + $0x170] sm:$0xff]
        %v941 = vld [vmem:[%s787 + $0x178] sm:$0xff]
        %v942 = vld [vmem:[%s787 + $0x180] sm:$0xff]
        %v943 = vld [vmem:[%s787 + $0x188] sm:$0xff]
        %v944 = vld [vmem:[%s787 + $0x190] sm:$0xff]
        %v945 = vld [vmem:[%s787 + $0x198] sm:$0xff]
        %v946 = vld [vmem:[%s787 + $0x1a0] sm:$0xff]
        %v947 = vld [vmem:[%s787 + $0x1a8] sm:$0xff]
        %v948 = vld [vmem:[%s787 + $0x1b0] sm:$0xff]
        %v949 = vld [vmem:[%s787 + $0x1b8] sm:$0xff]
        %v950 = vld [vmem:[%s787 + $0x1c0] sm:$0xff]
        %v951 = vld [vmem:[%s787 + $0x1c8] sm:$0xff]
        %v952 = vld [vmem:[%s787 + $0x1d0] sm:$0xff]
        %v953 = vld [vmem:[%s787 + $0x1d8] sm:$0xff]
        %v954 = vld [vmem:[%s787 + $0x1e0] sm:$0xff]
        %v955 = vld [vmem:[%s787 + $0x1e8] sm:$0xff]
        %v956 = vld [vmem:[%s787 + $0x1f0] sm:$0xff]
        %v957 = vld [vmem:[%s787 + $0x1f8] sm:$0xff]
        %v958 = vld [vmem:[%s787 + $0x200] sm:$0xff]
        %v959 = vld [vmem:[%s787 + $0x208] sm:$0xff]
        %v960 = vld [vmem:[%s787 + $0x210] sm:$0xff]
        %v961 = vld [vmem:[%s787 + $0x218] sm:$0xff]
        %v962 = vld [vmem:[%s787 + $0x220] sm:$0xff]
        %v963 = vld [vmem:[%s787 + $0x228] sm:$0xff]
        %v964 = vld [vmem:[%s787 + $0x230] sm:$0xff]
        %v965 = vld [vmem:[%s787 + $0x238] sm:$0xff]
        %v966 = vld [vmem:[%s787 + $0x240] sm:$0xff]
        %v967 = vld [vmem:[%s787 + $0x248] sm:$0xff]
        %v968 = vld [vmem:[%s787 + $0x250] sm:$0xff]
        %v969 = vld [vmem:[%s787 + $0x258] sm:$0xff]
        %v970 = vld [vmem:[%s787 + $0x260] sm:$0xff]
        %v971 = vld [vmem:[%s787 + $0x268] sm:$0xff]
        %v972 = vld [vmem:[%s787 + $0x270] sm:$0xff]
        %v973 = vld [vmem:[%s787 + $0x278] sm:$0xff]
        %v974 = vld [vmem:[%s787 + $0x280] sm:$0xff]
        %v975 = vld [vmem:[%s787 + $0x288] sm:$0xff]
        %v976 = vld [vmem:[%s787 + $0x290] sm:$0xff]
        %v977 = vld [vmem:[%s787 + $0x298] sm:$0xff]
        %v978 = vld [vmem:[%s787 + $0x2a0] sm:$0xff]
        %v979 = vld [vmem:[%s787 + $0x2a8] sm:$0xff]
        %v980 = vld [vmem:[%s787 + $0x2b0] sm:$0xff]
        %v981 = vld [vmem:[%s787 + $0x2b8] sm:$0xff]
        %v982 = vld [vmem:[%s787 + $0x2c0] sm:$0xff]
        %v983 = vld [vmem:[%s787 + $0x2c8] sm:$0xff]
        %v984 = vld [vmem:[%s787 + $0x2d0] sm:$0xff]
        %v985 = vld [vmem:[%s787 + $0x2d8] sm:$0xff]
        %v986 = vld [vmem:[%s787 + $0x2e0] sm:$0xff]
        %v987 = vld [vmem:[%s787 + $0x2e8] sm:$0xff]
        %v988 = vld [vmem:[%s787 + $0x2f0] sm:$0xff]
        %v989 = vld [vmem:[%s787 + $0x2f8] sm:$0xff]
        %v990 = vld [vmem:[%s787 + $0x300] sm:$0xff]
        %v991 = vld [vmem:[%s787 + $0x308] sm:$0xff]
        %v992 = vld [vmem:[%s787 + $0x310] sm:$0xff]
        %v993 = vld [vmem:[%s787 + $0x318] sm:$0xff]
        %v994 = vld [vmem:[%s787 + $0x320] sm:$0xff]
        %v995 = vld [vmem:[%s787 + $0x328] sm:$0xff]
        %v996 = vld [vmem:[%s787 + $0x330] sm:$0xff]
        %v997 = vld [vmem:[%s787 + $0x338] sm:$0xff]
        %v998 = vld [vmem:[%s787 + $0x340] sm:$0xff]
        %v999 = vld [vmem:[%s787 + $0x348] sm:$0xff]
        %v1000 = vld [vmem:[%s787 + $0x350] sm:$0xff]
        %v1001 = vld [vmem:[%s787 + $0x358] sm:$0xff]
        %v1002 = vld [vmem:[%s787 + $0x360] sm:$0xff]
        %v1003 = vld [vmem:[%s787 + $0x368] sm:$0xff]
        %v1004 = vld [vmem:[%s787 + $0x370] sm:$0xff]
        %v1005 = vld [vmem:[%s787 + $0x378] sm:$0xff]
        %v1006 = vld [vmem:[%s787 + $0x380] sm:$0xff]
        %v1007 = vld [vmem:[%s787 + $0x388] sm:$0xff]
        %v1008 = vld [vmem:[%s787 + $0x390] sm:$0xff]
        %v1009 = vld [vmem:[%s787 + $0x398] sm:$0xff]
        %v1010 = vld [vmem:[%s787 + $0x3a0] sm:$0xff]
        %v1011 = vld [vmem:[%s787 + $0x3a8] sm:$0xff]
        %v1012 = vld [vmem:[%s787 + $0x3b0] sm:$0xff]
        %v1013 = vld [vmem:[%s787 + $0x3b8] sm:$0xff]
        %v1014 = vld [vmem:[%s787 + $0x3c0] sm:$0xff]
        %v1015 = vld [vmem:[%s787 + $0x3c8] sm:$0xff]
        %v1016 = vld [vmem:[%s787 + $0x3d0] sm:$0xff]
        %v1017 = vld [vmem:[%s787 + $0x3d8] sm:$0xff]
        %v1018 = vld [vmem:[%s787 + $0x3e0] sm:$0xff]
        %v1019 = vld [vmem:[%s787 + $0x3e8] sm:$0xff]
        %v1020 = vld [vmem:[%s787 + $0x3f0] sm:$0xff]
        %v1021 = vld [vmem:[%s787 + $0x3f8] sm:$0xff]
        %v1022 = vld [vmem:[%s787 + $0x400] sm:$0xff]
        %v1023 = vld [vmem:[%s787 + $0x408] sm:$0xff]
        %v1024 = vld [vmem:[%s787 + $0x410] sm:$0xff]
        %v1025 = vld [vmem:[%s787 + $0x418] sm:$0xff]
        %v1026 = vld [vmem:[%s787 + $0x420] sm:$0xff]
        %v1027 = vld [vmem:[%s787 + $0x428] sm:$0xff]
        %v1028 = vld [vmem:[%s787 + $0x430] sm:$0xff]
        %v1029 = vld [vmem:[%s787 + $0x438] sm:$0xff]
        %v1030 = vld [vmem:[%s787 + $0x440] sm:$0xff]
        %v1031 = vld [vmem:[%s787 + $0x448] sm:$0xff]
        %v1032 = vld [vmem:[%s787 + $0x450] sm:$0xff]
        %v1033 = vld [vmem:[%s787 + $0x458] sm:$0xff]
        %v1034 = vld [vmem:[%s787 + $0x460] sm:$0xff]
        %v1035 = vld [vmem:[%s787 + $0x468] sm:$0xff]
        %v1036 = vld [vmem:[%s787 + $0x470] sm:$0xff]
        %v1037 = vld [vmem:[%s787 + $0x478] sm:$0xff]
        %v1038 = vld [vmem:[%s787 + $0x480] sm:$0xff]
        %v1039 = vld [vmem:[%s787 + $0x488] sm:$0xff]
        %v1040 = vld [vmem:[%s787 + $0x490] sm:$0xff]
        %v1041 = vld [vmem:[%s787 + $0x498] sm:$0xff]
        %v1042 = vld [vmem:[%s787 + $0x4a0] sm:$0xff]
        %v1043 = vld [vmem:[%s787 + $0x4a8] sm:$0xff]
        %v1044 = vld [vmem:[%s787 + $0x4b0] sm:$0xff]
        %v1045 = vld [vmem:[%s787 + $0x4b8] sm:$0xff]
        %v1046 = vld [vmem:[%s787 + $0x4c0] sm:$0xff]
        %v1047 = vld [vmem:[%s787 + $0x4c8] sm:$0xff]
        %v1048 = vld [vmem:[%s787 + $0x4d0] sm:$0xff]
        %v1049 = vld [vmem:[%s787 + $0x4d8] sm:$0xff]
        %v1050 = vld [vmem:[%s787 + $0x4e0] sm:$0xff]
        %v1051 = vld [vmem:[%s787 + $0x4e8] sm:$0xff]
        %v1052 = vld [vmem:[%s787 + $0x4f0] sm:$0xff]
        %v1053 = vld [vmem:[%s787 + $0x4f8] sm:$0xff]
        %v1054 = vld [vmem:[%s787 + $0x500] sm:$0xff]
        %v1055 = vld [vmem:[%s787 + $0x508] sm:$0xff]
        %v1056 = vld [vmem:[%s787 + $0x510] sm:$0xff]
        %v1057 = vld [vmem:[%s787 + $0x518] sm:$0xff]
        %v1058 = vld [vmem:[%s787 + $0x520] sm:$0xff]
        %v1059 = vld [vmem:[%s787 + $0x528] sm:$0xff]
        %v1060 = vld [vmem:[%s787 + $0x530] sm:$0xff]
        %v1061 = vld [vmem:[%s787 + $0x538] sm:$0xff]
        %v1062 = vld [vmem:[%s787 + $0x540] sm:$0xff]
        %v1063 = vld [vmem:[%s787 + $0x548] sm:$0xff]
        %v1064 = vld [vmem:[%s787 + $0x550] sm:$0xff]
        %v1065 = vld [vmem:[%s787 + $0x558] sm:$0xff]
        %v1066 = vld [vmem:[%s787 + $0x560] sm:$0xff]
        %v1067 = vld [vmem:[%s787 + $0x568] sm:$0xff]
        %v1068 = vld [vmem:[%s787 + $0x570] sm:$0xff]
        %v1069 = vld [vmem:[%s787 + $0x578] sm:$0xff]
        %v1070 = vld [vmem:[%s787 + $0x580] sm:$0xff]
        %v1071 = vld [vmem:[%s787 + $0x588] sm:$0xff]
        %v1072 = vld [vmem:[%s787 + $0x590] sm:$0xff]
        %v1073 = vld [vmem:[%s787 + $0x598] sm:$0xff]
        %v1074 = vld [vmem:[%s787 + $0x5a0] sm:$0xff]
        %v1075 = vld [vmem:[%s787 + $0x5a8] sm:$0xff]
        %v1076 = vld [vmem:[%s787 + $0x5b0] sm:$0xff]
        %v1077 = vld [vmem:[%s787 + $0x5b8] sm:$0xff]
        %v1078 = vld [vmem:[%s787 + $0x5c0] sm:$0xff]
        %v1079 = vld [vmem:[%s787 + $0x5c8] sm:$0xff]
        %v1080 = vld [vmem:[%s787 + $0x5d0] sm:$0xff]
        %v1081 = vld [vmem:[%s787 + $0x5d8] sm:$0xff]
        %v1082 = vld [vmem:[%s787 + $0x5e0] sm:$0xff]
        %v1083 = vld [vmem:[%s787 + $0x5e8] sm:$0xff]
        %v1084 = vld [vmem:[%s787 + $0x5f0] sm:$0xff]
        %v1085 = vld [vmem:[%s787 + $0x5f8] sm:$0xff]
        %v1086 = vld [vmem:[%s787 + $0x600] sm:$0xff]
        %v1087 = vld [vmem:[%s787 + $0x608] sm:$0xff]
        %v1088 = vld [vmem:[%s787 + $0x610] sm:$0xff]
        %v1089 = vld [vmem:[%s787 + $0x618] sm:$0xff]
        %v1090 = vld [vmem:[%s787 + $0x620] sm:$0xff]
        %v1091 = vld [vmem:[%s787 + $0x628] sm:$0xff]
        %v1092 = vld [vmem:[%s787 + $0x630] sm:$0xff]
        %v1093 = vld [vmem:[%s787 + $0x638] sm:$0xff]
        %v1094 = vld [vmem:[%s787 + $0x640] sm:$0xff]
        %v1095 = vld [vmem:[%s787 + $0x648] sm:$0xff]
        %v1096 = vld [vmem:[%s787 + $0x650] sm:$0xff]
        %v1097 = vld [vmem:[%s787 + $0x658] sm:$0xff]
        %v1098 = vld [vmem:[%s787 + $0x660] sm:$0xff]
        %v1099 = vld [vmem:[%s787 + $0x668] sm:$0xff]
        %v1100 = vld [vmem:[%s787 + $0x670] sm:$0xff]
        %v1101 = vld [vmem:[%s787 + $0x678] sm:$0xff]
        %v1102 = vld [vmem:[%s787 + $0x680] sm:$0xff]
        %v1103 = vld [vmem:[%s787 + $0x688] sm:$0xff]
        %v1104 = vld [vmem:[%s787 + $0x690] sm:$0xff]
        %v1105 = vld [vmem:[%s787 + $0x698] sm:$0xff]
        %v1106 = vld [vmem:[%s787 + $0x6a0] sm:$0xff]
        %v1107 = vld [vmem:[%s787 + $0x6a8] sm:$0xff]
        %v1108 = vld [vmem:[%s787 + $0x6b0] sm:$0xff]
        %v1109 = vld [vmem:[%s787 + $0x6b8] sm:$0xff]
        %v1110 = vld [vmem:[%s787 + $0x6c0] sm:$0xff]
        %v1111 = vld [vmem:[%s787 + $0x6c8] sm:$0xff]
        %v1112 = vld [vmem:[%s787 + $0x6d0] sm:$0xff]
        %v1113 = vld [vmem:[%s787 + $0x6d8] sm:$0xff]
        %v1114 = vld [vmem:[%s787 + $0x6e0] sm:$0xff]
        %v1115 = vld [vmem:[%s787 + $0x6e8] sm:$0xff]
        %v1116 = vld [vmem:[%s787 + $0x6f0] sm:$0xff]
        %v1117 = vld [vmem:[%s787 + $0x6f8] sm:$0xff]
        %v1118 = vld [vmem:[%s787 + $0x700] sm:$0xff]
        %v1119 = vld [vmem:[%s787 + $0x708] sm:$0xff]
        %v1120 = vld [vmem:[%s787 + $0x710] sm:$0xff]
        %v1121 = vld [vmem:[%s787 + $0x718] sm:$0xff]
        %v1122 = vld [vmem:[%s787 + $0x720] sm:$0xff]
        %v1123 = vld [vmem:[%s787 + $0x728] sm:$0xff]
        %v1124 = vld [vmem:[%s787 + $0x730] sm:$0xff]
        %v1125 = vld [vmem:[%s787 + $0x738] sm:$0xff]
        %v1126 = vld [vmem:[%s787 + $0x740] sm:$0xff]
        %v1127 = vld [vmem:[%s787 + $0x748] sm:$0xff]
        %v1128 = vld [vmem:[%s787 + $0x750] sm:$0xff]
        %v1129 = vld [vmem:[%s787 + $0x758] sm:$0xff]
        %v1130 = vld [vmem:[%s787 + $0x760] sm:$0xff]
        %v1131 = vld [vmem:[%s787 + $0x768] sm:$0xff]
        %v1132 = vld [vmem:[%s787 + $0x770] sm:$0xff]
        %v1133 = vld [vmem:[%s787 + $0x778] sm:$0xff]
        %v1134 = vld [vmem:[%s787 + $0x780] sm:$0xff]
        %v1135 = vld [vmem:[%s787 + $0x788] sm:$0xff]
        %v1136 = vld [vmem:[%s787 + $0x790] sm:$0xff]
        %v1137 = vld [vmem:[%s787 + $0x798] sm:$0xff]
        %v1138 = vld [vmem:[%s787 + $0x7a0] sm:$0xff]
        %v1139 = vld [vmem:[%s787 + $0x7a8] sm:$0xff]
        %v1140 = vld [vmem:[%s787 + $0x7b0] sm:$0xff]
        %v1141 = vld [vmem:[%s787 + $0x7b8] sm:$0xff]
        %v1142 = vld [vmem:[%s787 + $0x7c0] sm:$0xff]
        %v1143 = vld [vmem:[%s787 + $0x7c8] sm:$0xff]
        %v1144 = vld [vmem:[%s787 + $0x7d0] sm:$0xff]
        %v1145 = vld [vmem:[%s787 + $0x7d8] sm:$0xff]
        %v1146 = vld [vmem:[%s787 + $0x7e0] sm:$0xff]
        %v1147 = vld [vmem:[%s787 + $0x7e8] sm:$0xff]
        %v1148 = vld [vmem:[%s787 + $0x7f0] sm:$0xff]
        %v1149 = vld [vmem:[%s787 + $0x7f8] sm:$0xff]
        %v1150 = vld [vmem:[%s2] sm:$0xff]
        %v1151 = vld [vmem:[%s2 + $0x8] sm:$0xff]
        %v1152 = vld [vmem:[%s2 + $0x10] sm:$0xff]
        %v1153 = vld [vmem:[%s2 + $0x18] sm:$0xff]
        %v1154 = vld [vmem:[%s2 + $0x20] sm:$0xff]
        %v1155 = vld [vmem:[%s2 + $0x28] sm:$0xff]
        %v1156 = vld [vmem:[%s2 + $0x30] sm:$0xff]
        %v1157 = vld [vmem:[%s2 + $0x38] sm:$0xff]
        %v1158 = vld [vmem:[%s2 + $0x40] sm:$0xff]
        %v1159 = vld [vmem:[%s2 + $0x48] sm:$0xff]
        %v1160 = vld [vmem:[%s2 + $0x50] sm:$0xff]
        %v1161 = vld [vmem:[%s2 + $0x58] sm:$0xff]
        %v1162 = vld [vmem:[%s2 + $0x60] sm:$0xff]
        %v1163 = vld [vmem:[%s2 + $0x68] sm:$0xff]
        %v1164 = vld [vmem:[%s2 + $0x70] sm:$0xff]
        %v1165 = vld [vmem:[%s2 + $0x78] sm:$0xff]
        %1167 = vset.pattern.permute.xlu0 0
        %1168 = vperm.xlu0 %1167, %v1150
        %v1169 = vpop.permute.xlu0 %1168
        %1172 = vset.pattern.permute.xlu0 0
        %1173 = vperm.xlu0 %1172, %v1151
        %v1174 = vpop.permute.xlu0 %1173
        %1177 = vset.pattern.permute.xlu0 0
        %1178 = vperm.xlu0 %1177, %v1152
        %v1179 = vpop.permute.xlu0 %1178
        %1182 = vset.pattern.permute.xlu0 0
        %1183 = vperm.xlu0 %1182, %v1153
        %v1184 = vpop.permute.xlu0 %1183
        %1187 = vset.pattern.permute.xlu0 0
        %1188 = vperm.xlu0 %1187, %v1154
        %v1189 = vpop.permute.xlu0 %1188
        %1192 = vset.pattern.permute.xlu0 0
        %1193 = vperm.xlu0 %1192, %v1155
        %v1194 = vpop.permute.xlu0 %1193
        %1197 = vset.pattern.permute.xlu0 0
        %1198 = vperm.xlu0 %1197, %v1156
        %v1199 = vpop.permute.xlu0 %1198
        %1202 = vset.pattern.permute.xlu0 0
        %1203 = vperm.xlu0 %1202, %v1157
        %v1204 = vpop.permute.xlu0 %1203
        %1207 = vset.pattern.permute.xlu0 0
        %1208 = vperm.xlu0 %1207, %v1158
        %v1209 = vpop.permute.xlu0 %1208
        %1212 = vset.pattern.permute.xlu0 0
        %1213 = vperm.xlu0 %1212, %v1159
        %v1214 = vpop.permute.xlu0 %1213
        %1217 = vset.pattern.permute.xlu0 0
        %1218 = vperm.xlu0 %1217, %v1160
        %v1219 = vpop.permute.xlu0 %1218
        %1222 = vset.pattern.permute.xlu0 0
        %1223 = vperm.xlu0 %1222, %v1161
        %v1224 = vpop.permute.xlu0 %1223
        %1227 = vset.pattern.permute.xlu0 0
        %1228 = vperm.xlu0 %1227, %v1162
        %v1229 = vpop.permute.xlu0 %1228
        %1232 = vset.pattern.permute.xlu0 0
        %1233 = vperm.xlu0 %1232, %v1163
        %v1234 = vpop.permute.xlu0 %1233
        %1237 = vset.pattern.permute.xlu0 0
        %1238 = vperm.xlu0 %1237, %v1164
        %v1239 = vpop.permute.xlu0 %1238
        %1242 = vset.pattern.permute.xlu0 0
        %1243 = vperm.xlu0 %1242, %v1165
        %v1244 = vpop.permute.xlu0 %1243
        %v1310 = vunpack.c.l.b16 %v830
        %v1311 = vunpack.c.h.b16 %v830
        %v1312 = vunpack.c.l.b16 %v831
        %v1313 = vunpack.c.h.b16 %v831
        %v1314 = vunpack.c.l.b16 %v832
        %v1315 = vunpack.c.h.b16 %v832
        %v1316 = vunpack.c.l.b16 %v833
        %v1317 = vunpack.c.h.b16 %v833
        %v1318 = vunpack.c.l.b16 %v834
        %v1319 = vunpack.c.h.b16 %v834
        %v1320 = vunpack.c.l.b16 %v835
        %v1321 = vunpack.c.h.b16 %v835
        %v1322 = vunpack.c.l.b16 %v836
        %v1323 = vunpack.c.h.b16 %v836
        %v1324 = vunpack.c.l.b16 %v837
        %v1325 = vunpack.c.h.b16 %v837
        %v1326 = vunpack.c.l.b16 %v838
        %v1327 = vunpack.c.h.b16 %v838
        %v1328 = vunpack.c.l.b16 %v839
        %v1329 = vunpack.c.h.b16 %v839
        %v1330 = vunpack.c.l.b16 %v840
        %v1331 = vunpack.c.h.b16 %v840
        %v1332 = vunpack.c.l.b16 %v841
        %v1333 = vunpack.c.h.b16 %v841
        %v1334 = vunpack.c.l.b16 %v842
        %v1335 = vunpack.c.h.b16 %v842
        %v1336 = vunpack.c.l.b16 %v843
        %v1337 = vunpack.c.h.b16 %v843
        %v1338 = vunpack.c.l.b16 %v844
        %v1339 = vunpack.c.h.b16 %v844
        %v1340 = vunpack.c.l.b16 %v845
        %v1341 = vunpack.c.h.b16 %v845
        %v1342 = vunpack.c.l.b16 %v846
        %v1343 = vunpack.c.h.b16 %v846
        %v1344 = vunpack.c.l.b16 %v847
        %v1345 = vunpack.c.h.b16 %v847
        %v1346 = vunpack.c.l.b16 %v848
        %v1347 = vunpack.c.h.b16 %v848
        %v1348 = vunpack.c.l.b16 %v849
        %v1349 = vunpack.c.h.b16 %v849
        %v1350 = vunpack.c.l.b16 %v850
        %v1351 = vunpack.c.h.b16 %v850
        %v1352 = vunpack.c.l.b16 %v851
        %v1353 = vunpack.c.h.b16 %v851
        %v1354 = vunpack.c.l.b16 %v852
        %v1355 = vunpack.c.h.b16 %v852
        %v1356 = vunpack.c.l.b16 %v853
        %v1357 = vunpack.c.h.b16 %v853
        %v1358 = vunpack.c.l.b16 %v854
        %v1359 = vunpack.c.h.b16 %v854
        %v1360 = vunpack.c.l.b16 %v855
        %v1361 = vunpack.c.h.b16 %v855
        %v1362 = vunpack.c.l.b16 %v856
        %v1363 = vunpack.c.h.b16 %v856
        %v1364 = vunpack.c.l.b16 %v857
        %v1365 = vunpack.c.h.b16 %v857
        %v1366 = vunpack.c.l.b16 %v858
        %v1367 = vunpack.c.h.b16 %v858
        %v1368 = vunpack.c.l.b16 %v859
        %v1369 = vunpack.c.h.b16 %v859
        %v1370 = vunpack.c.l.b16 %v860
        %v1371 = vunpack.c.h.b16 %v860
        %v1372 = vunpack.c.l.b16 %v861
        %v1373 = vunpack.c.h.b16 %v861
        %v1374 = vunpack.c.l.b16 %v862
        %v1375 = vunpack.c.h.b16 %v862
        %v1376 = vunpack.c.l.b16 %v863
        %v1377 = vunpack.c.h.b16 %v863
        %v1378 = vunpack.c.l.b16 %v864
        %v1379 = vunpack.c.h.b16 %v864
        %v1380 = vunpack.c.l.b16 %v865
        %v1381 = vunpack.c.h.b16 %v865
        %v1382 = vunpack.c.l.b16 %v866
        %v1383 = vunpack.c.h.b16 %v866
        %v1384 = vunpack.c.l.b16 %v867
        %v1385 = vunpack.c.h.b16 %v867
        %v1386 = vunpack.c.l.b16 %v868
        %v1387 = vunpack.c.h.b16 %v868
        %v1388 = vunpack.c.l.b16 %v869
        %v1389 = vunpack.c.h.b16 %v869
        %v1390 = vunpack.c.l.b16 %v870
        %v1391 = vunpack.c.h.b16 %v870
        %v1392 = vunpack.c.l.b16 %v871
        %v1393 = vunpack.c.h.b16 %v871
        %v1394 = vunpack.c.l.b16 %v872
        %v1395 = vunpack.c.h.b16 %v872
        %v1396 = vunpack.c.l.b16 %v873
        %v1397 = vunpack.c.h.b16 %v873
        %v1398 = vunpack.c.l.b16 %v874
        %v1399 = vunpack.c.h.b16 %v874
        %v1400 = vunpack.c.l.b16 %v875
        %v1401 = vunpack.c.h.b16 %v875
        %v1402 = vunpack.c.l.b16 %v876
        %v1403 = vunpack.c.h.b16 %v876
        %v1404 = vunpack.c.l.b16 %v877
        %v1405 = vunpack.c.h.b16 %v877
        %v1406 = vunpack.c.l.b16 %v878
        %v1407 = vunpack.c.h.b16 %v878
        %v1408 = vunpack.c.l.b16 %v879
        %v1409 = vunpack.c.h.b16 %v879
        %v1410 = vunpack.c.l.b16 %v880
        %v1411 = vunpack.c.h.b16 %v880
        %v1412 = vunpack.c.l.b16 %v881
        %v1413 = vunpack.c.h.b16 %v881
        %v1414 = vunpack.c.l.b16 %v882
        %v1415 = vunpack.c.h.b16 %v882
        %v1416 = vunpack.c.l.b16 %v883
        %v1417 = vunpack.c.h.b16 %v883
        %v1418 = vunpack.c.l.b16 %v884
        %v1419 = vunpack.c.h.b16 %v884
        %v1420 = vunpack.c.l.b16 %v885
        %v1421 = vunpack.c.h.b16 %v885
        %v1422 = vunpack.c.l.b16 %v886
        %v1423 = vunpack.c.h.b16 %v886
        %v1424 = vunpack.c.l.b16 %v887
        %v1425 = vunpack.c.h.b16 %v887
        %v1426 = vunpack.c.l.b16 %v888
        %v1427 = vunpack.c.h.b16 %v888
        %v1428 = vunpack.c.l.b16 %v889
        %v1429 = vunpack.c.h.b16 %v889
        %v1430 = vunpack.c.l.b16 %v890
        %v1431 = vunpack.c.h.b16 %v890
        %v1432 = vunpack.c.l.b16 %v891
        %v1433 = vunpack.c.h.b16 %v891
        %v1434 = vunpack.c.l.b16 %v892
        %v1435 = vunpack.c.h.b16 %v892
        %v1436 = vunpack.c.l.b16 %v893
        %v1437 = vunpack.c.h.b16 %v893
        %v1438 = vpack.c.b16 %v1318, %v1310
        %v1439 = vpack.c.b16 %v1319, %v1311
        %v1440 = vpack.c.b16 %v1320, %v1312
        %v1441 = vpack.c.b16 %v1321, %v1313
        %v1442 = vpack.c.b16 %v1322, %v1314
        %v1443 = vpack.c.b16 %v1323, %v1315
        %v1444 = vpack.c.b16 %v1324, %v1316
        %v1445 = vpack.c.b16 %v1325, %v1317
        %v1446 = vpack.c.b16 %v1334, %v1326
        %v1447 = vpack.c.b16 %v1335, %v1327
        %v1448 = vpack.c.b16 %v1336, %v1328
        %v1449 = vpack.c.b16 %v1337, %v1329
        %v1450 = vpack.c.b16 %v1338, %v1330
        %v1451 = vpack.c.b16 %v1339, %v1331
        %v1452 = vpack.c.b16 %v1340, %v1332
        %v1453 = vpack.c.b16 %v1341, %v1333
        %v1454 = vpack.c.b16 %v1350, %v1342
        %v1455 = vpack.c.b16 %v1351, %v1343
        %v1456 = vpack.c.b16 %v1352, %v1344
        %v1457 = vpack.c.b16 %v1353, %v1345
        %v1458 = vpack.c.b16 %v1354, %v1346
        %v1459 = vpack.c.b16 %v1355, %v1347
        %v1460 = vpack.c.b16 %v1356, %v1348
        %v1461 = vpack.c.b16 %v1357, %v1349
        %v1462 = vpack.c.b16 %v1366, %v1358
        %v1463 = vpack.c.b16 %v1367, %v1359
        %v1464 = vpack.c.b16 %v1368, %v1360
        %v1465 = vpack.c.b16 %v1369, %v1361
        %v1466 = vpack.c.b16 %v1370, %v1362
        %v1467 = vpack.c.b16 %v1371, %v1363
        %v1468 = vpack.c.b16 %v1372, %v1364
        %v1469 = vpack.c.b16 %v1373, %v1365
        %v1470 = vpack.c.b16 %v1382, %v1374
        %v1471 = vpack.c.b16 %v1383, %v1375
        %v1472 = vpack.c.b16 %v1384, %v1376
        %v1473 = vpack.c.b16 %v1385, %v1377
        %v1474 = vpack.c.b16 %v1386, %v1378
        %v1475 = vpack.c.b16 %v1387, %v1379
        %v1476 = vpack.c.b16 %v1388, %v1380
        %v1477 = vpack.c.b16 %v1389, %v1381
        %v1478 = vpack.c.b16 %v1398, %v1390
        %v1479 = vpack.c.b16 %v1399, %v1391
        %v1480 = vpack.c.b16 %v1400, %v1392
        %v1481 = vpack.c.b16 %v1401, %v1393
        %v1482 = vpack.c.b16 %v1402, %v1394
        %v1483 = vpack.c.b16 %v1403, %v1395
        %v1484 = vpack.c.b16 %v1404, %v1396
        %v1485 = vpack.c.b16 %v1405, %v1397
        %v1486 = vpack.c.b16 %v1414, %v1406
        %v1487 = vpack.c.b16 %v1415, %v1407
        %v1488 = vpack.c.b16 %v1416, %v1408
        %v1489 = vpack.c.b16 %v1417, %v1409
        %v1490 = vpack.c.b16 %v1418, %v1410
        %v1491 = vpack.c.b16 %v1419, %v1411
        %v1492 = vpack.c.b16 %v1420, %v1412
        %v1493 = vpack.c.b16 %v1421, %v1413
        %v1494 = vpack.c.b16 %v1430, %v1422
        %v1495 = vpack.c.b16 %v1431, %v1423
        %v1496 = vpack.c.b16 %v1432, %v1424
        %v1497 = vpack.c.b16 %v1433, %v1425
        %v1498 = vpack.c.b16 %v1434, %v1426
        %v1499 = vpack.c.b16 %v1435, %v1427
        %v1500 = vpack.c.b16 %v1436, %v1428
        %v1501 = vpack.c.b16 %v1437, %v1429
        %v1822 = vunpack.c.l.b16 %v894
        %v1823 = vunpack.c.h.b16 %v894
        %v1824 = vunpack.c.l.b16 %v895
        %v1825 = vunpack.c.h.b16 %v895
        %v1826 = vunpack.c.l.b16 %v896
        %v1827 = vunpack.c.h.b16 %v896
        %v1828 = vunpack.c.l.b16 %v897
        %v1829 = vunpack.c.h.b16 %v897
        %v1830 = vunpack.c.l.b16 %v898
        %v1831 = vunpack.c.h.b16 %v898
        %v1832 = vunpack.c.l.b16 %v899
        %v1833 = vunpack.c.h.b16 %v899
        %v1834 = vunpack.c.l.b16 %v900
        %v1835 = vunpack.c.h.b16 %v900
        %v1836 = vunpack.c.l.b16 %v901
        %v1837 = vunpack.c.h.b16 %v901
        %v1838 = vunpack.c.l.b16 %v902
        %v1839 = vunpack.c.h.b16 %v902
        %v1840 = vunpack.c.l.b16 %v903
        %v1841 = vunpack.c.h.b16 %v903
        %v1842 = vunpack.c.l.b16 %v904
        %v1843 = vunpack.c.h.b16 %v904
        %v1844 = vunpack.c.l.b16 %v905
        %v1845 = vunpack.c.h.b16 %v905
        %v1846 = vunpack.c.l.b16 %v906
        %v1847 = vunpack.c.h.b16 %v906
        %v1848 = vunpack.c.l.b16 %v907
        %v1849 = vunpack.c.h.b16 %v907
        %v1850 = vunpack.c.l.b16 %v908
        %v1851 = vunpack.c.h.b16 %v908
        %v1852 = vunpack.c.l.b16 %v909
        %v1853 = vunpack.c.h.b16 %v909
        %v1854 = vunpack.c.l.b16 %v910
        %v1855 = vunpack.c.h.b16 %v910
        %v1856 = vunpack.c.l.b16 %v911
        %v1857 = vunpack.c.h.b16 %v911
        %v1858 = vunpack.c.l.b16 %v912
        %v1859 = vunpack.c.h.b16 %v912
        %v1860 = vunpack.c.l.b16 %v913
        %v1861 = vunpack.c.h.b16 %v913
        %v1862 = vunpack.c.l.b16 %v914
        %v1863 = vunpack.c.h.b16 %v914
        %v1864 = vunpack.c.l.b16 %v915
        %v1865 = vunpack.c.h.b16 %v915
        %v1866 = vunpack.c.l.b16 %v916
        %v1867 = vunpack.c.h.b16 %v916
        %v1868 = vunpack.c.l.b16 %v917
        %v1869 = vunpack.c.h.b16 %v917
        %v1870 = vunpack.c.l.b16 %v918
        %v1871 = vunpack.c.h.b16 %v918
        %v1872 = vunpack.c.l.b16 %v919
        %v1873 = vunpack.c.h.b16 %v919
        %v1874 = vunpack.c.l.b16 %v920
        %v1875 = vunpack.c.h.b16 %v920
        %v1876 = vunpack.c.l.b16 %v921
        %v1877 = vunpack.c.h.b16 %v921
        %v1878 = vunpack.c.l.b16 %v922
        %v1879 = vunpack.c.h.b16 %v922
        %v1880 = vunpack.c.l.b16 %v923
        %v1881 = vunpack.c.h.b16 %v923
        %v1882 = vunpack.c.l.b16 %v924
        %v1883 = vunpack.c.h.b16 %v924
        %v1884 = vunpack.c.l.b16 %v925
        %v1885 = vunpack.c.h.b16 %v925
        %v1886 = vunpack.c.l.b16 %v926
        %v1887 = vunpack.c.h.b16 %v926
        %v1888 = vunpack.c.l.b16 %v927
        %v1889 = vunpack.c.h.b16 %v927
        %v1890 = vunpack.c.l.b16 %v928
        %v1891 = vunpack.c.h.b16 %v928
        %v1892 = vunpack.c.l.b16 %v929
        %v1893 = vunpack.c.h.b16 %v929
        %v1894 = vunpack.c.l.b16 %v930
        %v1895 = vunpack.c.h.b16 %v930
        %v1896 = vunpack.c.l.b16 %v931
        %v1897 = vunpack.c.h.b16 %v931
        %v1898 = vunpack.c.l.b16 %v932
        %v1899 = vunpack.c.h.b16 %v932
        %v1900 = vunpack.c.l.b16 %v933
        %v1901 = vunpack.c.h.b16 %v933
        %v1902 = vunpack.c.l.b16 %v934
        %v1903 = vunpack.c.h.b16 %v934
        %v1904 = vunpack.c.l.b16 %v935
        %v1905 = vunpack.c.h.b16 %v935
        %v1906 = vunpack.c.l.b16 %v936
        %v1907 = vunpack.c.h.b16 %v936
        %v1908 = vunpack.c.l.b16 %v937
        %v1909 = vunpack.c.h.b16 %v937
        %v1910 = vunpack.c.l.b16 %v938
        %v1911 = vunpack.c.h.b16 %v938
        %v1912 = vunpack.c.l.b16 %v939
        %v1913 = vunpack.c.h.b16 %v939
        %v1914 = vunpack.c.l.b16 %v940
        %v1915 = vunpack.c.h.b16 %v940
        %v1916 = vunpack.c.l.b16 %v941
        %v1917 = vunpack.c.h.b16 %v941
        %v1918 = vunpack.c.l.b16 %v942
        %v1919 = vunpack.c.h.b16 %v942
        %v1920 = vunpack.c.l.b16 %v943
        %v1921 = vunpack.c.h.b16 %v943
        %v1922 = vunpack.c.l.b16 %v944
        %v1923 = vunpack.c.h.b16 %v944
        %v1924 = vunpack.c.l.b16 %v945
        %v1925 = vunpack.c.h.b16 %v945
        %v1926 = vunpack.c.l.b16 %v946
        %v1927 = vunpack.c.h.b16 %v946
        %v1928 = vunpack.c.l.b16 %v947
        %v1929 = vunpack.c.h.b16 %v947
        %v1930 = vunpack.c.l.b16 %v948
        %v1931 = vunpack.c.h.b16 %v948
        %v1932 = vunpack.c.l.b16 %v949
        %v1933 = vunpack.c.h.b16 %v949
        %v1934 = vunpack.c.l.b16 %v950
        %v1935 = vunpack.c.h.b16 %v950
        %v1936 = vunpack.c.l.b16 %v951
        %v1937 = vunpack.c.h.b16 %v951
        %v1938 = vunpack.c.l.b16 %v952
        %v1939 = vunpack.c.h.b16 %v952
        %v1940 = vunpack.c.l.b16 %v953
        %v1941 = vunpack.c.h.b16 %v953
        %v1942 = vunpack.c.l.b16 %v954
        %v1943 = vunpack.c.h.b16 %v954
        %v1944 = vunpack.c.l.b16 %v955
        %v1945 = vunpack.c.h.b16 %v955
        %v1946 = vunpack.c.l.b16 %v956
        %v1947 = vunpack.c.h.b16 %v956
        %v1948 = vunpack.c.l.b16 %v957
        %v1949 = vunpack.c.h.b16 %v957
        %v1950 = vunpack.c.l.b16 %v958
        %v1951 = vunpack.c.h.b16 %v958
        %v1952 = vunpack.c.l.b16 %v959
        %v1953 = vunpack.c.h.b16 %v959
        %v1954 = vunpack.c.l.b16 %v960
        %v1955 = vunpack.c.h.b16 %v960
        %v1956 = vunpack.c.l.b16 %v961
        %v1957 = vunpack.c.h.b16 %v961
        %v1958 = vunpack.c.l.b16 %v962
        %v1959 = vunpack.c.h.b16 %v962
        %v1960 = vunpack.c.l.b16 %v963
        %v1961 = vunpack.c.h.b16 %v963
        %v1962 = vunpack.c.l.b16 %v964
        %v1963 = vunpack.c.h.b16 %v964
        %v1964 = vunpack.c.l.b16 %v965
        %v1965 = vunpack.c.h.b16 %v965
        %v1966 = vunpack.c.l.b16 %v966
        %v1967 = vunpack.c.h.b16 %v966
        %v1968 = vunpack.c.l.b16 %v967
        %v1969 = vunpack.c.h.b16 %v967
        %v1970 = vunpack.c.l.b16 %v968
        %v1971 = vunpack.c.h.b16 %v968
        %v1972 = vunpack.c.l.b16 %v969
        %v1973 = vunpack.c.h.b16 %v969
        %v1974 = vunpack.c.l.b16 %v970
        %v1975 = vunpack.c.h.b16 %v970
        %v1976 = vunpack.c.l.b16 %v971
        %v1977 = vunpack.c.h.b16 %v971
        %v1978 = vunpack.c.l.b16 %v972
        %v1979 = vunpack.c.h.b16 %v972
        %v1980 = vunpack.c.l.b16 %v973
        %v1981 = vunpack.c.h.b16 %v973
        %v1982 = vunpack.c.l.b16 %v974
        %v1983 = vunpack.c.h.b16 %v974
        %v1984 = vunpack.c.l.b16 %v975
        %v1985 = vunpack.c.h.b16 %v975
        %v1986 = vunpack.c.l.b16 %v976
        %v1987 = vunpack.c.h.b16 %v976
        %v1988 = vunpack.c.l.b16 %v977
        %v1989 = vunpack.c.h.b16 %v977
        %v1990 = vunpack.c.l.b16 %v978
        %v1991 = vunpack.c.h.b16 %v978
        %v1992 = vunpack.c.l.b16 %v979
        %v1993 = vunpack.c.h.b16 %v979
        %v1994 = vunpack.c.l.b16 %v980
        %v1995 = vunpack.c.h.b16 %v980
        %v1996 = vunpack.c.l.b16 %v981
        %v1997 = vunpack.c.h.b16 %v981
        %v1998 = vunpack.c.l.b16 %v982
        %v1999 = vunpack.c.h.b16 %v982
        %v2000 = vunpack.c.l.b16 %v983
        %v2001 = vunpack.c.h.b16 %v983
        %v2002 = vunpack.c.l.b16 %v984
        %v2003 = vunpack.c.h.b16 %v984
        %v2004 = vunpack.c.l.b16 %v985
        %v2005 = vunpack.c.h.b16 %v985
        %v2006 = vunpack.c.l.b16 %v986
        %v2007 = vunpack.c.h.b16 %v986
        %v2008 = vunpack.c.l.b16 %v987
        %v2009 = vunpack.c.h.b16 %v987
        %v2010 = vunpack.c.l.b16 %v988
        %v2011 = vunpack.c.h.b16 %v988
        %v2012 = vunpack.c.l.b16 %v989
        %v2013 = vunpack.c.h.b16 %v989
        %v2014 = vunpack.c.l.b16 %v990
        %v2015 = vunpack.c.h.b16 %v990
        %v2016 = vunpack.c.l.b16 %v991
        %v2017 = vunpack.c.h.b16 %v991
        %v2018 = vunpack.c.l.b16 %v992
        %v2019 = vunpack.c.h.b16 %v992
        %v2020 = vunpack.c.l.b16 %v993
        %v2021 = vunpack.c.h.b16 %v993
        %v2022 = vunpack.c.l.b16 %v994
        %v2023 = vunpack.c.h.b16 %v994
        %v2024 = vunpack.c.l.b16 %v995
        %v2025 = vunpack.c.h.b16 %v995
        %v2026 = vunpack.c.l.b16 %v996
        %v2027 = vunpack.c.h.b16 %v996
        %v2028 = vunpack.c.l.b16 %v997
        %v2029 = vunpack.c.h.b16 %v997
        %v2030 = vunpack.c.l.b16 %v998
        %v2031 = vunpack.c.h.b16 %v998
        %v2032 = vunpack.c.l.b16 %v999
        %v2033 = vunpack.c.h.b16 %v999
        %v2034 = vunpack.c.l.b16 %v1000
        %v2035 = vunpack.c.h.b16 %v1000
        %v2036 = vunpack.c.l.b16 %v1001
        %v2037 = vunpack.c.h.b16 %v1001
        %v2038 = vunpack.c.l.b16 %v1002
        %v2039 = vunpack.c.h.b16 %v1002
        %v2040 = vunpack.c.l.b16 %v1003
        %v2041 = vunpack.c.h.b16 %v1003
        %v2042 = vunpack.c.l.b16 %v1004
        %v2043 = vunpack.c.h.b16 %v1004
        %v2044 = vunpack.c.l.b16 %v1005
        %v2045 = vunpack.c.h.b16 %v1005
        %v2046 = vunpack.c.l.b16 %v1006
        %v2047 = vunpack.c.h.b16 %v1006
        %v2048 = vunpack.c.l.b16 %v1007
        %v2049 = vunpack.c.h.b16 %v1007
        %v2050 = vunpack.c.l.b16 %v1008
        %v2051 = vunpack.c.h.b16 %v1008
        %v2052 = vunpack.c.l.b16 %v1009
        %v2053 = vunpack.c.h.b16 %v1009
        %v2054 = vunpack.c.l.b16 %v1010
        %v2055 = vunpack.c.h.b16 %v1010
        %v2056 = vunpack.c.l.b16 %v1011
        %v2057 = vunpack.c.h.b16 %v1011
        %v2058 = vunpack.c.l.b16 %v1012
        %v2059 = vunpack.c.h.b16 %v1012
        %v2060 = vunpack.c.l.b16 %v1013
        %v2061 = vunpack.c.h.b16 %v1013
        %v2062 = vunpack.c.l.b16 %v1014
        %v2063 = vunpack.c.h.b16 %v1014
        %v2064 = vunpack.c.l.b16 %v1015
        %v2065 = vunpack.c.h.b16 %v1015
        %v2066 = vunpack.c.l.b16 %v1016
        %v2067 = vunpack.c.h.b16 %v1016
        %v2068 = vunpack.c.l.b16 %v1017
        %v2069 = vunpack.c.h.b16 %v1017
        %v2070 = vunpack.c.l.b16 %v1018
        %v2071 = vunpack.c.h.b16 %v1018
        %v2072 = vunpack.c.l.b16 %v1019
        %v2073 = vunpack.c.h.b16 %v1019
        %v2074 = vunpack.c.l.b16 %v1020
        %v2075 = vunpack.c.h.b16 %v1020
        %v2076 = vunpack.c.l.b16 %v1021
        %v2077 = vunpack.c.h.b16 %v1021
        %v2078 = vunpack.c.l.b16 %v1022
        %v2079 = vunpack.c.h.b16 %v1022
        %v2080 = vunpack.c.l.b16 %v1023
        %v2081 = vunpack.c.h.b16 %v1023
        %v2082 = vunpack.c.l.b16 %v1024
        %v2083 = vunpack.c.h.b16 %v1024
        %v2084 = vunpack.c.l.b16 %v1025
        %v2085 = vunpack.c.h.b16 %v1025
        %v2086 = vunpack.c.l.b16 %v1026
        %v2087 = vunpack.c.h.b16 %v1026
        %v2088 = vunpack.c.l.b16 %v1027
        %v2089 = vunpack.c.h.b16 %v1027
        %v2090 = vunpack.c.l.b16 %v1028
        %v2091 = vunpack.c.h.b16 %v1028
        %v2092 = vunpack.c.l.b16 %v1029
        %v2093 = vunpack.c.h.b16 %v1029
        %v2094 = vunpack.c.l.b16 %v1030
        %v2095 = vunpack.c.h.b16 %v1030
        %v2096 = vunpack.c.l.b16 %v1031
        %v2097 = vunpack.c.h.b16 %v1031
        %v2098 = vunpack.c.l.b16 %v1032
        %v2099 = vunpack.c.h.b16 %v1032
        %v2100 = vunpack.c.l.b16 %v1033
        %v2101 = vunpack.c.h.b16 %v1033
        %v2102 = vunpack.c.l.b16 %v1034
        %v2103 = vunpack.c.h.b16 %v1034
        %v2104 = vunpack.c.l.b16 %v1035
        %v2105 = vunpack.c.h.b16 %v1035
        %v2106 = vunpack.c.l.b16 %v1036
        %v2107 = vunpack.c.h.b16 %v1036
        %v2108 = vunpack.c.l.b16 %v1037
        %v2109 = vunpack.c.h.b16 %v1037
        %v2110 = vunpack.c.l.b16 %v1038
        %v2111 = vunpack.c.h.b16 %v1038
        %v2112 = vunpack.c.l.b16 %v1039
        %v2113 = vunpack.c.h.b16 %v1039
        %v2114 = vunpack.c.l.b16 %v1040
        %v2115 = vunpack.c.h.b16 %v1040
        %v2116 = vunpack.c.l.b16 %v1041
        %v2117 = vunpack.c.h.b16 %v1041
        %v2118 = vunpack.c.l.b16 %v1042
        %v2119 = vunpack.c.h.b16 %v1042
        %v2120 = vunpack.c.l.b16 %v1043
        %v2121 = vunpack.c.h.b16 %v1043
        %v2122 = vunpack.c.l.b16 %v1044
        %v2123 = vunpack.c.h.b16 %v1044
        %v2124 = vunpack.c.l.b16 %v1045
        %v2125 = vunpack.c.h.b16 %v1045
        %v2126 = vunpack.c.l.b16 %v1046
        %v2127 = vunpack.c.h.b16 %v1046
        %v2128 = vunpack.c.l.b16 %v1047
        %v2129 = vunpack.c.h.b16 %v1047
        %v2130 = vunpack.c.l.b16 %v1048
        %v2131 = vunpack.c.h.b16 %v1048
        %v2132 = vunpack.c.l.b16 %v1049
        %v2133 = vunpack.c.h.b16 %v1049
        %v2134 = vunpack.c.l.b16 %v1050
        %v2135 = vunpack.c.h.b16 %v1050
        %v2136 = vunpack.c.l.b16 %v1051
        %v2137 = vunpack.c.h.b16 %v1051
        %v2138 = vunpack.c.l.b16 %v1052
        %v2139 = vunpack.c.h.b16 %v1052
        %v2140 = vunpack.c.l.b16 %v1053
        %v2141 = vunpack.c.h.b16 %v1053
        %v2142 = vunpack.c.l.b16 %v1054
        %v2143 = vunpack.c.h.b16 %v1054
        %v2144 = vunpack.c.l.b16 %v1055
        %v2145 = vunpack.c.h.b16 %v1055
        %v2146 = vunpack.c.l.b16 %v1056
        %v2147 = vunpack.c.h.b16 %v1056
        %v2148 = vunpack.c.l.b16 %v1057
        %v2149 = vunpack.c.h.b16 %v1057
        %v2150 = vunpack.c.l.b16 %v1058
        %v2151 = vunpack.c.h.b16 %v1058
        %v2152 = vunpack.c.l.b16 %v1059
        %v2153 = vunpack.c.h.b16 %v1059
        %v2154 = vunpack.c.l.b16 %v1060
        %v2155 = vunpack.c.h.b16 %v1060
        %v2156 = vunpack.c.l.b16 %v1061
        %v2157 = vunpack.c.h.b16 %v1061
        %v2158 = vunpack.c.l.b16 %v1062
        %v2159 = vunpack.c.h.b16 %v1062
        %v2160 = vunpack.c.l.b16 %v1063
        %v2161 = vunpack.c.h.b16 %v1063
        %v2162 = vunpack.c.l.b16 %v1064
        %v2163 = vunpack.c.h.b16 %v1064
        %v2164 = vunpack.c.l.b16 %v1065
        %v2165 = vunpack.c.h.b16 %v1065
        %v2166 = vunpack.c.l.b16 %v1066
        %v2167 = vunpack.c.h.b16 %v1066
        %v2168 = vunpack.c.l.b16 %v1067
        %v2169 = vunpack.c.h.b16 %v1067
        %v2170 = vunpack.c.l.b16 %v1068
        %v2171 = vunpack.c.h.b16 %v1068
        %v2172 = vunpack.c.l.b16 %v1069
        %v2173 = vunpack.c.h.b16 %v1069
        %v2174 = vunpack.c.l.b16 %v1070
        %v2175 = vunpack.c.h.b16 %v1070
        %v2176 = vunpack.c.l.b16 %v1071
        %v2177 = vunpack.c.h.b16 %v1071
        %v2178 = vunpack.c.l.b16 %v1072
        %v2179 = vunpack.c.h.b16 %v1072
        %v2180 = vunpack.c.l.b16 %v1073
        %v2181 = vunpack.c.h.b16 %v1073
        %v2182 = vunpack.c.l.b16 %v1074
        %v2183 = vunpack.c.h.b16 %v1074
        %v2184 = vunpack.c.l.b16 %v1075
        %v2185 = vunpack.c.h.b16 %v1075
        %v2186 = vunpack.c.l.b16 %v1076
        %v2187 = vunpack.c.h.b16 %v1076
        %v2188 = vunpack.c.l.b16 %v1077
        %v2189 = vunpack.c.h.b16 %v1077
        %v2190 = vunpack.c.l.b16 %v1078
        %v2191 = vunpack.c.h.b16 %v1078
        %v2192 = vunpack.c.l.b16 %v1079
        %v2193 = vunpack.c.h.b16 %v1079
        %v2194 = vunpack.c.l.b16 %v1080
        %v2195 = vunpack.c.h.b16 %v1080
        %v2196 = vunpack.c.l.b16 %v1081
        %v2197 = vunpack.c.h.b16 %v1081
        %v2198 = vunpack.c.l.b16 %v1082
        %v2199 = vunpack.c.h.b16 %v1082
        %v2200 = vunpack.c.l.b16 %v1083
        %v2201 = vunpack.c.h.b16 %v1083
        %v2202 = vunpack.c.l.b16 %v1084
        %v2203 = vunpack.c.h.b16 %v1084
        %v2204 = vunpack.c.l.b16 %v1085
        %v2205 = vunpack.c.h.b16 %v1085
        %v2206 = vunpack.c.l.b16 %v1086
        %v2207 = vunpack.c.h.b16 %v1086
        %v2208 = vunpack.c.l.b16 %v1087
        %v2209 = vunpack.c.h.b16 %v1087
        %v2210 = vunpack.c.l.b16 %v1088
        %v2211 = vunpack.c.h.b16 %v1088
        %v2212 = vunpack.c.l.b16 %v1089
        %v2213 = vunpack.c.h.b16 %v1089
        %v2214 = vunpack.c.l.b16 %v1090
        %v2215 = vunpack.c.h.b16 %v1090
        %v2216 = vunpack.c.l.b16 %v1091
        %v2217 = vunpack.c.h.b16 %v1091
        %v2218 = vunpack.c.l.b16 %v1092
        %v2219 = vunpack.c.h.b16 %v1092
        %v2220 = vunpack.c.l.b16 %v1093
        %v2221 = vunpack.c.h.b16 %v1093
        %v2222 = vunpack.c.l.b16 %v1094
        %v2223 = vunpack.c.h.b16 %v1094
        %v2224 = vunpack.c.l.b16 %v1095
        %v2225 = vunpack.c.h.b16 %v1095
        %v2226 = vunpack.c.l.b16 %v1096
        %v2227 = vunpack.c.h.b16 %v1096
        %v2228 = vunpack.c.l.b16 %v1097
        %v2229 = vunpack.c.h.b16 %v1097
        %v2230 = vunpack.c.l.b16 %v1098
        %v2231 = vunpack.c.h.b16 %v1098
        %v2232 = vunpack.c.l.b16 %v1099
        %v2233 = vunpack.c.h.b16 %v1099
        %v2234 = vunpack.c.l.b16 %v1100
        %v2235 = vunpack.c.h.b16 %v1100
        %v2236 = vunpack.c.l.b16 %v1101
        %v2237 = vunpack.c.h.b16 %v1101
        %v2238 = vunpack.c.l.b16 %v1102
        %v2239 = vunpack.c.h.b16 %v1102
        %v2240 = vunpack.c.l.b16 %v1103
        %v2241 = vunpack.c.h.b16 %v1103
        %v2242 = vunpack.c.l.b16 %v1104
        %v2243 = vunpack.c.h.b16 %v1104
        %v2244 = vunpack.c.l.b16 %v1105
        %v2245 = vunpack.c.h.b16 %v1105
        %v2246 = vunpack.c.l.b16 %v1106
        %v2247 = vunpack.c.h.b16 %v1106
        %v2248 = vunpack.c.l.b16 %v1107
        %v2249 = vunpack.c.h.b16 %v1107
        %v2250 = vunpack.c.l.b16 %v1108
        %v2251 = vunpack.c.h.b16 %v1108
        %v2252 = vunpack.c.l.b16 %v1109
        %v2253 = vunpack.c.h.b16 %v1109
        %v2254 = vunpack.c.l.b16 %v1110
        %v2255 = vunpack.c.h.b16 %v1110
        %v2256 = vunpack.c.l.b16 %v1111
        %v2257 = vunpack.c.h.b16 %v1111
        %v2258 = vunpack.c.l.b16 %v1112
        %v2259 = vunpack.c.h.b16 %v1112
        %v2260 = vunpack.c.l.b16 %v1113
        %v2261 = vunpack.c.h.b16 %v1113
        %v2262 = vunpack.c.l.b16 %v1114
        %v2263 = vunpack.c.h.b16 %v1114
        %v2264 = vunpack.c.l.b16 %v1115
        %v2265 = vunpack.c.h.b16 %v1115
        %v2266 = vunpack.c.l.b16 %v1116
        %v2267 = vunpack.c.h.b16 %v1116
        %v2268 = vunpack.c.l.b16 %v1117
        %v2269 = vunpack.c.h.b16 %v1117
        %v2270 = vunpack.c.l.b16 %v1118
        %v2271 = vunpack.c.h.b16 %v1118
        %v2272 = vunpack.c.l.b16 %v1119
        %v2273 = vunpack.c.h.b16 %v1119
        %v2274 = vunpack.c.l.b16 %v1120
        %v2275 = vunpack.c.h.b16 %v1120
        %v2276 = vunpack.c.l.b16 %v1121
        %v2277 = vunpack.c.h.b16 %v1121
        %v2278 = vunpack.c.l.b16 %v1122
        %v2279 = vunpack.c.h.b16 %v1122
        %v2280 = vunpack.c.l.b16 %v1123
        %v2281 = vunpack.c.h.b16 %v1123
        %v2282 = vunpack.c.l.b16 %v1124
        %v2283 = vunpack.c.h.b16 %v1124
        %v2284 = vunpack.c.l.b16 %v1125
        %v2285 = vunpack.c.h.b16 %v1125
        %v2286 = vunpack.c.l.b16 %v1126
        %v2287 = vunpack.c.h.b16 %v1126
        %v2288 = vunpack.c.l.b16 %v1127
        %v2289 = vunpack.c.h.b16 %v1127
        %v2290 = vunpack.c.l.b16 %v1128
        %v2291 = vunpack.c.h.b16 %v1128
        %v2292 = vunpack.c.l.b16 %v1129
        %v2293 = vunpack.c.h.b16 %v1129
        %v2294 = vunpack.c.l.b16 %v1130
        %v2295 = vunpack.c.h.b16 %v1130
        %v2296 = vunpack.c.l.b16 %v1131
        %v2297 = vunpack.c.h.b16 %v1131
        %v2298 = vunpack.c.l.b16 %v1132
        %v2299 = vunpack.c.h.b16 %v1132
        %v2300 = vunpack.c.l.b16 %v1133
        %v2301 = vunpack.c.h.b16 %v1133
        %v2302 = vunpack.c.l.b16 %v1134
        %v2303 = vunpack.c.h.b16 %v1134
        %v2304 = vunpack.c.l.b16 %v1135
        %v2305 = vunpack.c.h.b16 %v1135
        %v2306 = vunpack.c.l.b16 %v1136
        %v2307 = vunpack.c.h.b16 %v1136
        %v2308 = vunpack.c.l.b16 %v1137
        %v2309 = vunpack.c.h.b16 %v1137
        %v2310 = vunpack.c.l.b16 %v1138
        %v2311 = vunpack.c.h.b16 %v1138
        %v2312 = vunpack.c.l.b16 %v1139
        %v2313 = vunpack.c.h.b16 %v1139
        %v2314 = vunpack.c.l.b16 %v1140
        %v2315 = vunpack.c.h.b16 %v1140
        %v2316 = vunpack.c.l.b16 %v1141
        %v2317 = vunpack.c.h.b16 %v1141
        %v2318 = vunpack.c.l.b16 %v1142
        %v2319 = vunpack.c.h.b16 %v1142
        %v2320 = vunpack.c.l.b16 %v1143
        %v2321 = vunpack.c.h.b16 %v1143
        %v2322 = vunpack.c.l.b16 %v1144
        %v2323 = vunpack.c.h.b16 %v1144
        %v2324 = vunpack.c.l.b16 %v1145
        %v2325 = vunpack.c.h.b16 %v1145
        %v2326 = vunpack.c.l.b16 %v1146
        %v2327 = vunpack.c.h.b16 %v1146
        %v2328 = vunpack.c.l.b16 %v1147
        %v2329 = vunpack.c.h.b16 %v1147
        %v2330 = vunpack.c.l.b16 %v1148
        %v2331 = vunpack.c.h.b16 %v1148
        %v2332 = vunpack.c.l.b16 %v1149
        %v2333 = vunpack.c.h.b16 %v1149
        %v2334 = vpack.c.b16 %v1826, %v1822
        %v2335 = vpack.c.b16 %v1827, %v1823
        %v2336 = vpack.c.b16 %v1828, %v1824
        %v2337 = vpack.c.b16 %v1829, %v1825
        %v2338 = vpack.c.b16 %v1834, %v1830
        %v2339 = vpack.c.b16 %v1835, %v1831
        %v2340 = vpack.c.b16 %v1836, %v1832
        %v2341 = vpack.c.b16 %v1837, %v1833
        %v2342 = vpack.c.b16 %v1842, %v1838
        %v2343 = vpack.c.b16 %v1843, %v1839
        %v2344 = vpack.c.b16 %v1844, %v1840
        %v2345 = vpack.c.b16 %v1845, %v1841
        %v2346 = vpack.c.b16 %v1850, %v1846
        %v2347 = vpack.c.b16 %v1851, %v1847
        %v2348 = vpack.c.b16 %v1852, %v1848
        %v2349 = vpack.c.b16 %v1853, %v1849
        %v2350 = vpack.c.b16 %v1858, %v1854
        %v2351 = vpack.c.b16 %v1859, %v1855
        %v2352 = vpack.c.b16 %v1860, %v1856
        %v2353 = vpack.c.b16 %v1861, %v1857
        %v2354 = vpack.c.b16 %v1866, %v1862
        %v2355 = vpack.c.b16 %v1867, %v1863
        %v2356 = vpack.c.b16 %v1868, %v1864
        %v2357 = vpack.c.b16 %v1869, %v1865
        %v2358 = vpack.c.b16 %v1874, %v1870
        %v2359 = vpack.c.b16 %v1875, %v1871
        %v2360 = vpack.c.b16 %v1876, %v1872
        %v2361 = vpack.c.b16 %v1877, %v1873
        %v2362 = vpack.c.b16 %v1882, %v1878
        %v2363 = vpack.c.b16 %v1883, %v1879
        %v2364 = vpack.c.b16 %v1884, %v1880
        %v2365 = vpack.c.b16 %v1885, %v1881
        %v2366 = vpack.c.b16 %v1890, %v1886
        %v2367 = vpack.c.b16 %v1891, %v1887
        %v2368 = vpack.c.b16 %v1892, %v1888
        %v2369 = vpack.c.b16 %v1893, %v1889
        %v2370 = vpack.c.b16 %v1898, %v1894
        %v2371 = vpack.c.b16 %v1899, %v1895
        %v2372 = vpack.c.b16 %v1900, %v1896
        %v2373 = vpack.c.b16 %v1901, %v1897
        %v2374 = vpack.c.b16 %v1906, %v1902
        %v2375 = vpack.c.b16 %v1907, %v1903
        %v2376 = vpack.c.b16 %v1908, %v1904
        %v2377 = vpack.c.b16 %v1909, %v1905
        %v2378 = vpack.c.b16 %v1914, %v1910
        %v2379 = vpack.c.b16 %v1915, %v1911
        %v2380 = vpack.c.b16 %v1916, %v1912
        %v2381 = vpack.c.b16 %v1917, %v1913
        %v2382 = vpack.c.b16 %v1922, %v1918
        %v2383 = vpack.c.b16 %v1923, %v1919
        %v2384 = vpack.c.b16 %v1924, %v1920
        %v2385 = vpack.c.b16 %v1925, %v1921
        %v2386 = vpack.c.b16 %v1930, %v1926
        %v2387 = vpack.c.b16 %v1931, %v1927
        %v2388 = vpack.c.b16 %v1932, %v1928
        %v2389 = vpack.c.b16 %v1933, %v1929
        %v2390 = vpack.c.b16 %v1938, %v1934
        %v2391 = vpack.c.b16 %v1939, %v1935
        %v2392 = vpack.c.b16 %v1940, %v1936
        %v2393 = vpack.c.b16 %v1941, %v1937
        %v2394 = vpack.c.b16 %v1946, %v1942
        %v2395 = vpack.c.b16 %v1947, %v1943
        %v2396 = vpack.c.b16 %v1948, %v1944
        %v2397 = vpack.c.b16 %v1949, %v1945
        %v2398 = vpack.c.b16 %v1954, %v1950
        %v2399 = vpack.c.b16 %v1955, %v1951
        %v2400 = vpack.c.b16 %v1956, %v1952
        %v2401 = vpack.c.b16 %v1957, %v1953
        %v2402 = vpack.c.b16 %v1962, %v1958
        %v2403 = vpack.c.b16 %v1963, %v1959
        %v2404 = vpack.c.b16 %v1964, %v1960
        %v2405 = vpack.c.b16 %v1965, %v1961
        %v2406 = vpack.c.b16 %v1970, %v1966
        %v2407 = vpack.c.b16 %v1971, %v1967
        %v2408 = vpack.c.b16 %v1972, %v1968
        %v2409 = vpack.c.b16 %v1973, %v1969
        %v2410 = vpack.c.b16 %v1978, %v1974
        %v2411 = vpack.c.b16 %v1979, %v1975
        %v2412 = vpack.c.b16 %v1980, %v1976
        %v2413 = vpack.c.b16 %v1981, %v1977
        %v2414 = vpack.c.b16 %v1986, %v1982
        %v2415 = vpack.c.b16 %v1987, %v1983
        %v2416 = vpack.c.b16 %v1988, %v1984
        %v2417 = vpack.c.b16 %v1989, %v1985
        %v2418 = vpack.c.b16 %v1994, %v1990
        %v2419 = vpack.c.b16 %v1995, %v1991
        %v2420 = vpack.c.b16 %v1996, %v1992
        %v2421 = vpack.c.b16 %v1997, %v1993
        %v2422 = vpack.c.b16 %v2002, %v1998
        %v2423 = vpack.c.b16 %v2003, %v1999
        %v2424 = vpack.c.b16 %v2004, %v2000
        %v2425 = vpack.c.b16 %v2005, %v2001
        %v2426 = vpack.c.b16 %v2010, %v2006
        %v2427 = vpack.c.b16 %v2011, %v2007
        %v2428 = vpack.c.b16 %v2012, %v2008
        %v2429 = vpack.c.b16 %v2013, %v2009
        %v2430 = vpack.c.b16 %v2018, %v2014
        %v2431 = vpack.c.b16 %v2019, %v2015
        %v2432 = vpack.c.b16 %v2020, %v2016
        %v2433 = vpack.c.b16 %v2021, %v2017
        %v2434 = vpack.c.b16 %v2026, %v2022
        %v2435 = vpack.c.b16 %v2027, %v2023
        %v2436 = vpack.c.b16 %v2028, %v2024
        %v2437 = vpack.c.b16 %v2029, %v2025
        %v2438 = vpack.c.b16 %v2034, %v2030
        %v2439 = vpack.c.b16 %v2035, %v2031
        %v2440 = vpack.c.b16 %v2036, %v2032
        %v2441 = vpack.c.b16 %v2037, %v2033
        %v2442 = vpack.c.b16 %v2042, %v2038
        %v2443 = vpack.c.b16 %v2043, %v2039
        %v2444 = vpack.c.b16 %v2044, %v2040
        %v2445 = vpack.c.b16 %v2045, %v2041
        %v2446 = vpack.c.b16 %v2050, %v2046
        %v2447 = vpack.c.b16 %v2051, %v2047
        %v2448 = vpack.c.b16 %v2052, %v2048
        %v2449 = vpack.c.b16 %v2053, %v2049
        %v2450 = vpack.c.b16 %v2058, %v2054
        %v2451 = vpack.c.b16 %v2059, %v2055
        %v2452 = vpack.c.b16 %v2060, %v2056
        %v2453 = vpack.c.b16 %v2061, %v2057
        %v2454 = vpack.c.b16 %v2066, %v2062
        %v2455 = vpack.c.b16 %v2067, %v2063
        %v2456 = vpack.c.b16 %v2068, %v2064
        %v2457 = vpack.c.b16 %v2069, %v2065
        %v2458 = vpack.c.b16 %v2074, %v2070
        %v2459 = vpack.c.b16 %v2075, %v2071
        %v2460 = vpack.c.b16 %v2076, %v2072
        %v2461 = vpack.c.b16 %v2077, %v2073
        %v2462 = vpack.c.b16 %v2082, %v2078
        %v2463 = vpack.c.b16 %v2083, %v2079
        %v2464 = vpack.c.b16 %v2084, %v2080
        %v2465 = vpack.c.b16 %v2085, %v2081
        %v2466 = vpack.c.b16 %v2090, %v2086
        %v2467 = vpack.c.b16 %v2091, %v2087
        %v2468 = vpack.c.b16 %v2092, %v2088
        %v2469 = vpack.c.b16 %v2093, %v2089
        %v2470 = vpack.c.b16 %v2098, %v2094
        %v2471 = vpack.c.b16 %v2099, %v2095
        %v2472 = vpack.c.b16 %v2100, %v2096
        %v2473 = vpack.c.b16 %v2101, %v2097
        %v2474 = vpack.c.b16 %v2106, %v2102
        %v2475 = vpack.c.b16 %v2107, %v2103
        %v2476 = vpack.c.b16 %v2108, %v2104
        %v2477 = vpack.c.b16 %v2109, %v2105
        %v2478 = vpack.c.b16 %v2114, %v2110
        %v2479 = vpack.c.b16 %v2115, %v2111
        %v2480 = vpack.c.b16 %v2116, %v2112
        %v2481 = vpack.c.b16 %v2117, %v2113
        %v2482 = vpack.c.b16 %v2122, %v2118
        %v2483 = vpack.c.b16 %v2123, %v2119
        %v2484 = vpack.c.b16 %v2124, %v2120
        %v2485 = vpack.c.b16 %v2125, %v2121
        %v2486 = vpack.c.b16 %v2130, %v2126
        %v2487 = vpack.c.b16 %v2131, %v2127
        %v2488 = vpack.c.b16 %v2132, %v2128
        %v2489 = vpack.c.b16 %v2133, %v2129
        %v2490 = vpack.c.b16 %v2138, %v2134
        %v2491 = vpack.c.b16 %v2139, %v2135
        %v2492 = vpack.c.b16 %v2140, %v2136
        %v2493 = vpack.c.b16 %v2141, %v2137
        %v2494 = vpack.c.b16 %v2146, %v2142
        %v2495 = vpack.c.b16 %v2147, %v2143
        %v2496 = vpack.c.b16 %v2148, %v2144
        %v2497 = vpack.c.b16 %v2149, %v2145
        %v2498 = vpack.c.b16 %v2154, %v2150
        %v2499 = vpack.c.b16 %v2155, %v2151
        %v2500 = vpack.c.b16 %v2156, %v2152
        %v2501 = vpack.c.b16 %v2157, %v2153
        %v2502 = vpack.c.b16 %v2162, %v2158
        %v2503 = vpack.c.b16 %v2163, %v2159
        %v2504 = vpack.c.b16 %v2164, %v2160
        %v2505 = vpack.c.b16 %v2165, %v2161
        %v2506 = vpack.c.b16 %v2170, %v2166
        %v2507 = vpack.c.b16 %v2171, %v2167
        %v2508 = vpack.c.b16 %v2172, %v2168
        %v2509 = vpack.c.b16 %v2173, %v2169
        %v2510 = vpack.c.b16 %v2178, %v2174
        %v2511 = vpack.c.b16 %v2179, %v2175
        %v2512 = vpack.c.b16 %v2180, %v2176
        %v2513 = vpack.c.b16 %v2181, %v2177
        %v2514 = vpack.c.b16 %v2186, %v2182
        %v2515 = vpack.c.b16 %v2187, %v2183
        %v2516 = vpack.c.b16 %v2188, %v2184
        %v2517 = vpack.c.b16 %v2189, %v2185
        %v2518 = vpack.c.b16 %v2194, %v2190
        %v2519 = vpack.c.b16 %v2195, %v2191
        %v2520 = vpack.c.b16 %v2196, %v2192
        %v2521 = vpack.c.b16 %v2197, %v2193
        %v2522 = vpack.c.b16 %v2202, %v2198
        %v2523 = vpack.c.b16 %v2203, %v2199
        %v2524 = vpack.c.b16 %v2204, %v2200
        %v2525 = vpack.c.b16 %v2205, %v2201
        %v2526 = vpack.c.b16 %v2210, %v2206
        %v2527 = vpack.c.b16 %v2211, %v2207
        %v2528 = vpack.c.b16 %v2212, %v2208
        %v2529 = vpack.c.b16 %v2213, %v2209
        %v2530 = vpack.c.b16 %v2218, %v2214
        %v2531 = vpack.c.b16 %v2219, %v2215
        %v2532 = vpack.c.b16 %v2220, %v2216
        %v2533 = vpack.c.b16 %v2221, %v2217
        %v2534 = vpack.c.b16 %v2226, %v2222
        %v2535 = vpack.c.b16 %v2227, %v2223
        %v2536 = vpack.c.b16 %v2228, %v2224
        %v2537 = vpack.c.b16 %v2229, %v2225
        %v2538 = vpack.c.b16 %v2234, %v2230
        %v2539 = vpack.c.b16 %v2235, %v2231
        %v2540 = vpack.c.b16 %v2236, %v2232
        %v2541 = vpack.c.b16 %v2237, %v2233
        %v2542 = vpack.c.b16 %v2242, %v2238
        %v2543 = vpack.c.b16 %v2243, %v2239
        %v2544 = vpack.c.b16 %v2244, %v2240
        %v2545 = vpack.c.b16 %v2245, %v2241
        %v2546 = vpack.c.b16 %v2250, %v2246
        %v2547 = vpack.c.b16 %v2251, %v2247
        %v2548 = vpack.c.b16 %v2252, %v2248
        %v2549 = vpack.c.b16 %v2253, %v2249
        %v2550 = vpack.c.b16 %v2258, %v2254
        %v2551 = vpack.c.b16 %v2259, %v2255
        %v2552 = vpack.c.b16 %v2260, %v2256
        %v2553 = vpack.c.b16 %v2261, %v2257
        %v2554 = vpack.c.b16 %v2266, %v2262
        %v2555 = vpack.c.b16 %v2267, %v2263
        %v2556 = vpack.c.b16 %v2268, %v2264
        %v2557 = vpack.c.b16 %v2269, %v2265
        %v2558 = vpack.c.b16 %v2274, %v2270
        %v2559 = vpack.c.b16 %v2275, %v2271
        %v2560 = vpack.c.b16 %v2276, %v2272
        %v2561 = vpack.c.b16 %v2277, %v2273
        %v2562 = vpack.c.b16 %v2282, %v2278
        %v2563 = vpack.c.b16 %v2283, %v2279
        %v2564 = vpack.c.b16 %v2284, %v2280
        %v2565 = vpack.c.b16 %v2285, %v2281
        %v2566 = vpack.c.b16 %v2290, %v2286
        %v2567 = vpack.c.b16 %v2291, %v2287
        %v2568 = vpack.c.b16 %v2292, %v2288
        %v2569 = vpack.c.b16 %v2293, %v2289
        %v2570 = vpack.c.b16 %v2298, %v2294
        %v2571 = vpack.c.b16 %v2299, %v2295
        %v2572 = vpack.c.b16 %v2300, %v2296
        %v2573 = vpack.c.b16 %v2301, %v2297
        %v2574 = vpack.c.b16 %v2306, %v2302
        %v2575 = vpack.c.b16 %v2307, %v2303
        %v2576 = vpack.c.b16 %v2308, %v2304
        %v2577 = vpack.c.b16 %v2309, %v2305
        %v2578 = vpack.c.b16 %v2314, %v2310
        %v2579 = vpack.c.b16 %v2315, %v2311
        %v2580 = vpack.c.b16 %v2316, %v2312
        %v2581 = vpack.c.b16 %v2317, %v2313
        %v2582 = vpack.c.b16 %v2322, %v2318
        %v2583 = vpack.c.b16 %v2323, %v2319
        %v2584 = vpack.c.b16 %v2324, %v2320
        %v2585 = vpack.c.b16 %v2325, %v2321
        %v2586 = vpack.c.b16 %v2330, %v2326
        %v2587 = vpack.c.b16 %v2331, %v2327
        %v2588 = vpack.c.b16 %v2332, %v2328
        %v2589 = vpack.c.b16 %v2333, %v2329
        %2846 = vmatprep.subr.bf16.mxu0 %v2363
        %2847 = vmatpush1.bf16.msra.mxu0 %v2362
        %2848 = vmatprep.subr.bf16.mxu0 %v2359
        %2849 = vmatpush1.bf16.msra.mxu0 %v2358
        %2850 = vmatprep.subr.bf16.mxu0 %v2355
        %2851 = vmatpush1.bf16.msra.mxu0 %v2354
        %2852 = vmatprep.subr.bf16.mxu0 %v2351
        %2853 = vmatpush1.bf16.msra.mxu0 %v2350
        %2854 = vmatprep.subr.bf16.mxu0 %v2347
        %2855 = vmatpush1.bf16.msra.mxu0 %v2346
        %2856 = vmatprep.subr.bf16.mxu0 %v2343
        %2857 = vmatpush1.bf16.msra.mxu0 %v2342
        %2858 = vmatprep.subr.bf16.mxu0 %v2339
        %2859 = vmatpush1.bf16.msra.mxu0 %v2338
        %2860 = vmatprep.subr.bf16.mxu0 %v2335
        %2861 = vmatpush1.bf16.msra.mxu0 %v2334
        %2862 = vmatprep.subr.bf16.mxu0 %v2395
        %2863 = vmatpush2.bf16.msra.mxu0 %v2394
        %2864 = vmatprep.subr.bf16.mxu0 %v2391
        %2865 = vmatpush2.bf16.msra.mxu0 %v2390
        %2866 = vmatprep.subr.bf16.mxu0 %v2387
        %2867 = vmatpush2.bf16.msra.mxu0 %v2386
        %2868 = vmatprep.subr.bf16.mxu0 %v2383
        %2869 = vmatpush2.bf16.msra.mxu0 %v2382
        %2870 = vmatprep.subr.bf16.mxu0 %v2379
        %2871 = vmatpush2.bf16.msra.mxu0 %v2378
        %2872 = vmatprep.subr.bf16.mxu0 %v2375
        %2873 = vmatpush2.bf16.msra.mxu0 %v2374
        %2874 = vmatprep.subr.bf16.mxu0 %v2371
        %2875 = vmatpush2.bf16.msra.mxu0 %v2370
        %2876 = vmatprep.subr.bf16.mxu0 %v2367
        %2877 = vmatpush2.bf16.msra.mxu0 %v2366
        %2878 = vmatprep.mubr.bf16.mxu0 %v1439
        %2879 = vmatmul.mubr.bf16.gmra.mxu0 %v1438
        %v2880 = vpop.f32.mrf.mxu0
        %v2881 = vadd.f32 %v1169, %v2880
        %v2882 = vpop.f32.mrf.mxu0
        %v2883 = vadd.f32 %v1169, %v2882
        %v2884 = vpop.f32.mrf.mxu0
        %v2885 = vadd.f32 %v1174, %v2884
        %v2886 = vpop.f32.mrf.mxu0
        %v2887 = vadd.f32 %v1174, %v2886
        %2888 = vmatprep.mubr.bf16.mxu0 %v1447
        %2889 = vmatmul.mubr.bf16.gmra.mxu0 %v1446
        %v2890 = vpop.f32.mrf.mxu0
        %v2891 = vadd.f32 %v1179, %v2890
        %v2892 = vpop.f32.mrf.mxu0
        %v2893 = vadd.f32 %v1179, %v2892
        %v2894 = vpop.f32.mrf.mxu0
        %v2895 = vadd.f32 %v1184, %v2894
        %v2896 = vpop.f32.mrf.mxu0
        %v2897 = vadd.f32 %v1184, %v2896
        %2898 = vmatprep.mubr.bf16.mxu0 %v1455
        %2899 = vmatmul.mubr.bf16.gmra.mxu0 %v1454
        %v2900 = vpop.f32.mrf.mxu0
        %v2901 = vadd.f32 %v1189, %v2900
        %v2902 = vpop.f32.mrf.mxu0
        %v2903 = vadd.f32 %v1189, %v2902
        %v2904 = vpop.f32.mrf.mxu0
        %v2905 = vadd.f32 %v1194, %v2904
        %v2906 = vpop.f32.mrf.mxu0
        %v2907 = vadd.f32 %v1194, %v2906
        %2908 = vmatprep.mubr.bf16.mxu0 %v1463
        %2909 = vmatmul.mubr.bf16.gmra.mxu0 %v1462
        %v2910 = vpop.f32.mrf.mxu0
        %v2911 = vadd.f32 %v1199, %v2910
        %v2912 = vpop.f32.mrf.mxu0
        %v2913 = vadd.f32 %v1199, %v2912
        %v2914 = vpop.f32.mrf.mxu0
        %v2915 = vadd.f32 %v1204, %v2914
        %v2916 = vpop.f32.mrf.mxu0
        %v2917 = vadd.f32 %v1204, %v2916
        %2918 = vmatprep.mubr.bf16.mxu0 %v1471
        %2919 = vmatmul.mubr.bf16.gmra.mxu0 %v1470
        %v2920 = vpop.f32.mrf.mxu0
        %v2921 = vadd.f32 %v1209, %v2920
        %v2922 = vpop.f32.mrf.mxu0
        %v2923 = vadd.f32 %v1209, %v2922
        %v2924 = vpop.f32.mrf.mxu0
        %v2925 = vadd.f32 %v1214, %v2924
        %v2926 = vpop.f32.mrf.mxu0
        %v2927 = vadd.f32 %v1214, %v2926
        %2928 = vmatprep.mubr.bf16.mxu0 %v1479
        %2929 = vmatmul.mubr.bf16.gmra.mxu0 %v1478
        %v2930 = vpop.f32.mrf.mxu0
        %v2931 = vadd.f32 %v1219, %v2930
        %v2932 = vpop.f32.mrf.mxu0
        %v2933 = vadd.f32 %v1219, %v2932
        %v2934 = vpop.f32.mrf.mxu0
        %v2935 = vadd.f32 %v1224, %v2934
        %v2936 = vpop.f32.mrf.mxu0
        %v2937 = vadd.f32 %v1224, %v2936
        %2938 = vmatprep.mubr.bf16.mxu0 %v1487
        %2939 = vmatmul.mubr.bf16.gmra.mxu0 %v1486
        %v2940 = vpop.f32.mrf.mxu0
        %v2941 = vadd.f32 %v1229, %v2940
        %v2942 = vpop.f32.mrf.mxu0
        %v2943 = vadd.f32 %v1229, %v2942
        %v2944 = vpop.f32.mrf.mxu0
        %v2945 = vadd.f32 %v1234, %v2944
        %v2946 = vpop.f32.mrf.mxu0
        %v2947 = vadd.f32 %v1234, %v2946
        %2948 = vmatprep.mubr.bf16.mxu0 %v1495
        %2949 = vmatmul.mubr.bf16.gmra.mxu0 %v1494
        %v2950 = vpop.f32.mrf.mxu0
        %v2951 = vadd.f32 %v1239, %v2950
        %v2952 = vpop.f32.mrf.mxu0
        %v2953 = vadd.f32 %v1239, %v2952
        %v2954 = vpop.f32.mrf.mxu0
        %v2955 = vadd.f32 %v1244, %v2954
        %v2956 = vpop.f32.mrf.mxu0
        %v2957 = vadd.f32 %v1244, %v2956
        %2958 = vdwg.mxu0
        %2959 = vmatprep.subr.bf16.mxu0 %v2427
        %2960 = vmatpush1.bf16.msra.mxu0 %v2426
        %2961 = vmatprep.subr.bf16.mxu0 %v2423
        %2962 = vmatpush1.bf16.msra.mxu0 %v2422
        %2963 = vmatprep.subr.bf16.mxu0 %v2419
        %2964 = vmatpush1.bf16.msra.mxu0 %v2418
        %2965 = vmatprep.subr.bf16.mxu0 %v2415
        %2966 = vmatpush1.bf16.msra.mxu0 %v2414
        %2967 = vmatprep.subr.bf16.mxu0 %v2411
        %2968 = vmatpush1.bf16.msra.mxu0 %v2410
        %2969 = vmatprep.subr.bf16.mxu0 %v2407
        %2970 = vmatpush1.bf16.msra.mxu0 %v2406
        %2971 = vmatprep.subr.bf16.mxu0 %v2403
        %2972 = vmatpush1.bf16.msra.mxu0 %v2402
        %2973 = vmatprep.subr.bf16.mxu0 %v2399
        %2974 = vmatpush1.bf16.msra.mxu0 %v2398
        %2975 = vmatprep.subr.bf16.mxu0 %v2459
        %2976 = vmatpush2.bf16.msra.mxu0 %v2458
        %2977 = vmatprep.subr.bf16.mxu0 %v2455
        %2978 = vmatpush2.bf16.msra.mxu0 %v2454
        %2979 = vmatprep.subr.bf16.mxu0 %v2451
        %2980 = vmatpush2.bf16.msra.mxu0 %v2450
        %2981 = vmatprep.subr.bf16.mxu0 %v2447
        %2982 = vmatpush2.bf16.msra.mxu0 %v2446
        %2983 = vmatprep.subr.bf16.mxu0 %v2443
        %2984 = vmatpush2.bf16.msra.mxu0 %v2442
        %2985 = vmatprep.subr.bf16.mxu0 %v2439
        %2986 = vmatpush2.bf16.msra.mxu0 %v2438
        %2987 = vmatprep.subr.bf16.mxu0 %v2435
        %2988 = vmatpush2.bf16.msra.mxu0 %v2434
        %2989 = vmatprep.subr.bf16.mxu0 %v2431
        %2990 = vmatpush2.bf16.msra.mxu0 %v2430
        %2991 = vmatprep.mubr.bf16.mxu0 %v1441
        %2992 = vmatmul.mubr.bf16.gmra.mxu0 %v1440
        %v2993 = vpop.f32.mrf.mxu0
        %v2994 = vadd.f32 %v2881, %v2993
        %v2995 = vpop.f32.mrf.mxu0
        %v2996 = vadd.f32 %v2883, %v2995
        %v2997 = vpop.f32.mrf.mxu0
        %v2998 = vadd.f32 %v2885, %v2997
        %v2999 = vpop.f32.mrf.mxu0
        %v3000 = vadd.f32 %v2887, %v2999
        %3001 = vmatprep.mubr.bf16.mxu0 %v1449
        %3002 = vmatmul.mubr.bf16.gmra.mxu0 %v1448
        %v3003 = vpop.f32.mrf.mxu0
        %v3004 = vadd.f32 %v2891, %v3003
        %v3005 = vpop.f32.mrf.mxu0
        %v3006 = vadd.f32 %v2893, %v3005
        %v3007 = vpop.f32.mrf.mxu0
        %v3008 = vadd.f32 %v2895, %v3007
        %v3009 = vpop.f32.mrf.mxu0
        %v3010 = vadd.f32 %v2897, %v3009
        %3011 = vmatprep.mubr.bf16.mxu0 %v1457
        %3012 = vmatmul.mubr.bf16.gmra.mxu0 %v1456
        %v3013 = vpop.f32.mrf.mxu0
        %v3014 = vadd.f32 %v2901, %v3013
        %v3015 = vpop.f32.mrf.mxu0
        %v3016 = vadd.f32 %v2903, %v3015
        %v3017 = vpop.f32.mrf.mxu0
        %v3018 = vadd.f32 %v2905, %v3017
        %v3019 = vpop.f32.mrf.mxu0
        %v3020 = vadd.f32 %v2907, %v3019
        %3021 = vmatprep.mubr.bf16.mxu0 %v1465
        %3022 = vmatmul.mubr.bf16.gmra.mxu0 %v1464
        %v3023 = vpop.f32.mrf.mxu0
        %v3024 = vadd.f32 %v2911, %v3023
        %v3025 = vpop.f32.mrf.mxu0
        %v3026 = vadd.f32 %v2913, %v3025
        %v3027 = vpop.f32.mrf.mxu0
        %v3028 = vadd.f32 %v2915, %v3027
        %v3029 = vpop.f32.mrf.mxu0
        %v3030 = vadd.f32 %v2917, %v3029
        %3031 = vmatprep.mubr.bf16.mxu0 %v1473
        %3032 = vmatmul.mubr.bf16.gmra.mxu0 %v1472
        %v3033 = vpop.f32.mrf.mxu0
        %v3034 = vadd.f32 %v2921, %v3033
        %v3035 = vpop.f32.mrf.mxu0
        %v3036 = vadd.f32 %v2923, %v3035
        %v3037 = vpop.f32.mrf.mxu0
        %v3038 = vadd.f32 %v2925, %v3037
        %v3039 = vpop.f32.mrf.mxu0
        %v3040 = vadd.f32 %v2927, %v3039
        %3041 = vmatprep.mubr.bf16.mxu0 %v1481
        %3042 = vmatmul.mubr.bf16.gmra.mxu0 %v1480
        %v3043 = vpop.f32.mrf.mxu0
        %v3044 = vadd.f32 %v2931, %v3043
        %v3045 = vpop.f32.mrf.mxu0
        %v3046 = vadd.f32 %v2933, %v3045
        %v3047 = vpop.f32.mrf.mxu0
        %v3048 = vadd.f32 %v2935, %v3047
        %v3049 = vpop.f32.mrf.mxu0
        %v3050 = vadd.f32 %v2937, %v3049
        %3051 = vmatprep.mubr.bf16.mxu0 %v1489
        %3052 = vmatmul.mubr.bf16.gmra.mxu0 %v1488
        %v3053 = vpop.f32.mrf.mxu0
        %v3054 = vadd.f32 %v2941, %v3053
        %v3055 = vpop.f32.mrf.mxu0
        %v3056 = vadd.f32 %v2943, %v3055
        %v3057 = vpop.f32.mrf.mxu0
        %v3058 = vadd.f32 %v2945, %v3057
        %v3059 = vpop.f32.mrf.mxu0
        %v3060 = vadd.f32 %v2947, %v3059
        %3061 = vmatprep.mubr.bf16.mxu0 %v1497
        %3062 = vmatmul.mubr.bf16.gmra.mxu0 %v1496
        %v3063 = vpop.f32.mrf.mxu0
        %v3064 = vadd.f32 %v2951, %v3063
        %v3065 = vpop.f32.mrf.mxu0
        %v3066 = vadd.f32 %v2953, %v3065
        %v3067 = vpop.f32.mrf.mxu0
        %v3068 = vadd.f32 %v2955, %v3067
        %v3069 = vpop.f32.mrf.mxu0
        %v3070 = vadd.f32 %v2957, %v3069
        %3071 = vdwg.mxu0
        %3072 = vmatprep.subr.bf16.mxu0 %v2491
        %3073 = vmatpush1.bf16.msra.mxu0 %v2490
        %3074 = vmatprep.subr.bf16.mxu0 %v2487
        %3075 = vmatpush1.bf16.msra.mxu0 %v2486
        %3076 = vmatprep.subr.bf16.mxu0 %v2483
        %3077 = vmatpush1.bf16.msra.mxu0 %v2482
        %3078 = vmatprep.subr.bf16.mxu0 %v2479
        %3079 = vmatpush1.bf16.msra.mxu0 %v2478
        %3080 = vmatprep.subr.bf16.mxu0 %v2475
        %3081 = vmatpush1.bf16.msra.mxu0 %v2474
        %3082 = vmatprep.subr.bf16.mxu0 %v2471
        %3083 = vmatpush1.bf16.msra.mxu0 %v2470
        %3084 = vmatprep.subr.bf16.mxu0 %v2467
        %3085 = vmatpush1.bf16.msra.mxu0 %v2466
        %3086 = vmatprep.subr.bf16.mxu0 %v2463
        %3087 = vmatpush1.bf16.msra.mxu0 %v2462
        %3088 = vmatprep.subr.bf16.mxu0 %v2523
        %3089 = vmatpush2.bf16.msra.mxu0 %v2522
        %3090 = vmatprep.subr.bf16.mxu0 %v2519
        %3091 = vmatpush2.bf16.msra.mxu0 %v2518
        %3092 = vmatprep.subr.bf16.mxu0 %v2515
        %3093 = vmatpush2.bf16.msra.mxu0 %v2514
        %3094 = vmatprep.subr.bf16.mxu0 %v2511
        %3095 = vmatpush2.bf16.msra.mxu0 %v2510
        %3096 = vmatprep.subr.bf16.mxu0 %v2507
        %3097 = vmatpush2.bf16.msra.mxu0 %v2506
        %3098 = vmatprep.subr.bf16.mxu0 %v2503
        %3099 = vmatpush2.bf16.msra.mxu0 %v2502
        %3100 = vmatprep.subr.bf16.mxu0 %v2499
        %3101 = vmatpush2.bf16.msra.mxu0 %v2498
        %3102 = vmatprep.subr.bf16.mxu0 %v2495
        %3103 = vmatpush2.bf16.msra.mxu0 %v2494
        %3104 = vmatprep.mubr.bf16.mxu0 %v1443
        %3105 = vmatmul.mubr.bf16.gmra.mxu0 %v1442
        %v3106 = vpop.f32.mrf.mxu0
        %v3107 = vadd.f32 %v2994, %v3106
        %v3108 = vpop.f32.mrf.mxu0
        %v3109 = vadd.f32 %v2996, %v3108
        %v3110 = vpop.f32.mrf.mxu0
        %v3111 = vadd.f32 %v2998, %v3110
        %v3112 = vpop.f32.mrf.mxu0
        %v3113 = vadd.f32 %v3000, %v3112
        %3114 = vmatprep.mubr.bf16.mxu0 %v1451
        %3115 = vmatmul.mubr.bf16.gmra.mxu0 %v1450
        %v3116 = vpop.f32.mrf.mxu0
        %v3117 = vadd.f32 %v3004, %v3116
        %v3118 = vpop.f32.mrf.mxu0
        %v3119 = vadd.f32 %v3006, %v3118
        %v3120 = vpop.f32.mrf.mxu0
        %v3121 = vadd.f32 %v3008, %v3120
        %v3122 = vpop.f32.mrf.mxu0
        %v3123 = vadd.f32 %v3010, %v3122
        %3124 = vmatprep.mubr.bf16.mxu0 %v1459
        %3125 = vmatmul.mubr.bf16.gmra.mxu0 %v1458
        %v3126 = vpop.f32.mrf.mxu0
        %v3127 = vadd.f32 %v3014, %v3126
        %v3128 = vpop.f32.mrf.mxu0
        %v3129 = vadd.f32 %v3016, %v3128
        %v3130 = vpop.f32.mrf.mxu0
        %v3131 = vadd.f32 %v3018, %v3130
        %v3132 = vpop.f32.mrf.mxu0
        %v3133 = vadd.f32 %v3020, %v3132
        %3134 = vmatprep.mubr.bf16.mxu0 %v1467
        %3135 = vmatmul.mubr.bf16.gmra.mxu0 %v1466
        %v3136 = vpop.f32.mrf.mxu0
        %v3137 = vadd.f32 %v3024, %v3136
        %v3138 = vpop.f32.mrf.mxu0
        %v3139 = vadd.f32 %v3026, %v3138
        %v3140 = vpop.f32.mrf.mxu0
        %v3141 = vadd.f32 %v3028, %v3140
        %v3142 = vpop.f32.mrf.mxu0
        %v3143 = vadd.f32 %v3030, %v3142
        %3144 = vmatprep.mubr.bf16.mxu0 %v1475
        %3145 = vmatmul.mubr.bf16.gmra.mxu0 %v1474
        %v3146 = vpop.f32.mrf.mxu0
        %v3147 = vadd.f32 %v3034, %v3146
        %v3148 = vpop.f32.mrf.mxu0
        %v3149 = vadd.f32 %v3036, %v3148
        %v3150 = vpop.f32.mrf.mxu0
        %v3151 = vadd.f32 %v3038, %v3150
        %v3152 = vpop.f32.mrf.mxu0
        %v3153 = vadd.f32 %v3040, %v3152
        %3154 = vmatprep.mubr.bf16.mxu0 %v1483
        %3155 = vmatmul.mubr.bf16.gmra.mxu0 %v1482
        %v3156 = vpop.f32.mrf.mxu0
        %v3157 = vadd.f32 %v3044, %v3156
        %v3158 = vpop.f32.mrf.mxu0
        %v3159 = vadd.f32 %v3046, %v3158
        %v3160 = vpop.f32.mrf.mxu0
        %v3161 = vadd.f32 %v3048, %v3160
        %v3162 = vpop.f32.mrf.mxu0
        %v3163 = vadd.f32 %v3050, %v3162
        %3164 = vmatprep.mubr.bf16.mxu0 %v1491
        %3165 = vmatmul.mubr.bf16.gmra.mxu0 %v1490
        %v3166 = vpop.f32.mrf.mxu0
        %v3167 = vadd.f32 %v3054, %v3166
        %v3168 = vpop.f32.mrf.mxu0
        %v3169 = vadd.f32 %v3056, %v3168
        %v3170 = vpop.f32.mrf.mxu0
        %v3171 = vadd.f32 %v3058, %v3170
        %v3172 = vpop.f32.mrf.mxu0
        %v3173 = vadd.f32 %v3060, %v3172
        %3174 = vmatprep.mubr.bf16.mxu0 %v1499
        %3175 = vmatmul.mubr.bf16.gmra.mxu0 %v1498
        %v3176 = vpop.f32.mrf.mxu0
        %v3177 = vadd.f32 %v3064, %v3176
        %v3178 = vpop.f32.mrf.mxu0
        %v3179 = vadd.f32 %v3066, %v3178
        %v3180 = vpop.f32.mrf.mxu0
        %v3181 = vadd.f32 %v3068, %v3180
        %v3182 = vpop.f32.mrf.mxu0
        %v3183 = vadd.f32 %v3070, %v3182
        %3184 = vdwg.mxu0
        %3185 = vmatprep.subr.bf16.mxu0 %v2555
        %3186 = vmatpush1.bf16.msra.mxu0 %v2554
        %3187 = vmatprep.subr.bf16.mxu0 %v2551
        %3188 = vmatpush1.bf16.msra.mxu0 %v2550
        %3189 = vmatprep.subr.bf16.mxu0 %v2547
        %3190 = vmatpush1.bf16.msra.mxu0 %v2546
        %3191 = vmatprep.subr.bf16.mxu0 %v2543
        %3192 = vmatpush1.bf16.msra.mxu0 %v2542
        %3193 = vmatprep.subr.bf16.mxu0 %v2539
        %3194 = vmatpush1.bf16.msra.mxu0 %v2538
        %3195 = vmatprep.subr.bf16.mxu0 %v2535
        %3196 = vmatpush1.bf16.msra.mxu0 %v2534
        %3197 = vmatprep.subr.bf16.mxu0 %v2531
        %3198 = vmatpush1.bf16.msra.mxu0 %v2530
        %3199 = vmatprep.subr.bf16.mxu0 %v2527
        %3200 = vmatpush1.bf16.msra.mxu0 %v2526
        %3201 = vmatprep.subr.bf16.mxu0 %v2587
        %3202 = vmatpush2.bf16.msra.mxu0 %v2586
        %3203 = vmatprep.subr.bf16.mxu0 %v2583
        %3204 = vmatpush2.bf16.msra.mxu0 %v2582
        %3205 = vmatprep.subr.bf16.mxu0 %v2579
        %3206 = vmatpush2.bf16.msra.mxu0 %v2578
        %3207 = vmatprep.subr.bf16.mxu0 %v2575
        %3208 = vmatpush2.bf16.msra.mxu0 %v2574
        %3209 = vmatprep.subr.bf16.mxu0 %v2571
        %3210 = vmatpush2.bf16.msra.mxu0 %v2570
        %3211 = vmatprep.subr.bf16.mxu0 %v2567
        %3212 = vmatpush2.bf16.msra.mxu0 %v2566
        %3213 = vmatprep.subr.bf16.mxu0 %v2563
        %3214 = vmatpush2.bf16.msra.mxu0 %v2562
        %3215 = vmatprep.subr.bf16.mxu0 %v2559
        %3216 = vmatpush2.bf16.msra.mxu0 %v2558
        %3217 = vmatprep.mubr.bf16.mxu0 %v1445
        %3218 = vmatmul.mubr.bf16.gmra.mxu0 %v1444
        %v3219 = vpop.f32.mrf.mxu0
        %v3220 = vadd.f32 %v3107, %v3219
        %v3221 = vpop.f32.mrf.mxu0
        %v3222 = vadd.f32 %v3109, %v3221
        %v3223 = vpop.f32.mrf.mxu0
        %v3224 = vadd.f32 %v3111, %v3223
        %v3225 = vpop.f32.mrf.mxu0
        %v3226 = vadd.f32 %v3113, %v3225
        %3227 = vmatprep.mubr.bf16.mxu0 %v1453
        %3228 = vmatmul.mubr.bf16.gmra.mxu0 %v1452
        %v3229 = vpop.f32.mrf.mxu0
        %v3230 = vadd.f32 %v3117, %v3229
        %v3231 = vpop.f32.mrf.mxu0
        %v3232 = vadd.f32 %v3119, %v3231
        %v3233 = vpop.f32.mrf.mxu0
        %v3234 = vadd.f32 %v3121, %v3233
        %v3235 = vpop.f32.mrf.mxu0
        %v3236 = vadd.f32 %v3123, %v3235
        %3237 = vmatprep.mubr.bf16.mxu0 %v1461
        %3238 = vmatmul.mubr.bf16.gmra.mxu0 %v1460
        %v3239 = vpop.f32.mrf.mxu0
        %v3240 = vadd.f32 %v3127, %v3239
        %v3241 = vpop.f32.mrf.mxu0
        %v3242 = vadd.f32 %v3129, %v3241
        %v3243 = vpop.f32.mrf.mxu0
        %v3244 = vadd.f32 %v3131, %v3243
        %v3245 = vpop.f32.mrf.mxu0
        %v3246 = vadd.f32 %v3133, %v3245
        %3247 = vmatprep.mubr.bf16.mxu0 %v1469
        %3248 = vmatmul.mubr.bf16.gmra.mxu0 %v1468
        %v3249 = vpop.f32.mrf.mxu0
        %v3250 = vadd.f32 %v3137, %v3249
        %v3251 = vpop.f32.mrf.mxu0
        %v3252 = vadd.f32 %v3139, %v3251
        %v3253 = vpop.f32.mrf.mxu0
        %v3254 = vadd.f32 %v3141, %v3253
        %v3255 = vpop.f32.mrf.mxu0
        %v3256 = vadd.f32 %v3143, %v3255
        %3257 = vmatprep.mubr.bf16.mxu0 %v1477
        %3258 = vmatmul.mubr.bf16.gmra.mxu0 %v1476
        %v3259 = vpop.f32.mrf.mxu0
        %v3260 = vadd.f32 %v3147, %v3259
        %v3261 = vpop.f32.mrf.mxu0
        %v3262 = vadd.f32 %v3149, %v3261
        %v3263 = vpop.f32.mrf.mxu0
        %v3264 = vadd.f32 %v3151, %v3263
        %v3265 = vpop.f32.mrf.mxu0
        %v3266 = vadd.f32 %v3153, %v3265
        %3267 = vmatprep.mubr.bf16.mxu0 %v1485
        %3268 = vmatmul.mubr.bf16.gmra.mxu0 %v1484
        %v3269 = vpop.f32.mrf.mxu0
        %v3270 = vadd.f32 %v3157, %v3269
        %v3271 = vpop.f32.mrf.mxu0
        %v3272 = vadd.f32 %v3159, %v3271
        %v3273 = vpop.f32.mrf.mxu0
        %v3274 = vadd.f32 %v3161, %v3273
        %v3275 = vpop.f32.mrf.mxu0
        %v3276 = vadd.f32 %v3163, %v3275
        %3277 = vmatprep.mubr.bf16.mxu0 %v1493
        %3278 = vmatmul.mubr.bf16.gmra.mxu0 %v1492
        %v3279 = vpop.f32.mrf.mxu0
        %v3280 = vadd.f32 %v3167, %v3279
        %v3281 = vpop.f32.mrf.mxu0
        %v3282 = vadd.f32 %v3169, %v3281
        %v3283 = vpop.f32.mrf.mxu0
        %v3284 = vadd.f32 %v3171, %v3283
        %v3285 = vpop.f32.mrf.mxu0
        %v3286 = vadd.f32 %v3173, %v3285
        %3287 = vmatprep.mubr.bf16.mxu0 %v1501
        %3288 = vmatmul.mubr.bf16.gmra.mxu0 %v1500
        %v3289 = vpop.f32.mrf.mxu0
        %v3290 = vadd.f32 %v3177, %v3289
        %v3291 = vpop.f32.mrf.mxu0
        %v3292 = vadd.f32 %v3179, %v3291
        %v3293 = vpop.f32.mrf.mxu0
        %v3294 = vadd.f32 %v3181, %v3293
        %v3295 = vpop.f32.mrf.mxu0
        %v3296 = vadd.f32 %v3183, %v3295
        %3297 = vdwg.mxu0
        %3298 = vmatprep.subr.bf16.mxu0 %v2365
        %3299 = vmatpush1.bf16.msra.mxu0 %v2364
        %3300 = vmatprep.subr.bf16.mxu0 %v2361
        %3301 = vmatpush1.bf16.msra.mxu0 %v2360
        %3302 = vmatprep.subr.bf16.mxu0 %v2357
        %3303 = vmatpush1.bf16.msra.mxu0 %v2356
        %3304 = vmatprep.subr.bf16.mxu0 %v2353
        %3305 = vmatpush1.bf16.msra.mxu0 %v2352
        %3306 = vmatprep.subr.bf16.mxu0 %v2349
        %3307 = vmatpush1.bf16.msra.mxu0 %v2348
        %3308 = vmatprep.subr.bf16.mxu0 %v2345
        %3309 = vmatpush1.bf16.msra.mxu0 %v2344
        %3310 = vmatprep.subr.bf16.mxu0 %v2341
        %3311 = vmatpush1.bf16.msra.mxu0 %v2340
        %3312 = vmatprep.subr.bf16.mxu0 %v2337
        %3313 = vmatpush1.bf16.msra.mxu0 %v2336
        %3314 = vmatprep.subr.bf16.mxu0 %v2397
        %3315 = vmatpush2.bf16.msra.mxu0 %v2396
        %3316 = vmatprep.subr.bf16.mxu0 %v2393
        %3317 = vmatpush2.bf16.msra.mxu0 %v2392
        %3318 = vmatprep.subr.bf16.mxu0 %v2389
        %3319 = vmatpush2.bf16.msra.mxu0 %v2388
        %3320 = vmatprep.subr.bf16.mxu0 %v2385
        %3321 = vmatpush2.bf16.msra.mxu0 %v2384
        %3322 = vmatprep.subr.bf16.mxu0 %v2381
        %3323 = vmatpush2.bf16.msra.mxu0 %v2380
        %3324 = vmatprep.subr.bf16.mxu0 %v2377
        %3325 = vmatpush2.bf16.msra.mxu0 %v2376
        %3326 = vmatprep.subr.bf16.mxu0 %v2373
        %3327 = vmatpush2.bf16.msra.mxu0 %v2372
        %3328 = vmatprep.subr.bf16.mxu0 %v2369
        %3329 = vmatpush2.bf16.msra.mxu0 %v2368
        %3330 = vmatprep.mubr.bf16.mxu0 %v1439
        %3331 = vmatmul.mubr.bf16.gmra.mxu0 %v1438
        %v3332 = vpop.f32.mrf.mxu0
        %v3333 = vadd.f32 %v1169, %v3332
        %v3334 = vpop.f32.mrf.mxu0
        %v3335 = vadd.f32 %v1169, %v3334
        %v3336 = vpop.f32.mrf.mxu0
        %v3337 = vadd.f32 %v1174, %v3336
        %v3338 = vpop.f32.mrf.mxu0
        %v3339 = vadd.f32 %v1174, %v3338
        %3340 = vmatprep.mubr.bf16.mxu0 %v1447
        %3341 = vmatmul.mubr.bf16.gmra.mxu0 %v1446
        %v3342 = vpop.f32.mrf.mxu0
        %v3343 = vadd.f32 %v1179, %v3342
        %v3344 = vpop.f32.mrf.mxu0
        %v3345 = vadd.f32 %v1179, %v3344
        %v3346 = vpop.f32.mrf.mxu0
        %v3347 = vadd.f32 %v1184, %v3346
        %v3348 = vpop.f32.mrf.mxu0
        %v3349 = vadd.f32 %v1184, %v3348
        %3350 = vmatprep.mubr.bf16.mxu0 %v1455
        %3351 = vmatmul.mubr.bf16.gmra.mxu0 %v1454
        %v3352 = vpop.f32.mrf.mxu0
        %v3353 = vadd.f32 %v1189, %v3352
        %v3354 = vpop.f32.mrf.mxu0
        %v3355 = vadd.f32 %v1189, %v3354
        %v3356 = vpop.f32.mrf.mxu0
        %v3357 = vadd.f32 %v1194, %v3356
        %v3358 = vpop.f32.mrf.mxu0
        %v3359 = vadd.f32 %v1194, %v3358
        %3360 = vmatprep.mubr.bf16.mxu0 %v1463
        %3361 = vmatmul.mubr.bf16.gmra.mxu0 %v1462
        %v3362 = vpop.f32.mrf.mxu0
        %v3363 = vadd.f32 %v1199, %v3362
        %v3364 = vpop.f32.mrf.mxu0
        %v3365 = vadd.f32 %v1199, %v3364
        %v3366 = vpop.f32.mrf.mxu0
        %v3367 = vadd.f32 %v1204, %v3366
        %v3368 = vpop.f32.mrf.mxu0
        %v3369 = vadd.f32 %v1204, %v3368
        %3370 = vmatprep.mubr.bf16.mxu0 %v1471
        %3371 = vmatmul.mubr.bf16.gmra.mxu0 %v1470
        %v3372 = vpop.f32.mrf.mxu0
        %v3373 = vadd.f32 %v1209, %v3372
        %v3374 = vpop.f32.mrf.mxu0
        %v3375 = vadd.f32 %v1209, %v3374
        %v3376 = vpop.f32.mrf.mxu0
        %v3377 = vadd.f32 %v1214, %v3376
        %v3378 = vpop.f32.mrf.mxu0
        %v3379 = vadd.f32 %v1214, %v3378
        %3380 = vmatprep.mubr.bf16.mxu0 %v1479
        %3381 = vmatmul.mubr.bf16.gmra.mxu0 %v1478
        %v3382 = vpop.f32.mrf.mxu0
        %v3383 = vadd.f32 %v1219, %v3382
        %v3384 = vpop.f32.mrf.mxu0
        %v3385 = vadd.f32 %v1219, %v3384
        %v3386 = vpop.f32.mrf.mxu0
        %v3387 = vadd.f32 %v1224, %v3386
        %v3388 = vpop.f32.mrf.mxu0
        %v3389 = vadd.f32 %v1224, %v3388
        %3390 = vmatprep.mubr.bf16.mxu0 %v1487
        %3391 = vmatmul.mubr.bf16.gmra.mxu0 %v1486
        %v3392 = vpop.f32.mrf.mxu0
        %v3393 = vadd.f32 %v1229, %v3392
        %v3394 = vpop.f32.mrf.mxu0
        %v3395 = vadd.f32 %v1229, %v3394
        %v3396 = vpop.f32.mrf.mxu0
        %v3397 = vadd.f32 %v1234, %v3396
        %v3398 = vpop.f32.mrf.mxu0
        %v3399 = vadd.f32 %v1234, %v3398
        %3400 = vmatprep.mubr.bf16.mxu0 %v1495
        %3401 = vmatmul.mubr.bf16.gmra.mxu0 %v1494
        %v3402 = vpop.f32.mrf.mxu0
        %v3403 = vadd.f32 %v1239, %v3402
        %v3404 = vpop.f32.mrf.mxu0
        %v3405 = vadd.f32 %v1239, %v3404
        %v3406 = vpop.f32.mrf.mxu0
        %v3407 = vadd.f32 %v1244, %v3406
        %v3408 = vpop.f32.mrf.mxu0
        %v3409 = vadd.f32 %v1244, %v3408
        %3410 = vdwg.mxu0
        %3411 = vmatprep.subr.bf16.mxu0 %v2429
        %3412 = vmatpush1.bf16.msra.mxu0 %v2428
        %3413 = vmatprep.subr.bf16.mxu0 %v2425
        %3414 = vmatpush1.bf16.msra.mxu0 %v2424
        %3415 = vmatprep.subr.bf16.mxu0 %v2421
        %3416 = vmatpush1.bf16.msra.mxu0 %v2420
        %3417 = vmatprep.subr.bf16.mxu0 %v2417
        %3418 = vmatpush1.bf16.msra.mxu0 %v2416
        %3419 = vmatprep.subr.bf16.mxu0 %v2413
        %3420 = vmatpush1.bf16.msra.mxu0 %v2412
        %3421 = vmatprep.subr.bf16.mxu0 %v2409
        %3422 = vmatpush1.bf16.msra.mxu0 %v2408
        %3423 = vmatprep.subr.bf16.mxu0 %v2405
        %3424 = vmatpush1.bf16.msra.mxu0 %v2404
        %3425 = vmatprep.subr.bf16.mxu0 %v2401
        %3426 = vmatpush1.bf16.msra.mxu0 %v2400
        %3427 = vmatprep.subr.bf16.mxu0 %v2461
        %3428 = vmatpush2.bf16.msra.mxu0 %v2460
        %3429 = vmatprep.subr.bf16.mxu0 %v2457
        %3430 = vmatpush2.bf16.msra.mxu0 %v2456
        %3431 = vmatprep.subr.bf16.mxu0 %v2453
        %3432 = vmatpush2.bf16.msra.mxu0 %v2452
        %3433 = vmatprep.subr.bf16.mxu0 %v2449
        %3434 = vmatpush2.bf16.msra.mxu0 %v2448
        %3435 = vmatprep.subr.bf16.mxu0 %v2445
        %3436 = vmatpush2.bf16.msra.mxu0 %v2444
        %3437 = vmatprep.subr.bf16.mxu0 %v2441
        %3438 = vmatpush2.bf16.msra.mxu0 %v2440
        %3439 = vmatprep.subr.bf16.mxu0 %v2437
        %3440 = vmatpush2.bf16.msra.mxu0 %v2436
        %3441 = vmatprep.subr.bf16.mxu0 %v2433
        %3442 = vmatpush2.bf16.msra.mxu0 %v2432
        %3443 = vmatprep.mubr.bf16.mxu0 %v1441
        %3444 = vmatmul.mubr.bf16.gmra.mxu0 %v1440
        %v3445 = vpop.f32.mrf.mxu0
        %v3446 = vadd.f32 %v3333, %v3445
        %v3447 = vpop.f32.mrf.mxu0
        %v3448 = vadd.f32 %v3335, %v3447
        %v3449 = vpop.f32.mrf.mxu0
        %v3450 = vadd.f32 %v3337, %v3449
        %v3451 = vpop.f32.mrf.mxu0
        %v3452 = vadd.f32 %v3339, %v3451
        %3453 = vmatprep.mubr.bf16.mxu0 %v1449
        %3454 = vmatmul.mubr.bf16.gmra.mxu0 %v1448
        %v3455 = vpop.f32.mrf.mxu0
        %v3456 = vadd.f32 %v3343, %v3455
        %v3457 = vpop.f32.mrf.mxu0
        %v3458 = vadd.f32 %v3345, %v3457
        %v3459 = vpop.f32.mrf.mxu0
        %v3460 = vadd.f32 %v3347, %v3459
        %v3461 = vpop.f32.mrf.mxu0
        %v3462 = vadd.f32 %v3349, %v3461
        %3463 = vmatprep.mubr.bf16.mxu0 %v1457
        %3464 = vmatmul.mubr.bf16.gmra.mxu0 %v1456
        %v3465 = vpop.f32.mrf.mxu0
        %v3466 = vadd.f32 %v3353, %v3465
        %v3467 = vpop.f32.mrf.mxu0
        %v3468 = vadd.f32 %v3355, %v3467
        %v3469 = vpop.f32.mrf.mxu0
        %v3470 = vadd.f32 %v3357, %v3469
        %v3471 = vpop.f32.mrf.mxu0
        %v3472 = vadd.f32 %v3359, %v3471
        %3473 = vmatprep.mubr.bf16.mxu0 %v1465
        %3474 = vmatmul.mubr.bf16.gmra.mxu0 %v1464
        %v3475 = vpop.f32.mrf.mxu0
        %v3476 = vadd.f32 %v3363, %v3475
        %v3477 = vpop.f32.mrf.mxu0
        %v3478 = vadd.f32 %v3365, %v3477
        %v3479 = vpop.f32.mrf.mxu0
        %v3480 = vadd.f32 %v3367, %v3479
        %v3481 = vpop.f32.mrf.mxu0
        %v3482 = vadd.f32 %v3369, %v3481
        %3483 = vmatprep.mubr.bf16.mxu0 %v1473
        %3484 = vmatmul.mubr.bf16.gmra.mxu0 %v1472
        %v3485 = vpop.f32.mrf.mxu0
        %v3486 = vadd.f32 %v3373, %v3485
        %v3487 = vpop.f32.mrf.mxu0
        %v3488 = vadd.f32 %v3375, %v3487
        %v3489 = vpop.f32.mrf.mxu0
        %v3490 = vadd.f32 %v3377, %v3489
        %v3491 = vpop.f32.mrf.mxu0
        %v3492 = vadd.f32 %v3379, %v3491
        %3493 = vmatprep.mubr.bf16.mxu0 %v1481
        %3494 = vmatmul.mubr.bf16.gmra.mxu0 %v1480
        %v3495 = vpop.f32.mrf.mxu0
        %v3496 = vadd.f32 %v3383, %v3495
        %v3497 = vpop.f32.mrf.mxu0
        %v3498 = vadd.f32 %v3385, %v3497
        %v3499 = vpop.f32.mrf.mxu0
        %v3500 = vadd.f32 %v3387, %v3499
        %v3501 = vpop.f32.mrf.mxu0
        %v3502 = vadd.f32 %v3389, %v3501
        %3503 = vmatprep.mubr.bf16.mxu0 %v1489
        %3504 = vmatmul.mubr.bf16.gmra.mxu0 %v1488
        %v3505 = vpop.f32.mrf.mxu0
        %v3506 = vadd.f32 %v3393, %v3505
        %v3507 = vpop.f32.mrf.mxu0
        %v3508 = vadd.f32 %v3395, %v3507
        %v3509 = vpop.f32.mrf.mxu0
        %v3510 = vadd.f32 %v3397, %v3509
        %v3511 = vpop.f32.mrf.mxu0
        %v3512 = vadd.f32 %v3399, %v3511
        %3513 = vmatprep.mubr.bf16.mxu0 %v1497
        %3514 = vmatmul.mubr.bf16.gmra.mxu0 %v1496
        %v3515 = vpop.f32.mrf.mxu0
        %v3516 = vadd.f32 %v3403, %v3515
        %v3517 = vpop.f32.mrf.mxu0
        %v3518 = vadd.f32 %v3405, %v3517
        %v3519 = vpop.f32.mrf.mxu0
        %v3520 = vadd.f32 %v3407, %v3519
        %v3521 = vpop.f32.mrf.mxu0
        %v3522 = vadd.f32 %v3409, %v3521
        %3523 = vdwg.mxu0
        %3524 = vmatprep.subr.bf16.mxu0 %v2493
        %3525 = vmatpush1.bf16.msra.mxu0 %v2492
        %3526 = vmatprep.subr.bf16.mxu0 %v2489
        %3527 = vmatpush1.bf16.msra.mxu0 %v2488
        %3528 = vmatprep.subr.bf16.mxu0 %v2485
        %3529 = vmatpush1.bf16.msra.mxu0 %v2484
        %3530 = vmatprep.subr.bf16.mxu0 %v2481
        %3531 = vmatpush1.bf16.msra.mxu0 %v2480
        %3532 = vmatprep.subr.bf16.mxu0 %v2477
        %3533 = vmatpush1.bf16.msra.mxu0 %v2476
        %3534 = vmatprep.subr.bf16.mxu0 %v2473
        %3535 = vmatpush1.bf16.msra.mxu0 %v2472
        %3536 = vmatprep.subr.bf16.mxu0 %v2469
        %3537 = vmatpush1.bf16.msra.mxu0 %v2468
        %3538 = vmatprep.subr.bf16.mxu0 %v2465
        %3539 = vmatpush1.bf16.msra.mxu0 %v2464
        %3540 = vmatprep.subr.bf16.mxu0 %v2525
        %3541 = vmatpush2.bf16.msra.mxu0 %v2524
        %3542 = vmatprep.subr.bf16.mxu0 %v2521
        %3543 = vmatpush2.bf16.msra.mxu0 %v2520
        %3544 = vmatprep.subr.bf16.mxu0 %v2517
        %3545 = vmatpush2.bf16.msra.mxu0 %v2516
        %3546 = vmatprep.subr.bf16.mxu0 %v2513
        %3547 = vmatpush2.bf16.msra.mxu0 %v2512
        %3548 = vmatprep.subr.bf16.mxu0 %v2509
        %3549 = vmatpush2.bf16.msra.mxu0 %v2508
        %3550 = vmatprep.subr.bf16.mxu0 %v2505
        %3551 = vmatpush2.bf16.msra.mxu0 %v2504
        %3552 = vmatprep.subr.bf16.mxu0 %v2501
        %3553 = vmatpush2.bf16.msra.mxu0 %v2500
        %3554 = vmatprep.subr.bf16.mxu0 %v2497
        %3555 = vmatpush2.bf16.msra.mxu0 %v2496
        %3556 = vmatprep.mubr.bf16.mxu0 %v1443
        %3557 = vmatmul.mubr.bf16.gmra.mxu0 %v1442
        %v3558 = vpop.f32.mrf.mxu0
        %v3559 = vadd.f32 %v3446, %v3558
        %v3560 = vpop.f32.mrf.mxu0
        %v3561 = vadd.f32 %v3448, %v3560
        %v3562 = vpop.f32.mrf.mxu0
        %v3563 = vadd.f32 %v3450, %v3562
        %v3564 = vpop.f32.mrf.mxu0
        %v3565 = vadd.f32 %v3452, %v3564
        %3566 = vmatprep.mubr.bf16.mxu0 %v1451
        %3567 = vmatmul.mubr.bf16.gmra.mxu0 %v1450
        %v3568 = vpop.f32.mrf.mxu0
        %v3569 = vadd.f32 %v3456, %v3568
        %v3570 = vpop.f32.mrf.mxu0
        %v3571 = vadd.f32 %v3458, %v3570
        %v3572 = vpop.f32.mrf.mxu0
        %v3573 = vadd.f32 %v3460, %v3572
        %v3574 = vpop.f32.mrf.mxu0
        %v3575 = vadd.f32 %v3462, %v3574
        %3576 = vmatprep.mubr.bf16.mxu0 %v1459
        %3577 = vmatmul.mubr.bf16.gmra.mxu0 %v1458
        %v3578 = vpop.f32.mrf.mxu0
        %v3579 = vadd.f32 %v3466, %v3578
        %v3580 = vpop.f32.mrf.mxu0
        %v3581 = vadd.f32 %v3468, %v3580
        %v3582 = vpop.f32.mrf.mxu0
        %v3583 = vadd.f32 %v3470, %v3582
        %v3584 = vpop.f32.mrf.mxu0
        %v3585 = vadd.f32 %v3472, %v3584
        %3586 = vmatprep.mubr.bf16.mxu0 %v1467
        %3587 = vmatmul.mubr.bf16.gmra.mxu0 %v1466
        %v3588 = vpop.f32.mrf.mxu0
        %v3589 = vadd.f32 %v3476, %v3588
        %v3590 = vpop.f32.mrf.mxu0
        %v3591 = vadd.f32 %v3478, %v3590
        %v3592 = vpop.f32.mrf.mxu0
        %v3593 = vadd.f32 %v3480, %v3592
        %v3594 = vpop.f32.mrf.mxu0
        %v3595 = vadd.f32 %v3482, %v3594
        %3596 = vmatprep.mubr.bf16.mxu0 %v1475
        %3597 = vmatmul.mubr.bf16.gmra.mxu0 %v1474
        %v3598 = vpop.f32.mrf.mxu0
        %v3599 = vadd.f32 %v3486, %v3598
        %v3600 = vpop.f32.mrf.mxu0
        %v3601 = vadd.f32 %v3488, %v3600
        %v3602 = vpop.f32.mrf.mxu0
        %v3603 = vadd.f32 %v3490, %v3602
        %v3604 = vpop.f32.mrf.mxu0
        %v3605 = vadd.f32 %v3492, %v3604
        %3606 = vmatprep.mubr.bf16.mxu0 %v1483
        %3607 = vmatmul.mubr.bf16.gmra.mxu0 %v1482
        %v3608 = vpop.f32.mrf.mxu0
        %v3609 = vadd.f32 %v3496, %v3608
        %v3610 = vpop.f32.mrf.mxu0
        %v3611 = vadd.f32 %v3498, %v3610
        %v3612 = vpop.f32.mrf.mxu0
        %v3613 = vadd.f32 %v3500, %v3612
        %v3614 = vpop.f32.mrf.mxu0
        %v3615 = vadd.f32 %v3502, %v3614
        %3616 = vmatprep.mubr.bf16.mxu0 %v1491
        %3617 = vmatmul.mubr.bf16.gmra.mxu0 %v1490
        %v3618 = vpop.f32.mrf.mxu0
        %v3619 = vadd.f32 %v3506, %v3618
        %v3620 = vpop.f32.mrf.mxu0
        %v3621 = vadd.f32 %v3508, %v3620
        %v3622 = vpop.f32.mrf.mxu0
        %v3623 = vadd.f32 %v3510, %v3622
        %v3624 = vpop.f32.mrf.mxu0
        %v3625 = vadd.f32 %v3512, %v3624
        %3626 = vmatprep.mubr.bf16.mxu0 %v1499
        %3627 = vmatmul.mubr.bf16.gmra.mxu0 %v1498
        %v3628 = vpop.f32.mrf.mxu0
        %v3629 = vadd.f32 %v3516, %v3628
        %v3630 = vpop.f32.mrf.mxu0
        %v3631 = vadd.f32 %v3518, %v3630
        %v3632 = vpop.f32.mrf.mxu0
        %v3633 = vadd.f32 %v3520, %v3632
        %v3634 = vpop.f32.mrf.mxu0
        %v3635 = vadd.f32 %v3522, %v3634
        %3636 = vdwg.mxu0
        %3637 = vmatprep.subr.bf16.mxu0 %v2557
        %3638 = vmatpush1.bf16.msra.mxu0 %v2556
        %3639 = vmatprep.subr.bf16.mxu0 %v2553
        %3640 = vmatpush1.bf16.msra.mxu0 %v2552
        %3641 = vmatprep.subr.bf16.mxu0 %v2549
        %3642 = vmatpush1.bf16.msra.mxu0 %v2548
        %3643 = vmatprep.subr.bf16.mxu0 %v2545
        %3644 = vmatpush1.bf16.msra.mxu0 %v2544
        %3645 = vmatprep.subr.bf16.mxu0 %v2541
        %3646 = vmatpush1.bf16.msra.mxu0 %v2540
        %3647 = vmatprep.subr.bf16.mxu0 %v2537
        %3648 = vmatpush1.bf16.msra.mxu0 %v2536
        %3649 = vmatprep.subr.bf16.mxu0 %v2533
        %3650 = vmatpush1.bf16.msra.mxu0 %v2532
        %3651 = vmatprep.subr.bf16.mxu0 %v2529
        %3652 = vmatpush1.bf16.msra.mxu0 %v2528
        %3653 = vmatprep.subr.bf16.mxu0 %v2589
        %3654 = vmatpush2.bf16.msra.mxu0 %v2588
        %3655 = vmatprep.subr.bf16.mxu0 %v2585
        %3656 = vmatpush2.bf16.msra.mxu0 %v2584
        %3657 = vmatprep.subr.bf16.mxu0 %v2581
        %3658 = vmatpush2.bf16.msra.mxu0 %v2580
        %3659 = vmatprep.subr.bf16.mxu0 %v2577
        %3660 = vmatpush2.bf16.msra.mxu0 %v2576
        %3661 = vmatprep.subr.bf16.mxu0 %v2573
        %3662 = vmatpush2.bf16.msra.mxu0 %v2572
        %3663 = vmatprep.subr.bf16.mxu0 %v2569
        %3664 = vmatpush2.bf16.msra.mxu0 %v2568
        %3665 = vmatprep.subr.bf16.mxu0 %v2565
        %3666 = vmatpush2.bf16.msra.mxu0 %v2564
        %3667 = vmatprep.subr.bf16.mxu0 %v2561
        %3668 = vmatpush2.bf16.msra.mxu0 %v2560
        %3669 = vmatprep.mubr.bf16.mxu0 %v1445
        %3670 = vmatmul.mubr.bf16.gmra.mxu0 %v1444
        %v3671 = vpop.f32.mrf.mxu0
        %v3672 = vadd.f32 %v3559, %v3671
        %v3673 = vpop.f32.mrf.mxu0
        %v3674 = vadd.f32 %v3561, %v3673
        %v3675 = vpop.f32.mrf.mxu0
        %v3676 = vadd.f32 %v3563, %v3675
        %v3677 = vpop.f32.mrf.mxu0
        %v3678 = vadd.f32 %v3565, %v3677
        %3679 = vmatprep.mubr.bf16.mxu0 %v1453
        %3680 = vmatmul.mubr.bf16.gmra.mxu0 %v1452
        %v3681 = vpop.f32.mrf.mxu0
        %v3682 = vadd.f32 %v3569, %v3681
        %v3683 = vpop.f32.mrf.mxu0
        %v3684 = vadd.f32 %v3571, %v3683
        %v3685 = vpop.f32.mrf.mxu0
        %v3686 = vadd.f32 %v3573, %v3685
        %v3687 = vpop.f32.mrf.mxu0
        %v3688 = vadd.f32 %v3575, %v3687
        %3689 = vmatprep.mubr.bf16.mxu0 %v1461
        %3690 = vmatmul.mubr.bf16.gmra.mxu0 %v1460
        %v3691 = vpop.f32.mrf.mxu0
        %v3692 = vadd.f32 %v3579, %v3691
        %v3693 = vpop.f32.mrf.mxu0
        %v3694 = vadd.f32 %v3581, %v3693
        %v3695 = vpop.f32.mrf.mxu0
        %v3696 = vadd.f32 %v3583, %v3695
        %v3697 = vpop.f32.mrf.mxu0
        %v3698 = vadd.f32 %v3585, %v3697
        %3699 = vmatprep.mubr.bf16.mxu0 %v1469
        %3700 = vmatmul.mubr.bf16.gmra.mxu0 %v1468
        %v3701 = vpop.f32.mrf.mxu0
        %v3702 = vadd.f32 %v3589, %v3701
        %v3703 = vpop.f32.mrf.mxu0
        %v3704 = vadd.f32 %v3591, %v3703
        %v3705 = vpop.f32.mrf.mxu0
        %v3706 = vadd.f32 %v3593, %v3705
        %v3707 = vpop.f32.mrf.mxu0
        %v3708 = vadd.f32 %v3595, %v3707
        %3709 = vmatprep.mubr.bf16.mxu0 %v1477
        %3710 = vmatmul.mubr.bf16.gmra.mxu0 %v1476
        %v3711 = vpop.f32.mrf.mxu0
        %v3712 = vadd.f32 %v3599, %v3711
        %v3713 = vpop.f32.mrf.mxu0
        %v3714 = vadd.f32 %v3601, %v3713
        %v3715 = vpop.f32.mrf.mxu0
        %v3716 = vadd.f32 %v3603, %v3715
        %v3717 = vpop.f32.mrf.mxu0
        %v3718 = vadd.f32 %v3605, %v3717
        %3719 = vmatprep.mubr.bf16.mxu0 %v1485
        %3720 = vmatmul.mubr.bf16.gmra.mxu0 %v1484
        %v3721 = vpop.f32.mrf.mxu0
        %v3722 = vadd.f32 %v3609, %v3721
        %v3723 = vpop.f32.mrf.mxu0
        %v3724 = vadd.f32 %v3611, %v3723
        %v3725 = vpop.f32.mrf.mxu0
        %v3726 = vadd.f32 %v3613, %v3725
        %v3727 = vpop.f32.mrf.mxu0
        %v3728 = vadd.f32 %v3615, %v3727
        %3729 = vmatprep.mubr.bf16.mxu0 %v1493
        %3730 = vmatmul.mubr.bf16.gmra.mxu0 %v1492
        %v3731 = vpop.f32.mrf.mxu0
        %v3732 = vadd.f32 %v3619, %v3731
        %v3733 = vpop.f32.mrf.mxu0
        %v3734 = vadd.f32 %v3621, %v3733
        %v3735 = vpop.f32.mrf.mxu0
        %v3736 = vadd.f32 %v3623, %v3735
        %v3737 = vpop.f32.mrf.mxu0
        %v3738 = vadd.f32 %v3625, %v3737
        %3739 = vmatprep.mubr.bf16.mxu0 %v1501
        %3740 = vmatmul.mubr.bf16.gmra.mxu0 %v1500
        %v3741 = vpop.f32.mrf.mxu0
        %v3742 = vadd.f32 %v3629, %v3741
        %v3743 = vpop.f32.mrf.mxu0
        %v3744 = vadd.f32 %v3631, %v3743
        %v3745 = vpop.f32.mrf.mxu0
        %v3746 = vadd.f32 %v3633, %v3745
        %v3747 = vpop.f32.mrf.mxu0
        %v3748 = vadd.f32 %v3635, %v3747
        %3749 = vdwg.mxu0
        %v3750 = vxor.u32 %v3220, 2147483648
        %v3751 = vxor.u32 %v3222, 2147483648
        %v3752 = vxor.u32 %v3672, 2147483648
        %v3753 = vxor.u32 %v3674, 2147483648
        %v3754 = vxor.u32 %v3224, 2147483648
        %v3755 = vxor.u32 %v3226, 2147483648
        %v3756 = vxor.u32 %v3676, 2147483648
        %v3757 = vxor.u32 %v3678, 2147483648
        %v3758 = vxor.u32 %v3230, 2147483648
        %v3759 = vxor.u32 %v3232, 2147483648
        %v3760 = vxor.u32 %v3682, 2147483648
        %v3761 = vxor.u32 %v3684, 2147483648
        %v3762 = vxor.u32 %v3234, 2147483648
        %v3763 = vxor.u32 %v3236, 2147483648
        %v3764 = vxor.u32 %v3686, 2147483648
        %v3765 = vxor.u32 %v3688, 2147483648
        %v3766 = vmul.f32 %v3750, 1.442695
        %v3767 = vpow.pop %v3766
        %v3768 = vmul.f32 %v3751, 1.442695
        %v3769 = vpow.pop %v3768
        %v3770 = vmul.f32 %v3752, 1.442695
        %v3771 = vpow.pop %v3770
        %v3772 = vmul.f32 %v3753, 1.442695
        %v3773 = vpow.pop %v3772
        %v3774 = vmul.f32 %v3754, 1.442695
        %v3775 = vpow.pop %v3774
        %v3776 = vmul.f32 %v3755, 1.442695
        %v3777 = vpow.pop %v3776
        %v3778 = vmul.f32 %v3756, 1.442695
        %v3779 = vpow.pop %v3778
        %v3780 = vmul.f32 %v3757, 1.442695
        %v3781 = vpow.pop %v3780
        %v3782 = vmul.f32 %v3758, 1.442695
        %v3783 = vpow.pop %v3782
        %v3784 = vmul.f32 %v3759, 1.442695
        %v3785 = vpow.pop %v3784
        %v3786 = vmul.f32 %v3760, 1.442695
        %v3787 = vpow.pop %v3786
        %v3788 = vmul.f32 %v3761, 1.442695
        %v3789 = vpow.pop %v3788
        %v3790 = vmul.f32 %v3762, 1.442695
        %v3791 = vpow.pop %v3790
        %v3792 = vmul.f32 %v3763, 1.442695
        %v3793 = vpow.pop %v3792
        %v3794 = vmul.f32 %v3764, 1.442695
        %v3795 = vpow.pop %v3794
        %v3796 = vmul.f32 %v3765, 1.442695
        %v3797 = vpow.pop %v3796
        %v3798 = vadd.f32 %v3767, 1.0
        %v3799 = vadd.f32 %v3769, 1.0
        %v3800 = vadd.f32 %v3771, 1.0
        %v3801 = vadd.f32 %v3773, 1.0
        %v3802 = vadd.f32 %v3775, 1.0
        %v3803 = vadd.f32 %v3777, 1.0
        %v3804 = vadd.f32 %v3779, 1.0
        %v3805 = vadd.f32 %v3781, 1.0
        %v3806 = vadd.f32 %v3783, 1.0
        %v3807 = vadd.f32 %v3785, 1.0
        %v3808 = vadd.f32 %v3787, 1.0
        %v3809 = vadd.f32 %v3789, 1.0
        %v3810 = vadd.f32 %v3791, 1.0
        %v3811 = vadd.f32 %v3793, 1.0
        %v3812 = vadd.f32 %v3795, 1.0
        %v3813 = vadd.f32 %v3797, 1.0
        %v3814 = vrcp.pop %v3798
        %v3815 = vmul.f32 1.0, %v3814
        %v3816 = vrcp.pop %v3799
        %v3817 = vmul.f32 1.0, %v3816
        %v3818 = vrcp.pop %v3800
        %v3819 = vmul.f32 1.0, %v3818
        %v3820 = vrcp.pop %v3801
        %v3821 = vmul.f32 1.0, %v3820
        %v3822 = vrcp.pop %v3802
        %v3823 = vmul.f32 1.0, %v3822
        %v3824 = vrcp.pop %v3803
        %v3825 = vmul.f32 1.0, %v3824
        %v3826 = vrcp.pop %v3804
        %v3827 = vmul.f32 1.0, %v3826
        %v3828 = vrcp.pop %v3805
        %v3829 = vmul.f32 1.0, %v3828
        %v3830 = vrcp.pop %v3806
        %v3831 = vmul.f32 1.0, %v3830
        %v3832 = vrcp.pop %v3807
        %v3833 = vmul.f32 1.0, %v3832
        %v3834 = vrcp.pop %v3808
        %v3835 = vmul.f32 1.0, %v3834
        %v3836 = vrcp.pop %v3809
        %v3837 = vmul.f32 1.0, %v3836
        %v3838 = vrcp.pop %v3810
        %v3839 = vmul.f32 1.0, %v3838
        %v3840 = vrcp.pop %v3811
        %v3841 = vmul.f32 1.0, %v3840
        %v3842 = vrcp.pop %v3812
        %v3843 = vmul.f32 1.0, %v3842
        %v3844 = vrcp.pop %v3813
        %v3845 = vmul.f32 1.0, %v3844
        %v3846 = vxor.u32 %v3240, 2147483648
        %v3847 = vxor.u32 %v3242, 2147483648
        %v3848 = vxor.u32 %v3692, 2147483648
        %v3849 = vxor.u32 %v3694, 2147483648
        %v3850 = vxor.u32 %v3244, 2147483648
        %v3851 = vxor.u32 %v3246, 2147483648
        %v3852 = vxor.u32 %v3696, 2147483648
        %v3853 = vxor.u32 %v3698, 2147483648
        %v3854 = vxor.u32 %v3250, 2147483648
        %v3855 = vxor.u32 %v3252, 2147483648
        %v3856 = vxor.u32 %v3702, 2147483648
        %v3857 = vxor.u32 %v3704, 2147483648
        %v3858 = vxor.u32 %v3254, 2147483648
        %v3859 = vxor.u32 %v3256, 2147483648
        %v3860 = vxor.u32 %v3706, 2147483648
        %v3861 = vxor.u32 %v3708, 2147483648
        %v3862 = vmul.f32 %v3846, 1.442695
        %v3863 = vpow.pop %v3862
        %v3864 = vmul.f32 %v3847, 1.442695
        %v3865 = vpow.pop %v3864
        %v3866 = vmul.f32 %v3848, 1.442695
        %v3867 = vpow.pop %v3866
        %v3868 = vmul.f32 %v3849, 1.442695
        %v3869 = vpow.pop %v3868
        %v3870 = vmul.f32 %v3850, 1.442695
        %v3871 = vpow.pop %v3870
        %v3872 = vmul.f32 %v3851, 1.442695
        %v3873 = vpow.pop %v3872
        %v3874 = vmul.f32 %v3852, 1.442695
        %v3875 = vpow.pop %v3874
        %v3876 = vmul.f32 %v3853, 1.442695
        %v3877 = vpow.pop %v3876
        %v3878 = vmul.f32 %v3854, 1.442695
        %v3879 = vpow.pop %v3878
        %v3880 = vmul.f32 %v3855, 1.442695
        %v3881 = vpow.pop %v3880
        %v3882 = vmul.f32 %v3856, 1.442695
        %v3883 = vpow.pop %v3882
        %v3884 = vmul.f32 %v3857, 1.442695
        %v3885 = vpow.pop %v3884
        %v3886 = vmul.f32 %v3858, 1.442695
        %v3887 = vpow.pop %v3886
        %v3888 = vmul.f32 %v3859, 1.442695
        %v3889 = vpow.pop %v3888
        %v3890 = vmul.f32 %v3860, 1.442695
        %v3891 = vpow.pop %v3890
        %v3892 = vmul.f32 %v3861, 1.442695
        %v3893 = vpow.pop %v3892
        %v3894 = vadd.f32 %v3863, 1.0
        %v3895 = vadd.f32 %v3865, 1.0
        %v3896 = vadd.f32 %v3867, 1.0
        %v3897 = vadd.f32 %v3869, 1.0
        %v3898 = vadd.f32 %v3871, 1.0
        %v3899 = vadd.f32 %v3873, 1.0
        %v3900 = vadd.f32 %v3875, 1.0
        %v3901 = vadd.f32 %v3877, 1.0
        %v3902 = vadd.f32 %v3879, 1.0
        %v3903 = vadd.f32 %v3881, 1.0
        %v3904 = vadd.f32 %v3883, 1.0
        %v3905 = vadd.f32 %v3885, 1.0
        %v3906 = vadd.f32 %v3887, 1.0
        %v3907 = vadd.f32 %v3889, 1.0
        %v3908 = vadd.f32 %v3891, 1.0
        %v3909 = vadd.f32 %v3893, 1.0
        %v3910 = vrcp.pop %v3894
        %v3911 = vmul.f32 1.0, %v3910
        %v3912 = vrcp.pop %v3895
        %v3913 = vmul.f32 1.0, %v3912
        %v3914 = vrcp.pop %v3896
        %v3915 = vmul.f32 1.0, %v3914
        %v3916 = vrcp.pop %v3897
        %v3917 = vmul.f32 1.0, %v3916
        %v3918 = vrcp.pop %v3898
        %v3919 = vmul.f32 1.0, %v3918
        %v3920 = vrcp.pop %v3899
        %v3921 = vmul.f32 1.0, %v3920
        %v3922 = vrcp.pop %v3900
        %v3923 = vmul.f32 1.0, %v3922
        %v3924 = vrcp.pop %v3901
        %v3925 = vmul.f32 1.0, %v3924
        %v3926 = vrcp.pop %v3902
        %v3927 = vmul.f32 1.0, %v3926
        %v3928 = vrcp.pop %v3903
        %v3929 = vmul.f32 1.0, %v3928
        %v3930 = vrcp.pop %v3904
        %v3931 = vmul.f32 1.0, %v3930
        %v3932 = vrcp.pop %v3905
        %v3933 = vmul.f32 1.0, %v3932
        %v3934 = vrcp.pop %v3906
        %v3935 = vmul.f32 1.0, %v3934
        %v3936 = vrcp.pop %v3907
        %v3937 = vmul.f32 1.0, %v3936
        %v3938 = vrcp.pop %v3908
        %v3939 = vmul.f32 1.0, %v3938
        %v3940 = vrcp.pop %v3909
        %v3941 = vmul.f32 1.0, %v3940
        %v3942 = vtanh.pop %v3260
        %v3943 = vtanh.pop %v3262
        %v3944 = vtanh.pop %v3712
        %v3945 = vtanh.pop %v3714
        %v3946 = vtanh.pop %v3264
        %v3947 = vtanh.pop %v3266
        %v3948 = vtanh.pop %v3716
        %v3949 = vtanh.pop %v3718
        %v3950 = vtanh.pop %v3270
        %v3951 = vtanh.pop %v3272
        %v3952 = vtanh.pop %v3722
        %v3953 = vtanh.pop %v3724
        %v3954 = vtanh.pop %v3274
        %v3955 = vtanh.pop %v3276
        %v3956 = vtanh.pop %v3726
        %v3957 = vtanh.pop %v3728
        %v3958 = vxor.u32 %v3280, 2147483648
        %v3959 = vxor.u32 %v3282, 2147483648
        %v3960 = vxor.u32 %v3732, 2147483648
        %v3961 = vxor.u32 %v3734, 2147483648
        %v3962 = vxor.u32 %v3284, 2147483648
        %v3963 = vxor.u32 %v3286, 2147483648
        %v3964 = vxor.u32 %v3736, 2147483648
        %v3965 = vxor.u32 %v3738, 2147483648
        %v3966 = vxor.u32 %v3290, 2147483648
        %v3967 = vxor.u32 %v3292, 2147483648
        %v3968 = vxor.u32 %v3742, 2147483648
        %v3969 = vxor.u32 %v3744, 2147483648
        %v3970 = vxor.u32 %v3294, 2147483648
        %v3971 = vxor.u32 %v3296, 2147483648
        %v3972 = vxor.u32 %v3746, 2147483648
        %v3973 = vxor.u32 %v3748, 2147483648
        %v3974 = vmul.f32 %v3958, 1.442695
        %v3975 = vpow.pop %v3974
        %v3976 = vmul.f32 %v3959, 1.442695
        %v3977 = vpow.pop %v3976
        %v3978 = vmul.f32 %v3960, 1.442695
        %v3979 = vpow.pop %v3978
        %v3980 = vmul.f32 %v3961, 1.442695
        %v3981 = vpow.pop %v3980
        %v3982 = vmul.f32 %v3962, 1.442695
        %v3983 = vpow.pop %v3982
        %v3984 = vmul.f32 %v3963, 1.442695
        %v3985 = vpow.pop %v3984
        %v3986 = vmul.f32 %v3964, 1.442695
        %v3987 = vpow.pop %v3986
        %v3988 = vmul.f32 %v3965, 1.442695
        %v3989 = vpow.pop %v3988
        %v3990 = vmul.f32 %v3966, 1.442695
        %v3991 = vpow.pop %v3990
        %v3992 = vmul.f32 %v3967, 1.442695
        %v3993 = vpow.pop %v3992
        %v3994 = vmul.f32 %v3968, 1.442695
        %v3995 = vpow.pop %v3994
        %v3996 = vmul.f32 %v3969, 1.442695
        %v3997 = vpow.pop %v3996
        %v3998 = vmul.f32 %v3970, 1.442695
        %v3999 = vpow.pop %v3998
        %v4000 = vmul.f32 %v3971, 1.442695
        %v4001 = vpow.pop %v4000
        %v4002 = vmul.f32 %v3972, 1.442695
        %v4003 = vpow.pop %v4002
        %v4004 = vmul.f32 %v3973, 1.442695
        %v4005 = vpow.pop %v4004
        %v4006 = vadd.f32 %v3975, 1.0
        %v4007 = vadd.f32 %v3977, 1.0
        %v4008 = vadd.f32 %v3979, 1.0
        %v4009 = vadd.f32 %v3981, 1.0
        %v4010 = vadd.f32 %v3983, 1.0
        %v4011 = vadd.f32 %v3985, 1.0
        %v4012 = vadd.f32 %v3987, 1.0
        %v4013 = vadd.f32 %v3989, 1.0
        %v4014 = vadd.f32 %v3991, 1.0
        %v4015 = vadd.f32 %v3993, 1.0
        %v4016 = vadd.f32 %v3995, 1.0
        %v4017 = vadd.f32 %v3997, 1.0
        %v4018 = vadd.f32 %v3999, 1.0
        %v4019 = vadd.f32 %v4001, 1.0
        %v4020 = vadd.f32 %v4003, 1.0
        %v4021 = vadd.f32 %v4005, 1.0
        %v4022 = vrcp.pop %v4006
        %v4023 = vmul.f32 1.0, %v4022
        %v4024 = vrcp.pop %v4007
        %v4025 = vmul.f32 1.0, %v4024
        %v4026 = vrcp.pop %v4008
        %v4027 = vmul.f32 1.0, %v4026
        %v4028 = vrcp.pop %v4009
        %v4029 = vmul.f32 1.0, %v4028
        %v4030 = vrcp.pop %v4010
        %v4031 = vmul.f32 1.0, %v4030
        %v4032 = vrcp.pop %v4011
        %v4033 = vmul.f32 1.0, %v4032
        %v4034 = vrcp.pop %v4012
        %v4035 = vmul.f32 1.0, %v4034
        %v4036 = vrcp.pop %v4013
        %v4037 = vmul.f32 1.0, %v4036
        %v4038 = vrcp.pop %v4014
        %v4039 = vmul.f32 1.0, %v4038
        %v4040 = vrcp.pop %v4015
        %v4041 = vmul.f32 1.0, %v4040
        %v4042 = vrcp.pop %v4016
        %v4043 = vmul.f32 1.0, %v4042
        %v4044 = vrcp.pop %v4017
        %v4045 = vmul.f32 1.0, %v4044
        %v4046 = vrcp.pop %v4018
        %v4047 = vmul.f32 1.0, %v4046
        %v4048 = vrcp.pop %v4019
        %v4049 = vmul.f32 1.0, %v4048
        %v4050 = vrcp.pop %v4020
        %v4051 = vmul.f32 1.0, %v4050
        %v4052 = vrcp.pop %v4021
        %v4053 = vmul.f32 1.0, %v4052
        %v4054 = vld [vmem:[%s794] sm:$0xff]
        %v4055 = vld [vmem:[%s794 + $0x8] sm:$0xff]
        %v4056 = vld [vmem:[%s794 + $0x10] sm:$0xff]
        %v4057 = vld [vmem:[%s794 + $0x18] sm:$0xff]
        %v4058 = vld [vmem:[%s794 + $0x20] sm:$0xff]
        %v4059 = vld [vmem:[%s794 + $0x28] sm:$0xff]
        %v4060 = vld [vmem:[%s794 + $0x30] sm:$0xff]
        %v4061 = vld [vmem:[%s794 + $0x38] sm:$0xff]
        %v4062 = vld [vmem:[%s794 + $0x40] sm:$0xff]
        %v4063 = vld [vmem:[%s794 + $0x48] sm:$0xff]
        %v4064 = vld [vmem:[%s794 + $0x50] sm:$0xff]
        %v4065 = vld [vmem:[%s794 + $0x58] sm:$0xff]
        %v4066 = vld [vmem:[%s794 + $0x60] sm:$0xff]
        %v4067 = vld [vmem:[%s794 + $0x68] sm:$0xff]
        %v4068 = vld [vmem:[%s794 + $0x70] sm:$0xff]
        %v4069 = vld [vmem:[%s794 + $0x78] sm:$0xff]
        %v4070 = vmul.f32 %v3911, %v4054
        %v4071 = vmul.f32 %v3913, %v4055
        %v4072 = vmul.f32 %v3915, %v4056
        %v4073 = vmul.f32 %v3917, %v4057
        %v4074 = vmul.f32 %v3919, %v4058
        %v4075 = vmul.f32 %v3921, %v4059
        %v4076 = vmul.f32 %v3923, %v4060
        %v4077 = vmul.f32 %v3925, %v4061
        %v4078 = vmul.f32 %v3927, %v4062
        %v4079 = vmul.f32 %v3929, %v4063
        %v4080 = vmul.f32 %v3931, %v4064
        %v4081 = vmul.f32 %v3933, %v4065
        %v4082 = vmul.f32 %v3935, %v4066
        %v4083 = vmul.f32 %v3937, %v4067
        %v4084 = vmul.f32 %v3939, %v4068
        %v4085 = vmul.f32 %v3941, %v4069
        %v4086 = vmul.f32 %v3815, %v3942
        %v4087 = vmul.f32 %v3817, %v3943
        %v4088 = vmul.f32 %v3819, %v3944
        %v4089 = vmul.f32 %v3821, %v3945
        %v4090 = vmul.f32 %v3823, %v3946
        %v4091 = vmul.f32 %v3825, %v3947
        %v4092 = vmul.f32 %v3827, %v3948
        %v4093 = vmul.f32 %v3829, %v3949
        %v4094 = vmul.f32 %v3831, %v3950
        %v4095 = vmul.f32 %v3833, %v3951
        %v4096 = vmul.f32 %v3835, %v3952
        %v4097 = vmul.f32 %v3837, %v3953
        %v4098 = vmul.f32 %v3839, %v3954
        %v4099 = vmul.f32 %v3841, %v3955
        %v4100 = vmul.f32 %v3843, %v3956
        %v4101 = vmul.f32 %v3845, %v3957
        %v4102 = vadd.f32 %v4070, %v4086
        %v4103 = vadd.f32 %v4071, %v4087
        %v4104 = vadd.f32 %v4072, %v4088
        %v4105 = vadd.f32 %v4073, %v4089
        %v4106 = vadd.f32 %v4074, %v4090
        %v4107 = vadd.f32 %v4075, %v4091
        %v4108 = vadd.f32 %v4076, %v4092
        %v4109 = vadd.f32 %v4077, %v4093
        %v4110 = vadd.f32 %v4078, %v4094
        %v4111 = vadd.f32 %v4079, %v4095
        %v4112 = vadd.f32 %v4080, %v4096
        %v4113 = vadd.f32 %v4081, %v4097
        %v4114 = vadd.f32 %v4082, %v4098
        %v4115 = vadd.f32 %v4083, %v4099
        %v4116 = vadd.f32 %v4084, %v4100
        %v4117 = vadd.f32 %v4085, %v4101
        %v4118 = vtanh.pop %v4102
        %v4119 = vtanh.pop %v4103
        %v4120 = vtanh.pop %v4104
        %v4121 = vtanh.pop %v4105
        %v4122 = vtanh.pop %v4106
        %v4123 = vtanh.pop %v4107
        %v4124 = vtanh.pop %v4108
        %v4125 = vtanh.pop %v4109
        %v4126 = vtanh.pop %v4110
        %v4127 = vtanh.pop %v4111
        %v4128 = vtanh.pop %v4112
        %v4129 = vtanh.pop %v4113
        %v4130 = vtanh.pop %v4114
        %v4131 = vtanh.pop %v4115
        %v4132 = vtanh.pop %v4116
        %v4133 = vtanh.pop %v4117
        %v4134 = vmul.f32 %v4023, %v4118
        %v4135 = vmul.f32 %v4025, %v4119
        %v4136 = vmul.f32 %v4027, %v4120
        %v4137 = vmul.f32 %v4029, %v4121
        %v4138 = vmul.f32 %v4031, %v4122
        %v4139 = vmul.f32 %v4033, %v4123
        %v4140 = vmul.f32 %v4035, %v4124
        %v4141 = vmul.f32 %v4037, %v4125
        %v4142 = vmul.f32 %v4039, %v4126
        %v4143 = vmul.f32 %v4041, %v4127
        %v4144 = vmul.f32 %v4043, %v4128
        %v4145 = vmul.f32 %v4045, %v4129
        %v4146 = vmul.f32 %v4047, %v4130
        %v4147 = vmul.f32 %v4049, %v4131
        %v4148 = vmul.f32 %v4051, %v4132
        %v4149 = vmul.f32 %v4053, %v4133
        %4150 = vst [vmem:[%s819] sm:$0xff] %v4134
        %4151 = vst [vmem:[%s819 + $0x8] sm:$0xff] %v4135
        %4152 = vst [vmem:[%s819 + $0x10] sm:$0xff] %v4136
        %4153 = vst [vmem:[%s819 + $0x18] sm:$0xff] %v4137
        %4154 = vst [vmem:[%s819 + $0x20] sm:$0xff] %v4138
        %4155 = vst [vmem:[%s819 + $0x28] sm:$0xff] %v4139
        %4156 = vst [vmem:[%s819 + $0x30] sm:$0xff] %v4140
        %4157 = vst [vmem:[%s819 + $0x38] sm:$0xff] %v4141
        %4158 = vst [vmem:[%s819 + $0x40] sm:$0xff] %v4142
        %4159 = vst [vmem:[%s819 + $0x48] sm:$0xff] %v4143
        %4160 = vst [vmem:[%s819 + $0x50] sm:$0xff] %v4144
        %4161 = vst [vmem:[%s819 + $0x58] sm:$0xff] %v4145
        %4162 = vst [vmem:[%s819 + $0x60] sm:$0xff] %v4146
        %4163 = vst [vmem:[%s819 + $0x68] sm:$0xff] %v4147
        %4164 = vst [vmem:[%s819 + $0x70] sm:$0xff] %v4148
        %4165 = vst [vmem:[%s819 + $0x78] sm:$0xff] %v4149
        %4166 = vst [vmem:[%s825] sm:$0xff] %v4102
        %4167 = vst [vmem:[%s825 + $0x8] sm:$0xff] %v4103
        %4168 = vst [vmem:[%s825 + $0x10] sm:$0xff] %v4104
        %4169 = vst [vmem:[%s825 + $0x18] sm:$0xff] %v4105
        %4170 = vst [vmem:[%s825 + $0x20] sm:$0xff] %v4106
        %4171 = vst [vmem:[%s825 + $0x28] sm:$0xff] %v4107
        %4172 = vst [vmem:[%s825 + $0x30] sm:$0xff] %v4108
        %4173 = vst [vmem:[%s825 + $0x38] sm:$0xff] %v4109
        %4174 = vst [vmem:[%s825 + $0x40] sm:$0xff] %v4110
        %4175 = vst [vmem:[%s825 + $0x48] sm:$0xff] %v4111
        %4176 = vst [vmem:[%s825 + $0x50] sm:$0xff] %v4112
        %4177 = vst [vmem:[%s825 + $0x58] sm:$0xff] %v4113
        %4178 = vst [vmem:[%s825 + $0x60] sm:$0xff] %v4114
        %4179 = vst [vmem:[%s825 + $0x68] sm:$0xff] %v4115
        %4180 = vst [vmem:[%s825 + $0x70] sm:$0xff] %v4116
        %4181 = vst [vmem:[%s825 + $0x78] sm:$0xff] %v4117
        %s4182 = sand.u32 %s119, 1
        %s4183 = sand.u32 %s119, 1
        %s4184 = smul.addr %s4183, 128
        %s4185 = scalar_lea.vmem [#allocation4], %s4184
        %s4186 = sand.u32 %s145, 1
        %s4187 = sand.u32 %s145, 1
        %s4188 = smul.addr %s4187, 128
        %s4189 = scalar_lea.vmem [#allocation5], %s4188
        // Predicated region
        $region83: #{convlstm3d_cell.1} parent=73 // pred_check
          %p4190 = pneg %p129
        $region84: #{convlstm3d_cell.1} parent=73 // pred_check_branch
          %4192 = sbr.rel (%p4190) target = $region86
        $region85: #{convlstm3d_cell.1} parent=73 // pred_region
          %s4193 = smul.u32 4, %s17
          %s4194 = smul.addr %s4193, 8
          %s4195 = scalar_lea.vmem %s4, %s4194
          // Predicated region
          $region87: #{convlstm3d_cell.1} parent=85 // pred_check
            _
          $region88: #{convlstm3d_cell.1} parent=85 // pred_check_branch
            %4197 = sbr.rel (0) target = $region90
          $region89: #{convlstm3d_cell.1} parent=85 // pred_region
            // Predicated region
            $region91: #{convlstm3d_cell.1} parent=89 // pred_check
              _
            $region92: #{convlstm3d_cell.1} parent=89 // pred_check_branch
              %4199 = sbr.rel (0) target = $region94
            $region93: #{convlstm3d_cell.1} parent=89 // pred_region
              loop: start=0, step=1, limit=1
              $region95: #{convlstm3d_cell.1} parent=93 // loop_pre_header
                _
              $region96: #{convlstm3d_cell.1} parent=93 // loop_header
                %s4201 = sphi 0, %s4205
                %p4202 = scmp.ge.s32.totalorder %s4201, 1
                %s4206 = sphi %s4185, %s4185
                %s4207 = sphi %s4195, %s4195
              $region97: #{convlstm3d_cell.1} parent=93 // loop_header_branch
                %4204 = sbr.rel (%p4202) target = $region101
              $region98: #{convlstm3d_cell.1} parent=93 // loop_body
                %v4208 = vld [vmem:[%s4206] sm:$0xff]
                %4209 = vst [vmem:[%s4207] sm:$0xff] %v4208
                %v4210 = vld [vmem:[%s4206 + $0x8] sm:$0xff]
                %4211 = vst [vmem:[%s4207 + $0x8] sm:$0xff] %v4210
                %v4212 = vld [vmem:[%s4206 + $0x10] sm:$0xff]
                %4213 = vst [vmem:[%s4207 + $0x10] sm:$0xff] %v4212
                %v4214 = vld [vmem:[%s4206 + $0x18] sm:$0xff]
                %4215 = vst [vmem:[%s4207 + $0x18] sm:$0xff] %v4214
                %v4216 = vld [vmem:[%s4206 + $0x20] sm:$0xff]
                %4217 = vst [vmem:[%s4207 + $0x200] sm:$0xff] %v4216
                %v4218 = vld [vmem:[%s4206 + $0x28] sm:$0xff]
                %4219 = vst [vmem:[%s4207 + $0x208] sm:$0xff] %v4218
                %v4220 = vld [vmem:[%s4206 + $0x30] sm:$0xff]
                %4221 = vst [vmem:[%s4207 + $0x210] sm:$0xff] %v4220
                %v4222 = vld [vmem:[%s4206 + $0x38] sm:$0xff]
                %4223 = vst [vmem:[%s4207 + $0x218] sm:$0xff] %v4222
                %v4224 = vld [vmem:[%s4206 + $0x40] sm:$0xff]
                %4225 = vst [vmem:[%s4207 + $0x400] sm:$0xff] %v4224
                %v4226 = vld [vmem:[%s4206 + $0x48] sm:$0xff]
                %4227 = vst [vmem:[%s4207 + $0x408] sm:$0xff] %v4226
                %v4228 = vld [vmem:[%s4206 + $0x50] sm:$0xff]
                %4229 = vst [vmem:[%s4207 + $0x410] sm:$0xff] %v4228
                %v4230 = vld [vmem:[%s4206 + $0x58] sm:$0xff]
                %4231 = vst [vmem:[%s4207 + $0x418] sm:$0xff] %v4230
                %v4232 = vld [vmem:[%s4206 + $0x60] sm:$0xff]
                %4233 = vst [vmem:[%s4207 + $0x600] sm:$0xff] %v4232
                %v4234 = vld [vmem:[%s4206 + $0x68] sm:$0xff]
                %4235 = vst [vmem:[%s4207 + $0x608] sm:$0xff] %v4234
                %v4236 = vld [vmem:[%s4206 + $0x70] sm:$0xff]
                %4237 = vst [vmem:[%s4207 + $0x610] sm:$0xff] %v4236
                %v4238 = vld [vmem:[%s4206 + $0x78] sm:$0xff]
                %4239 = vst [vmem:[%s4207 + $0x618] sm:$0xff] %v4238
              $region99: #{convlstm3d_cell.1} parent=93 // loop_footer
                %s4205 = sadd.s32 1, %s4201
              $region100: #{convlstm3d_cell.1} parent=93 // loop_footer_branch
                %4200 = sbr.rel target = $region96
              $region101: #{convlstm3d_cell.1} parent=93 // loop_exit
                _
            $region94: #{convlstm3d_cell.1} parent=89 // pred_fallthru
              _
            // Predicated region
            $region102: #{convlstm3d_cell.1} parent=89 // pred_check
              _
            $region103: #{convlstm3d_cell.1} parent=89 // pred_check_branch
              %4241 = sbr.rel target = $region105
            $region104: #{convlstm3d_cell.1} parent=89 // pred_region
              _
            $region105: #{convlstm3d_cell.1} parent=89 // pred_fallthru
              _
          $region90: #{convlstm3d_cell.1} parent=85 // pred_fallthru
            _
          %4242 = vnop
        $region86: #{convlstm3d_cell.1} parent=73 // pred_fallthru
          _
        // Predicated region
        $region106: #{convlstm3d_cell.1} parent=73 // pred_check
          %p4243 = pneg %p155
        $region107: #{convlstm3d_cell.1} parent=73 // pred_check_branch
          %4245 = sbr.rel (%p4243) target = $region109
        $region108: #{convlstm3d_cell.1} parent=73 // pred_region
          %s4246 = smul.u32 4, %s17
          %s4247 = smul.addr %s4246, 8
          %s4248 = scalar_lea.vmem %s5, %s4247
          // Predicated region
          $region110: #{convlstm3d_cell.1} parent=108 // pred_check
            _
          $region111: #{convlstm3d_cell.1} parent=108 // pred_check_branch
            %4250 = sbr.rel (0) target = $region113
          $region112: #{convlstm3d_cell.1} parent=108 // pred_region
            // Predicated region
            $region114: #{convlstm3d_cell.1} parent=112 // pred_check
              _
            $region115: #{convlstm3d_cell.1} parent=112 // pred_check_branch
              %4252 = sbr.rel (0) target = $region117
            $region116: #{convlstm3d_cell.1} parent=112 // pred_region
              loop: start=0, step=1, limit=1
              $region118: #{convlstm3d_cell.1} parent=116 // loop_pre_header
                _
              $region119: #{convlstm3d_cell.1} parent=116 // loop_header
                %s4254 = sphi 0, %s4258
                %p4255 = scmp.ge.s32.totalorder %s4254, 1
                %s4259 = sphi %s4189, %s4189
                %s4260 = sphi %s4248, %s4248
              $region120: #{convlstm3d_cell.1} parent=116 // loop_header_branch
                %4257 = sbr.rel (%p4255) target = $region124
              $region121: #{convlstm3d_cell.1} parent=116 // loop_body
                %v4261 = vld [vmem:[%s4259] sm:$0xff]
                %4262 = vst [vmem:[%s4260] sm:$0xff] %v4261
                %v4263 = vld [vmem:[%s4259 + $0x8] sm:$0xff]
                %4264 = vst [vmem:[%s4260 + $0x8] sm:$0xff] %v4263
                %v4265 = vld [vmem:[%s4259 + $0x10] sm:$0xff]
                %4266 = vst [vmem:[%s4260 + $0x10] sm:$0xff] %v4265
                %v4267 = vld [vmem:[%s4259 + $0x18] sm:$0xff]
                %4268 = vst [vmem:[%s4260 + $0x18] sm:$0xff] %v4267
                %v4269 = vld [vmem:[%s4259 + $0x20] sm:$0xff]
                %4270 = vst [vmem:[%s4260 + $0x200] sm:$0xff] %v4269
                %v4271 = vld [vmem:[%s4259 + $0x28] sm:$0xff]
                %4272 = vst [vmem:[%s4260 + $0x208] sm:$0xff] %v4271
                %v4273 = vld [vmem:[%s4259 + $0x30] sm:$0xff]
                %4274 = vst [vmem:[%s4260 + $0x210] sm:$0xff] %v4273
                %v4275 = vld [vmem:[%s4259 + $0x38] sm:$0xff]
                %4276 = vst [vmem:[%s4260 + $0x218] sm:$0xff] %v4275
                %v4277 = vld [vmem:[%s4259 + $0x40] sm:$0xff]
                %4278 = vst [vmem:[%s4260 + $0x400] sm:$0xff] %v4277
                %v4279 = vld [vmem:[%s4259 + $0x48] sm:$0xff]
                %4280 = vst [vmem:[%s4260 + $0x408] sm:$0xff] %v4279
                %v4281 = vld [vmem:[%s4259 + $0x50] sm:$0xff]
                %4282 = vst [vmem:[%s4260 + $0x410] sm:$0xff] %v4281
                %v4283 = vld [vmem:[%s4259 + $0x58] sm:$0xff]
                %4284 = vst [vmem:[%s4260 + $0x418] sm:$0xff] %v4283
                %v4285 = vld [vmem:[%s4259 + $0x60] sm:$0xff]
                %4286 = vst [vmem:[%s4260 + $0x600] sm:$0xff] %v4285
                %v4287 = vld [vmem:[%s4259 + $0x68] sm:$0xff]
                %4288 = vst [vmem:[%s4260 + $0x608] sm:$0xff] %v4287
                %v4289 = vld [vmem:[%s4259 + $0x70] sm:$0xff]
                %4290 = vst [vmem:[%s4260 + $0x610] sm:$0xff] %v4289
                %v4291 = vld [vmem:[%s4259 + $0x78] sm:$0xff]
                %4292 = vst [vmem:[%s4260 + $0x618] sm:$0xff] %v4291
              $region122: #{convlstm3d_cell.1} parent=116 // loop_footer
                %s4258 = sadd.s32 1, %s4254
              $region123: #{convlstm3d_cell.1} parent=116 // loop_footer_branch
                %4253 = sbr.rel target = $region119
              $region124: #{convlstm3d_cell.1} parent=116 // loop_exit
                _
            $region117: #{convlstm3d_cell.1} parent=112 // pred_fallthru
              _
            // Predicated region
            $region125: #{convlstm3d_cell.1} parent=112 // pred_check
              _
            $region126: #{convlstm3d_cell.1} parent=112 // pred_check_branch
              %4294 = sbr.rel target = $region128
            $region127: #{convlstm3d_cell.1} parent=112 // pred_region
              _
            $region128: #{convlstm3d_cell.1} parent=112 // pred_fallthru
              _
          $region113: #{convlstm3d_cell.1} parent=108 // pred_fallthru
            _
          %4295 = vnop
        $region109: #{convlstm3d_cell.1} parent=73 // pred_fallthru
          _
      $region74: #{convlstm3d_cell.1} parent=5 // pred_fallthru
        _
      %p4296 = scmp.le.s32.totalorder 2, %s12
      // Predicated region
      $region129: #{convlstm3d_cell.1} parent=5 // pred_check
        %p4297 = pneg %p4296
      $region130: #{convlstm3d_cell.1} parent=5 // pred_check_branch
        %4299 = sbr.rel (%p4297) target = $region132
      $region131: #{convlstm3d_cell.1} parent=5 // pred_region
        %s4300 = ssub.s32 %s12, 2
        // Predicated region
        $region133: #{convlstm3d_cell.1} parent=131 // pred_check
          %p4301 = pneg %p135
        $region134: #{convlstm3d_cell.1} parent=131 // pred_check_branch
          %4303 = sbr.rel (%p4301) target = $region136
        $region135: #{convlstm3d_cell.1} parent=131 // pred_region
          %s4304 = sand.u32 %s120, 1
          %s4305 = sand.u32 %s120, 1
          %s4306 = smul.addr %s4305, 128
          %s4307 = scalar_lea.vmem [#allocation4], %s4306
        $region136: #{convlstm3d_cell.1} parent=131 // pred_fallthru
          _
        // Predicated region
        $region137: #{convlstm3d_cell.1} parent=131 // pred_check
          %p4308 = pneg %p161
        $region138: #{convlstm3d_cell.1} parent=131 // pred_check_branch
          %4310 = sbr.rel (%p4308) target = $region140
        $region139: #{convlstm3d_cell.1} parent=131 // pred_region
          %s4311 = sand.u32 %s146, 1
          %s4312 = sand.u32 %s146, 1
          %s4313 = smul.addr %s4312, 128
          %s4314 = scalar_lea.vmem [#allocation5], %s4313
        $region140: #{convlstm3d_cell.1} parent=131 // pred_fallthru
          _
      $region132: #{convlstm3d_cell.1} parent=5 // pred_fallthru
        _
    $region6: #{convlstm3d_cell.1} parent=1 // loop_footer
      %s16 = sadd.s32 1, %s12
    $region7: #{convlstm3d_cell.1} parent=1 // loop_footer_branch
      %11 = sbr.rel target = $region3
    $region8: #{convlstm3d_cell.1} parent=1 // loop_exit
      _

</llo_original>
